<compile_context>
chip_gen: v5e
topology: v5e:2x2
jax: 0.10.0
libtpu: 0.0.40
codegen_flags: <defaults>
</compile_context>

<pallas_src>
import functools
import math

import jax
import jax.numpy as jnp
from jax.experimental import pallas as pl
from jax.experimental.pallas import tpu as pltpu

# ---- scaled-down bert-base-uncased config -----------------------------------
VOCAB = 100
TYPE_VOCAB = 2
MAX_POS = 16
HIDDEN = 128          # bert-base: 768
N_HEADS = 2           # bert-base: 12
HEAD_DIM = HIDDEN // N_HEADS
INTERMEDIATE = 512    # bert-base: 3072
N_LAYERS = 2          # bert-base: 12
N_LABELS = 10390      # as in BERTClass.l3 = nn.Linear(768, 10390)
LN_EPS = 1e-12

CLS_TILE_N = 1024                                   # classifier column tile
N_LABELS_PAD = ((N_LABELS + CLS_TILE_N - 1) // CLS_TILE_N) * CLS_TILE_N


# ----------------------------- in-kernel helpers ------------------------------
def _layer_norm(x, gamma, beta):
    mu = jnp.mean(x, axis=-1, keepdims=True)
    var = jnp.mean(jnp.square(x - mu), axis=-1, keepdims=True)
    return (x - mu) * jax.lax.rsqrt(var + LN_EPS) * gamma + beta


# ----------------------------- fused encoder kernel ---------------------------
def _encoder_kernel(emb_ref, eg_ref, eb_ref, bias_ref,
                    wqkv_ref, bqkv_ref, wo_ref, bo_ref, g1_ref, b1_ref,
                    wi_ref, bi_ref, wf_ref, bf_ref, g2_ref, b2_ref,
                    o_ref, ctx_sc, *, B, S):
    """One grid step = one transformer layer.  Hidden state lives in o_ref (VMEM)."""
    layer = pl.program_id(0)

    # Layer 0: embedding LayerNorm (pure LN, no zero-residual input stream).
    @pl.when(layer == 0)
    def _():
        o_ref[...] = _layer_norm(emb_ref[...], eg_ref[...], eb_ref[...])

    hidden = o_ref[...]                                       # (B*S, H)

    # ---- fused QKV projection: one (H, 3H) matmul ----
    qkv = jnp.dot(hidden, wqkv_ref[...],
                  preferred_element_type=jnp.float32) + bqkv_ref[...]
    q = qkv[:, 0 * HIDDEN:1 * HIDDEN]
    k = qkv[:, 1 * HIDDEN:2 * HIDDEN]
    v = qkv[:, 2 * HIDDEN:3 * HIDDEN]

    # ---- in-VMEM masked-softmax attention (batch/head loops unroll statically) ----
    scale = 1.0 / math.sqrt(HEAD_DIM)
    bias = bias_ref[...]                                      # (B, S) additive mask
    for b in range(B):
        bias_b = bias[b:b + 1, :]                             # (1, S)
        r0, r1 = b * S, (b + 1) * S
        for h in range(N_HEADS):
            c0, c1 = h * HEAD_DIM, (h + 1) * HEAD_DIM
            qbh = q[r0:r1, c0:c1]                             # (S, Dh)
            kbh = k[r0:r1, c0:c1]
            vbh = v[r0:r1, c0:c1]
            s = jnp.einsum("qd,kd->qk", qbh, kbh,
                           preferred_element_type=jnp.float32) * scale
            s = s + bias_b
            s = s - jnp.max(s, axis=-1, keepdims=True)
            p = jnp.exp(s)
            p = p / jnp.sum(p, axis=-1, keepdims=True)
            ctx_sc[r0:r1, c0:c1] = jnp.dot(p, vbh,
                                           preferred_element_type=jnp.float32)
    ctx = ctx_sc[...]                                         # (B*S, H)

    # ---- attention output projection + add & LayerNorm epilogue ----
    attn_out = jnp.dot(ctx, wo_ref[...],
                       preferred_element_type=jnp.float32) + bo_ref[...]
    h1 = _layer_norm(attn_out + hidden, g1_ref[...], b1_ref[...])

    # ---- feed-forward (GELU) + add & LayerNorm epilogue ----
    inter = jnp.dot(h1, wi_ref[...],
                    preferred_element_type=jnp.float32) + bi_ref[...]
    # TODO(synk): HF BERT default is exact (erf) GELU; tanh approximation used here.
    inter = jax.nn.gelu(inter, approximate=True)
    ffn_out = jnp.dot(inter, wf_ref[...],
                      preferred_element_type=jnp.float32) + bf_ref[...]
    o_ref[...] = _layer_norm(ffn_out + h1, g2_ref[...], b2_ref[...])


def bert_encoder(emb2d, attn_bias, params, B, S):
    """Runs the full N_LAYERS encoder in a single pallas_call."""
    M, H, I = B * S, HIDDEN, INTERMEDIATE

    def fixed(shape):
        n = len(shape)
        return pl.BlockSpec(shape, lambda l, _n=n: (0,) * _n)

    def layered(shape):                      # stacked per-layer param (leading L dim)
        n = len(shape)
        return pl.BlockSpec((None,) + shape, lambda l, _n=n: (l,) + (0,) * _n)

    in_specs = [
        fixed((M, H)),          # embeddings
        fixed((1, H)),          # emb LN gamma
        fixed((1, H)),          # emb LN beta
        fixed((B, S)),          # additive attention mask bias
        layered((H, 3 * H)),    # wqkv
        layered((1, 3 * H)),    # bqkv
        layered((H, H)),        # wo
        layered((1, H)),        # bo
        layered((1, H)),        # ln1 gamma
        layered((1, H)),        # ln1 beta
        layered((H, I)),        # wi
        layered((1, I)),        # bi
        layered((I, H)),        # wf
        layered((1, H)),        # bf
        layered((1, H)),        # ln2 gamma
        layered((1, H)),        # ln2 beta
    ]

    return pl.pallas_call(
        functools.partial(_encoder_kernel, B=B, S=S),
        out_shape=jax.ShapeDtypeStruct((M, H), jnp.float32),
        grid=(N_LAYERS,),
        in_specs=in_specs,
        out_specs=fixed((M, H)),             # same block every step -> hidden stays resident
        scratch_shapes=[pltpu.VMEM((M, H), jnp.float32)],   # attention context assembly
        compiler_params=pltpu.CompilerParams(dimension_semantics=("arbitrary",)),
    )(emb2d, params["emb_ln_g"], params["emb_ln_b"], attn_bias,
      params["wqkv"], params["bqkv"], params["wo"], params["bo"],
      params["ln1_g"], params["ln1_b"], params["wi"], params["bi"],
      params["wf"], params["bf"], params["ln2_g"], params["ln2_b"])


# ------------------------ fused pooler + classifier kernel ---------------------
def _pool_cls_kernel(cls_ref, pw_ref, pb_ref, w_ref, b_ref, o_ref):
    # Pooler (tiny (8,128)x(128,128) matmul) recomputed per tile so the grid stays
    # fully parallel (keeps both v7x TensorCores busy); cost is negligible.
    pooled = jnp.tanh(jnp.dot(cls_ref[...], pw_ref[...],
                              preferred_element_type=jnp.float32) + pb_ref[...])
    logits = jnp.dot(pooled.astype(jnp.bfloat16), w_ref[...],
                     preferred_element_type=jnp.float32)
    o_ref[...] = logits + b_ref[...]


def pooler_classifier(cls_tok, pool_w, pool_b, cls_w_pad, cls_b_pad, tn=CLS_TILE_N):
    """logits = Linear(tanh(cls_tok @ pool_w + pool_b)); classifier weight in bf16,
    pre-padded to a multiple of tn columns."""
    B, H = cls_tok.shape
    Mp = max(8, ((B + 7) // 8) * 8)                 # pad rows to a sublane multiple
    cls_pad = jnp.pad(cls_tok, ((0, Mp - B), (0, 0)))

    Np = cls_w_pad.shape[1]
    assert Np % tn == 0

    out = pl.pallas_call(
        _pool_cls_kernel,
        out_shape=jax.ShapeDtypeStruct((Mp, Np), jnp.float32),
        grid=(Np // tn,),
        in_specs=[
            pl.BlockSpec((Mp, H), lambda j: (0, 0)),   # padded [CLS] rows
            pl.BlockSpec((H, H), lambda j: (0, 0)),    # pooler weight
            pl.BlockSpec((1, H), lambda j: (0, 0)),    # pooler bias
            pl.BlockSpec((H, tn), lambda j: (0, j)),   # classifier weight tile (bf16)
            pl.BlockSpec((1, tn), lambda j: (0, j)),   # classifier bias tile
        ],
        out_specs=pl.BlockSpec((Mp, tn), lambda j: (0, j)),   # lane-dense unmasked stores
        compiler_params=pltpu.CompilerParams(dimension_semantics=("parallel",)),
    )(cls_pad, pool_w, pool_b, cls_w_pad, cls_b_pad)
    return out[:B, :N_LABELS]


# ----------------------------- parameters ------------------------------------
def init_params(key):
    def nrm(k, shape, scale=0.02):
        return scale * jax.random.normal(k, shape, dtype=jnp.float32)

    keys = iter(jax.random.split(key, 5 + 4 * N_LAYERS))

    cls_w = nrm_raw = None
    word_emb = nrm(next(keys), (VOCAB, HIDDEN))
    pos_emb = nrm(next(keys), (MAX_POS, HIDDEN))
    type_emb = nrm(next(keys), (TYPE_VOCAB, HIDDEN))
    pool_w = nrm(next(keys), (HIDDEN, HIDDEN))
    cls_w = nrm(next(keys), (HIDDEN, N_LABELS))

    # classifier weight stored in bf16 (streams half the HBM bytes; f32 accumulate),
    # pre-padded to the column-tile multiple so the jitted forward does no padding.
    cls_w_pad = jnp.pad(cls_w, ((0, 0), (0, N_LABELS_PAD - N_LABELS))).astype(jnp.bfloat16)
    cls_b_pad = jnp.zeros((1, N_LABELS_PAD), jnp.float32)

    params = {
        "word_emb": word_emb,
        "pos_emb": pos_emb,
        "type_emb": type_emb,
        "emb_ln_g": jnp.ones((1, HIDDEN), jnp.float32),
        "emb_ln_b": jnp.zeros((1, HIDDEN), jnp.float32),
        "pool_w": pool_w,
        "pool_b": jnp.zeros((1, HIDDEN), jnp.float32),
        "cls_w_pad": cls_w_pad,
        "cls_b_pad": cls_b_pad,
    }
    wqkv, wo, wi, wf = [], [], [], []
    for _ in range(N_LAYERS):
        wqkv.append(nrm(next(keys), (HIDDEN, 3 * HIDDEN)))
        wo.append(nrm(next(keys), (HIDDEN, HIDDEN)))
        wi.append(nrm(next(keys), (HIDDEN, INTERMEDIATE)))
        wf.append(nrm(next(keys), (INTERMEDIATE, HIDDEN)))
    params.update({
        "wqkv": jnp.stack(wqkv),
        "bqkv": jnp.zeros((N_LAYERS, 1, 3 * HIDDEN), jnp.float32),
        "wo": jnp.stack(wo),
        "bo": jnp.zeros((N_LAYERS, 1, HIDDEN), jnp.float32),
        "ln1_g": jnp.ones((N_LAYERS, 1, HIDDEN), jnp.float32),
        "ln1_b": jnp.zeros((N_LAYERS, 1, HIDDEN), jnp.float32),
        "wi": jnp.stack(wi),
        "bi": jnp.zeros((N_LAYERS, 1, INTERMEDIATE), jnp.float32),
        "wf": jnp.stack(wf),
        "bf": jnp.zeros((N_LAYERS, 1, HIDDEN), jnp.float32),
        "ln2_g": jnp.ones((N_LAYERS, 1, HIDDEN), jnp.float32),
        "ln2_b": jnp.zeros((N_LAYERS, 1, HIDDEN), jnp.float32),
    })
    return params


# ----------------------------- forward pass -----------------------------------
def bert_class_forward(params, ids, mask, token_type_ids):
    B, S = ids.shape

    # --- embeddings (gathers are plain-JAX glue) ---
    emb = (params["word_emb"][ids]
           + params["pos_emb"][:S][None, :, :]
           + params["type_emb"][token_type_ids])
    emb2d = emb.reshape(B * S, HIDDEN)
    # TODO(synk): HF BERT also applies embedding / attention-prob dropout; omitted (eval semantics).

    # additive attention-mask bias: (B, S)  (HF BERT uses -10000 for masked positions)
    attn_bias = (1.0 - mask.astype(jnp.float32)) * -10000.0

    # --- whole encoder (embedding LN + both layers) in one fused kernel ---
    hidden = bert_encoder(emb2d, attn_bias, params, B, S)     # (B*S, H)

    # --- pooler on [CLS] + classifier (dropout l2 = identity in eval) ---
    cls_tok = hidden.reshape(B, S, HIDDEN)[:, 0, :]           # (B, H)
    logits = pooler_classifier(cls_tok, params["pool_w"], params["pool_b"],
                               params["cls_w_pad"], params["cls_b_pad"])
    return logits                                             # (B, N_LABELS)


# ----------------------------------- main --------------------------------------
if __name__ == "__main__":
    key = jax.random.PRNGKey(0)
    pkey, ikey = jax.random.split(key)
    params = init_params(pkey)

    B, S = 2, 8
    ids = jax.random.randint(ikey, (B, S), 0, VOCAB, dtype=jnp.int32)
    mask = jnp.ones((B, S), jnp.int32).at[1, 6:].set(0)      # last 2 tokens of seq 1 are padding
    token_type_ids = jnp.zeros((B, S), jnp.int32)

    fwd = jax.jit(functools.partial(bert_class_forward, params))
    logits = fwd(ids, mask, token_type_ids)
    jax.block_until_ready(logits)

    assert logits.shape == (B, N_LABELS)
    assert logits.dtype == jnp.float32
    assert bool(jnp.all(jnp.isfinite(logits)))
    print("KERNEL_OK")
</pallas_src>

<mosaic_0001>
module attributes {stable_mosaic.version = 11 : i64} {
  func.func @_pool_cls_kernel(%arg0: i32, %arg1: memref<8x128xf32, #tpu.memory_space<vmem>>, %arg2: memref<128x128xf32, #tpu.memory_space<vmem>>, %arg3: memref<1x128xf32, #tpu.memory_space<vmem>>, %arg4: memref<128x1024xbf16, #tpu.memory_space<vmem>>, %arg5: memref<1x1024xf32, #tpu.memory_space<vmem>>, %arg6: memref<8x1024xf32, #tpu.memory_space<vmem>>) attributes {dimension_semantics = [#tpu.dimension_semantics<parallel>], iteration_bounds = array<i64: 11>, scalar_prefetch = 0 : i64, scratch_operands = 0 : i64, tpu.core_type = #tpu.core_type<tc>, window_params = [{pipeline_mode = #tpu.pipeline_mode<synchronous>, transform_indices = @transform_0, window_bounds = array<i64: 8, 128>}, {pipeline_mode = #tpu.pipeline_mode<synchronous>, transform_indices = @transform_1, window_bounds = array<i64: 128, 128>}, {pipeline_mode = #tpu.pipeline_mode<synchronous>, transform_indices = @transform_2, window_bounds = array<i64: 1, 128>}, {transform_indices = @transform_3, window_bounds = array<i64: 128, 1024>}, {transform_indices = @transform_4, window_bounds = array<i64: 1, 1024>}, {transform_indices = @transform_5, window_bounds = array<i64: 8, 1024>}]} {
    %c0 = arith.constant 0 : index
    %c0_0 = arith.constant 0 : index
    %0 = vector.load %arg1[%c0, %c0_0] : memref<8x128xf32, #tpu.memory_space<vmem>>, vector<8x128xf32>
    %c0_1 = arith.constant 0 : index
    %c0_2 = arith.constant 0 : index
    %1 = vector.load %arg2[%c0_1, %c0_2] : memref<128x128xf32, #tpu.memory_space<vmem>>, vector<128x128xf32>
    %cst = arith.constant dense<0.000000e+00> : vector<8x128xf32>
    %2 = tpu.matmul %0, %1, %cst {dimension_numbers = #tpu.dot_dimension_numbers<[1], [0], [0], [1], [0, 0, 1, 1], [], []>} : vector<8x128xf32>, vector<128x128xf32>, vector<8x128xf32> -> vector<8x128xf32>
    %c0_3 = arith.constant 0 : index
    %c0_4 = arith.constant 0 : index
    %3 = vector.load %arg3[%c0_3, %c0_4] : memref<1x128xf32, #tpu.memory_space<vmem>>, vector<1x128xf32>
    %4 = vector.broadcast %3 : vector<1x128xf32> to vector<8x128xf32>
    %5 = arith.addf %2, %4 : vector<8x128xf32>
    %6 = math.tanh %5 : vector<8x128xf32>
    %7 = arith.truncf %6 : vector<8x128xf32> to vector<8x128xbf16>
    %c0_5 = arith.constant 0 : index
    %c0_6 = arith.constant 0 : index
    %8 = vector.load %arg4[%c0_5, %c0_6] : memref<128x1024xbf16, #tpu.memory_space<vmem>>, vector<128x1024xbf16>
    %cst_7 = arith.constant dense<0.000000e+00> : vector<8x1024xf32>
    %9 = tpu.matmul %7, %8, %cst_7 {dimension_numbers = #tpu.dot_dimension_numbers<[1], [0], [0], [1], [0, 0, 1, 1], [], []>} : vector<8x128xbf16>, vector<128x1024xbf16>, vector<8x1024xf32> -> vector<8x1024xf32>
    %c0_8 = arith.constant 0 : index
    %c0_9 = arith.constant 0 : index
    %10 = vector.load %arg5[%c0_8, %c0_9] : memref<1x1024xf32, #tpu.memory_space<vmem>>, vector<1x1024xf32>
    %11 = vector.broadcast %10 : vector<1x1024xf32> to vector<8x1024xf32>
    %12 = arith.addf %9, %11 : vector<8x1024xf32>
    %c0_10 = arith.constant 0 : index
    %c0_11 = arith.constant 0 : index
    %13 = vector.load %arg6[%c0_10, %c0_11] : memref<8x1024xf32, #tpu.memory_space<vmem>>, vector<8x1024xf32>
    tpu.vector_store %arg6[%c0_10, %c0_11], %12 {strides = array<i32>} : memref<8x1024xf32, #tpu.memory_space<vmem>>, vector<8x1024xf32>,
    return
  }
  func.func @transform_0(%arg0: i32) -> (i32, i32) {
    %c0_i32 = arith.constant 0 : i32
    %c0_i32_0 = arith.constant 0 : i32
    %c0_i32_1 = arith.constant 0 : i32
    return %c0_i32, %c0_i32_0 : i32, i32
  }
  func.func @transform_1(%arg0: i32) -> (i32, i32) {
    %c0_i32 = arith.constant 0 : i32
    %c0_i32_0 = arith.constant 0 : i32
    %c0_i32_1 = arith.constant 0 : i32
    return %c0_i32, %c0_i32_0 : i32, i32
  }
  func.func @transform_2(%arg0: i32) -> (i32, i32) {
    %c0_i32 = arith.constant 0 : i32
    %c0_i32_0 = arith.constant 0 : i32
    %c0_i32_1 = arith.constant 0 : i32
    return %c0_i32, %c0_i32_0 : i32, i32
  }
  func.func @transform_3(%arg0: i32) -> (i32, i32) {
    %c0_i32 = arith.constant 0 : i32
    %c0_i32_0 = arith.constant 0 : i32
    return %c0_i32, %arg0 : i32, i32
  }
  func.func @transform_4(%arg0: i32) -> (i32, i32) {
    %c0_i32 = arith.constant 0 : i32
    %c0_i32_0 = arith.constant 0 : i32
    return %c0_i32, %arg0 : i32, i32
  }
  func.func @transform_5(%arg0: i32) -> (i32, i32) {
    %c0_i32 = arith.constant 0 : i32
    %c0_i32_0 = arith.constant 0 : i32
    return %c0_i32, %arg0 : i32, i32
  }
}

module attributes {stable_mosaic.version = 11 : i64} {
  func.func @_encoder_kernel(%arg0: i32, %arg1: memref<16x128xf32, #tpu.memory_space<vmem>>, %arg2: memref<1x128xf32, #tpu.memory_space<vmem>>, %arg3: memref<1x128xf32, #tpu.memory_space<vmem>>, %arg4: memref<2x8xf32, #tpu.memory_space<vmem>>, %arg5: memref<1x128x384xf32, #tpu.memory_space<vmem>>, %arg6: memref<1x1x384xf32, #tpu.memory_space<vmem>>, %arg7: memref<1x128x128xf32, #tpu.memory_space<vmem>>, %arg8: memref<1x1x128xf32, #tpu.memory_space<vmem>>, %arg9: memref<1x1x128xf32, #tpu.memory_space<vmem>>, %arg10: memref<1x1x128xf32, #tpu.memory_space<vmem>>, %arg11: memref<1x128x512xf32, #tpu.memory_space<vmem>>, %arg12: memref<1x1x512xf32, #tpu.memory_space<vmem>>, %arg13: memref<1x512x128xf32, #tpu.memory_space<vmem>>, %arg14: memref<1x1x128xf32, #tpu.memory_space<vmem>>, %arg15: memref<1x1x128xf32, #tpu.memory_space<vmem>>, %arg16: memref<1x1x128xf32, #tpu.memory_space<vmem>>, %arg17: memref<16x128xf32, #tpu.memory_space<vmem>>, %arg18: memref<16x128xf32, #tpu.memory_space<vmem>>) attributes {dimension_semantics = [#tpu.dimension_semantics<arbitrary>], iteration_bounds = array<i64: 2>, scalar_prefetch = 0 : i64, scratch_operands = 1 : i64, tpu.core_type = #tpu.core_type<tc>, window_params = [{pipeline_mode = #tpu.pipeline_mode<synchronous>, transform_indices = @transform_0, window_bounds = array<i64: 16, 128>}, {pipeline_mode = #tpu.pipeline_mode<synchronous>, transform_indices = @transform_1, window_bounds = array<i64: 1, 128>}, {pipeline_mode = #tpu.pipeline_mode<synchronous>, transform_indices = @transform_2, window_bounds = array<i64: 1, 128>}, {pipeline_mode = #tpu.pipeline_mode<synchronous>, transform_indices = @transform_3, window_bounds = array<i64: 2, 8>}, {transform_indices = @transform_4, window_bounds = array<i64: 1, 128, 384>}, {transform_indices = @transform_5, window_bounds = array<i64: 1, 1, 384>}, {transform_indices = @transform_6, window_bounds = array<i64: 1, 128, 128>}, {transform_indices = @transform_7, window_bounds = array<i64: 1, 1, 128>}, {transform_indices = @transform_8, window_bounds = array<i64: 1, 1, 128>}, {transform_indices = @transform_9, window_bounds = array<i64: 1, 1, 128>}, {transform_indices = @transform_10, window_bounds = array<i64: 1, 128, 512>}, {transform_indices = @transform_11, window_bounds = array<i64: 1, 1, 512>}, {transform_indices = @transform_12, window_bounds = array<i64: 1, 512, 128>}, {transform_indices = @transform_13, window_bounds = array<i64: 1, 1, 128>}, {transform_indices = @transform_14, window_bounds = array<i64: 1, 1, 128>}, {transform_indices = @transform_15, window_bounds = array<i64: 1, 1, 128>}, {pipeline_mode = #tpu.pipeline_mode<synchronous>, transform_indices = @transform_16, window_bounds = array<i64: 16, 128>}]} {
    %c0_i32 = arith.constant 0 : i32
    %0 = arith.cmpi eq, %arg0, %c0_i32 : i32
    %1 = arith.extui %0 : i1 to i32
    %c0_i32_0 = arith.constant 0 : i32
    %2 = arith.cmpi ne, %1, %c0_i32_0 : i32
    scf.if %2 {
      %c0_87 = arith.constant 0 : index
      %c0_88 = arith.constant 0 : index
      %183 = vector.load %arg1[%c0_87, %c0_88] : memref<16x128xf32, #tpu.memory_space<vmem>>, vector<16x128xf32>
      %c0_89 = arith.constant 0 : index
      %c0_90 = arith.constant 0 : index
      %184 = vector.load %arg2[%c0_89, %c0_90] : memref<1x128xf32, #tpu.memory_space<vmem>>, vector<1x128xf32>
      %c0_91 = arith.constant 0 : index
      %c0_92 = arith.constant 0 : index
      %185 = vector.load %arg3[%c0_91, %c0_92] : memref<1x128xf32, #tpu.memory_space<vmem>>, vector<1x128xf32>
      %cst_93 = arith.constant dense<0.000000e+00> : vector<16xf32>
      %186 = vector.multi_reduction <add>, %183, %cst_93 [1] : vector<16x128xf32> to vector<16xf32>
      %187 = vector.shape_cast %186 : vector<16xf32> to vector<16x1xf32>
      %cst_94 = arith.constant 1.280000e+02 : f32
      %188 = vector.broadcast %cst_94 : f32 to vector<16x1xf32>
      %189 = arith.divf %187, %188 : vector<16x1xf32>
      %190 = vector.broadcast %189 : vector<16x1xf32> to vector<16x128xf32>
      %191 = arith.subf %183, %190 : vector<16x128xf32>
      %192 = arith.mulf %191, %191 : vector<16x128xf32>
      %cst_95 = arith.constant dense<0.000000e+00> : vector<16xf32>
      %193 = vector.multi_reduction <add>, %192, %cst_95 [1] : vector<16x128xf32> to vector<16xf32>
      %194 = vector.shape_cast %193 : vector<16xf32> to vector<16x1xf32>
      %cst_96 = arith.constant 1.280000e+02 : f32
      %195 = vector.broadcast %cst_96 : f32 to vector<16x1xf32>
      %196 = arith.divf %194, %195 : vector<16x1xf32>
      %197 = vector.broadcast %189 : vector<16x1xf32> to vector<16x128xf32>
      %198 = arith.subf %183, %197 : vector<16x128xf32>
      %cst_97 = arith.constant 9.99999996E-13 : f32
      %199 = vector.broadcast %cst_97 : f32 to vector<16x1xf32>
      %200 = arith.addf %196, %199 : vector<16x1xf32>
      %201 = math.rsqrt %200 : vector<16x1xf32>
      %202 = vector.broadcast %201 : vector<16x1xf32> to vector<16x128xf32>
      %203 = arith.mulf %198, %202 : vector<16x128xf32>
      %204 = vector.broadcast %184 : vector<1x128xf32> to vector<16x128xf32>
      %205 = arith.mulf %203, %204 : vector<16x128xf32>
      %206 = vector.broadcast %185 : vector<1x128xf32> to vector<16x128xf32>
      %207 = arith.addf %205, %206 : vector<16x128xf32>
      %c0_98 = arith.constant 0 : index
      %c0_99 = arith.constant 0 : index
      %208 = vector.load %arg17[%c0_98, %c0_99] : memref<16x128xf32, #tpu.memory_space<vmem>>, vector<16x128xf32>
      tpu.vector_store %arg17[%c0_98, %c0_99], %207 {strides = array<i32>} : memref<16x128xf32, #tpu.memory_space<vmem>>, vector<16x128xf32>,
    } else {
    }
    %c0 = arith.constant 0 : index
    %c0_1 = arith.constant 0 : index
    %3 = vector.load %arg17[%c0, %c0_1] : memref<16x128xf32, #tpu.memory_space<vmem>>, vector<16x128xf32>
    %c0_2 = arith.constant 0 : index
    %c0_3 = arith.constant 0 : index
    %c0_4 = arith.constant 0 : index
    %4 = vector.load %arg5[%c0_2, %c0_3, %c0_4] : memref<1x128x384xf32, #tpu.memory_space<vmem>>, vector<1x128x384xf32>
    %5 = vector.shape_cast %4 : vector<1x128x384xf32> to vector<128x384xf32>
    %cst = arith.constant dense<0.000000e+00> : vector<16x384xf32>
    %6 = tpu.matmul %3, %5, %cst {dimension_numbers = #tpu.dot_dimension_numbers<[1], [0], [0], [1], [0, 0, 1, 1], [], []>} : vector<16x128xf32>, vector<128x384xf32>, vector<16x384xf32> -> vector<16x384xf32>
    %c0_5 = arith.constant 0 : index
    %c0_6 = arith.constant 0 : index
    %c0_7 = arith.constant 0 : index
    %7 = vector.load %arg6[%c0_5, %c0_6, %c0_7] : memref<1x1x384xf32, #tpu.memory_space<vmem>>, vector<1x1x384xf32>
    %8 = vector.shape_cast %7 : vector<1x1x384xf32> to vector<1x384xf32>
    %9 = vector.broadcast %8 : vector<1x384xf32> to vector<16x384xf32>
    %10 = arith.addf %6, %9 : vector<16x384xf32>
    %11 = vector.extract_strided_slice %10 {offsets = [0, 0], sizes = [16, 128], strides = [1, 1]} : vector<16x384xf32> to vector<16x128xf32>
    %12 = vector.extract_strided_slice %10 {offsets = [0, 128], sizes = [16, 128], strides = [1, 1]} : vector<16x384xf32> to vector<16x128xf32>
    %13 = vector.extract_strided_slice %10 {offsets = [0, 256], sizes = [16, 128], strides = [1, 1]} : vector<16x384xf32> to vector<16x128xf32>
    %c0_8 = arith.constant 0 : index
    %c0_9 = arith.constant 0 : index
    %14 = vector.load %arg4[%c0_8, %c0_9] : memref<2x8xf32, #tpu.memory_space<vmem>>, vector<2x8xf32>
    %15 = vector.extract_strided_slice %14 {offsets = [0, 0], sizes = [1, 8], strides = [1, 1]} : vector<2x8xf32> to vector<1x8xf32>
    %16 = vector.extract_strided_slice %11 {offsets = [0, 0], sizes = [8, 64], strides = [1, 1]} : vector<16x128xf32> to vector<8x64xf32>
    %17 = vector.extract_strided_slice %12 {offsets = [0, 0], sizes = [8, 64], strides = [1, 1]} : vector<16x128xf32> to vector<8x64xf32>
    %18 = vector.extract_strided_slice %13 {offsets = [0, 0], sizes = [8, 64], strides = [1, 1]} : vector<16x128xf32> to vector<8x64xf32>
    "tpu.trace_start"() <{level = 10 : i32, message = "qd,kd->qk"}> : () -> ()
    %cst_10 = arith.constant dense<0.000000e+00> : vector<8x8xf32>
    %19 = tpu.matmul %16, %17, %cst_10 {dimension_numbers = #tpu.dot_dimension_numbers<[1], [1], [0], [0], [0, 0, 1, 0], [], []>} : vector<8x64xf32>, vector<8x64xf32>, vector<8x8xf32> -> vector<8x8xf32>
    "tpu.trace_stop"() : () -> ()
    %cst_11 = arith.constant 1.250000e-01 : f32
    %20 = vector.broadcast %cst_11 : f32 to vector<8x8xf32>
    %21 = arith.mulf %19, %20 : vector<8x8xf32>
    %22 = vector.broadcast %15 : vector<1x8xf32> to vector<8x8xf32>
    %23 = arith.addf %21, %22 : vector<8x8xf32>
    %cst_12 = arith.constant dense<0xFF800000> : vector<8xf32>
    %24 = vector.multi_reduction <maximumf>, %23, %cst_12 [1] : vector<8x8xf32> to vector<8xf32>
    %25 = vector.shape_cast %24 : vector<8xf32> to vector<8x1xf32>
    %26 = vector.broadcast %25 : vector<8x1xf32> to vector<8x8xf32>
    %27 = arith.subf %23, %26 : vector<8x8xf32>
    %28 = math.exp %27 : vector<8x8xf32>
    %cst_13 = arith.constant dense<0.000000e+00> : vector<8xf32>
    %29 = vector.multi_reduction <add>, %28, %cst_13 [1] : vector<8x8xf32> to vector<8xf32>
    %30 = vector.shape_cast %29 : vector<8xf32> to vector<8x1xf32>
    %31 = vector.broadcast %30 : vector<8x1xf32> to vector<8x8xf32>
    %32 = arith.divf %28, %31 : vector<8x8xf32>
    %cst_14 = arith.constant dense<0.000000e+00> : vector<8x64xf32>
    %33 = tpu.matmul %32, %18, %cst_14 {dimension_numbers = #tpu.dot_dimension_numbers<[1], [0], [0], [1], [0, 0, 1, 1], [], []>} : vector<8x8xf32>, vector<8x64xf32>, vector<8x64xf32> -> vector<8x64xf32>
    %c0_15 = arith.constant 0 : index
    %c0_16 = arith.constant 0 : index
    %34 = vector.load %arg18[%c0_15, %c0_16] : memref<16x128xf32, #tpu.memory_space<vmem>>, vector<8x64xf32>
    tpu.vector_store %arg18[%c0_15, %c0_16], %33 {strides = array<i32>} : memref<16x128xf32, #tpu.memory_space<vmem>>, vector<8x64xf32>,
    %35 = vector.extract_strided_slice %11 {offsets = [0, 64], sizes = [8, 64], strides = [1, 1]} : vector<16x128xf32> to vector<8x64xf32>
    %36 = vector.extract_strided_slice %12 {offsets = [0, 64], sizes = [8, 64], strides = [1, 1]} : vector<16x128xf32> to vector<8x64xf32>
    %37 = vector.extract_strided_slice %13 {offsets = [0, 64], sizes = [8, 64], strides = [1, 1]} : vector<16x128xf32> to vector<8x64xf32>
    "tpu.trace_start"() <{level = 10 : i32, message = "qd,kd->qk"}> : () -> ()
    %cst_17 = arith.constant dense<0.000000e+00> : vector<8x8xf32>
    %38 = tpu.matmul %35, %36, %cst_17 {dimension_numbers = #tpu.dot_dimension_numbers<[1], [1], [0], [0], [0, 0, 1, 0], [], []>} : vector<8x64xf32>, vector<8x64xf32>, vector<8x8xf32> -> vector<8x8xf32>
    "tpu.trace_stop"() : () -> ()
    %cst_18 = arith.constant 1.250000e-01 : f32
    %39 = vector.broadcast %cst_18 : f32 to vector<8x8xf32>
    %40 = arith.mulf %38, %39 : vector<8x8xf32>
    %41 = vector.broadcast %15 : vector<1x8xf32> to vector<8x8xf32>
    %42 = arith.addf %40, %41 : vector<8x8xf32>
    %cst_19 = arith.constant dense<0xFF800000> : vector<8xf32>
    %43 = vector.multi_reduction <maximumf>, %42, %cst_19 [1] : vector<8x8xf32> to vector<8xf32>
    %44 = vector.shape_cast %43 : vector<8xf32> to vector<8x1xf32>
    %45 = vector.broadcast %44 : vector<8x1xf32> to vector<8x8xf32>
    %46 = arith.subf %42, %45 : vector<8x8xf32>
    %47 = math.exp %46 : vector<8x8xf32>
    %cst_20 = arith.constant dense<0.000000e+00> : vector<8xf32>
    %48 = vector.multi_reduction <add>, %47, %cst_20 [1] : vector<8x8xf32> to vector<8xf32>
    %49 = vector.shape_cast %48 : vector<8xf32> to vector<8x1xf32>
    %50 = vector.broadcast %49 : vector<8x1xf32> to vector<8x8xf32>
    %51 = arith.divf %47, %50 : vector<8x8xf32>
    %cst_21 = arith.constant dense<0.000000e+00> : vector<8x64xf32>
    %52 = tpu.matmul %51, %37, %cst_21 {dimension_numbers = #tpu.dot_dimension_numbers<[1], [0], [0], [1], [0, 0, 1, 1], [], []>} : vector<8x8xf32>, vector<8x64xf32>, vector<8x64xf32> -> vector<8x64xf32>
    %c0_22 = arith.constant 0 : index
    %c64 = arith.constant 64 : index
    %53 = vector.load %arg18[%c0_22, %c64] : memref<16x128xf32, #tpu.memory_space<vmem>>, vector<8x64xf32>
    tpu.vector_store %arg18[%c0_22, %c64], %52 {strides = array<i32>} : memref<16x128xf32, #tpu.memory_space<vmem>>, vector<8x64xf32>,
    %54 = vector.extract_strided_slice %14 {offsets = [1, 0], sizes = [1, 8], strides = [1, 1]} : vector<2x8xf32> to vector<1x8xf32>
    %55 = vector.extract_strided_slice %11 {offsets = [8, 0], sizes = [8, 64], strides = [1, 1]} : vector<16x128xf32> to vector<8x64xf32>
    %56 = vector.extract_strided_slice %12 {offsets = [8, 0], sizes = [8, 64], strides = [1, 1]} : vector<16x128xf32> to vector<8x64xf32>
    %57 = vector.extract_strided_slice %13 {offsets = [8, 0], sizes = [8, 64], strides = [1, 1]} : vector<16x128xf32> to vector<8x64xf32>
    "tpu.trace_start"() <{level = 10 : i32, message = "qd,kd->qk"}> : () -> ()
    %cst_23 = arith.constant dense<0.000000e+00> : vector<8x8xf32>
    %58 = tpu.matmul %55, %56, %cst_23 {dimension_numbers = #tpu.dot_dimension_numbers<[1], [1], [0], [0], [0, 0, 1, 0], [], []>} : vector<8x64xf32>, vector<8x64xf32>, vector<8x8xf32> -> vector<8x8xf32>
    "tpu.trace_stop"() : () -> ()
    %cst_24 = arith.constant 1.250000e-01 : f32
    %59 = vector.broadcast %cst_24 : f32 to vector<8x8xf32>
    %60 = arith.mulf %58, %59 : vector<8x8xf32>
    %61 = vector.broadcast %54 : vector<1x8xf32> to vector<8x8xf32>
    %62 = arith.addf %60, %61 : vector<8x8xf32>
    %cst_25 = arith.constant dense<0xFF800000> : vector<8xf32>
    %63 = vector.multi_reduction <maximumf>, %62, %cst_25 [1] : vector<8x8xf32> to vector<8xf32>
    %64 = vector.shape_cast %63 : vector<8xf32> to vector<8x1xf32>
    %65 = vector.broadcast %64 : vector<8x1xf32> to vector<8x8xf32>
    %66 = arith.subf %62, %65 : vector<8x8xf32>
    %67 = math.exp %66 : vector<8x8xf32>
    %cst_26 = arith.constant dense<0.000000e+00> : vector<8xf32>
    %68 = vector.multi_reduction <add>, %67, %cst_26 [1] : vector<8x8xf32> to vector<8xf32>
    %69 = vector.shape_cast %68 : vector<8xf32> to vector<8x1xf32>
    %70 = vector.broadcast %69 : vector<8x1xf32> to vector<8x8xf32>
    %71 = arith.divf %67, %70 : vector<8x8xf32>
    %cst_27 = arith.constant dense<0.000000e+00> : vector<8x64xf32>
    %72 = tpu.matmul %71, %57, %cst_27 {dimension_numbers = #tpu.dot_dimension_numbers<[1], [0], [0], [1], [0, 0, 1, 1], [], []>} : vector<8x8xf32>, vector<8x64xf32>, vector<8x64xf32> -> vector<8x64xf32>
    %c8 = arith.constant 8 : index
    %c0_28 = arith.constant 0 : index
    %73 = vector.load %arg18[%c8, %c0_28] : memref<16x128xf32, #tpu.memory_space<vmem>>, vector<8x64xf32>
    tpu.vector_store %arg18[%c8, %c0_28], %72 {strides = array<i32>} : memref<16x128xf32, #tpu.memory_space<vmem>>, vector<8x64xf32>,
    %74 = vector.extract_strided_slice %11 {offsets = [8, 64], sizes = [8, 64], strides = [1, 1]} : vector<16x128xf32> to vector<8x64xf32>
    %75 = vector.extract_strided_slice %12 {offsets = [8, 64], sizes = [8, 64], strides = [1, 1]} : vector<16x128xf32> to vector<8x64xf32>
    %76 = vector.extract_strided_slice %13 {offsets = [8, 64], sizes = [8, 64], strides = [1, 1]} : vector<16x128xf32> to vector<8x64xf32>
    "tpu.trace_start"() <{level = 10 : i32, message = "qd,kd->qk"}> : () -> ()
    %cst_29 = arith.constant dense<0.000000e+00> : vector<8x8xf32>
    %77 = tpu.matmul %74, %75, %cst_29 {dimension_numbers = #tpu.dot_dimension_numbers<[1], [1], [0], [0], [0, 0, 1, 0], [], []>} : vector<8x64xf32>, vector<8x64xf32>, vector<8x8xf32> -> vector<8x8xf32>
    "tpu.trace_stop"() : () -> ()
    %cst_30 = arith.constant 1.250000e-01 : f32
    %78 = vector.broadcast %cst_30 : f32 to vector<8x8xf32>
    %79 = arith.mulf %77, %78 : vector<8x8xf32>
    %80 = vector.broadcast %54 : vector<1x8xf32> to vector<8x8xf32>
    %81 = arith.addf %79, %80 : vector<8x8xf32>
    %cst_31 = arith.constant dense<0xFF800000> : vector<8xf32>
    %82 = vector.multi_reduction <maximumf>, %81, %cst_31 [1] : vector<8x8xf32> to vector<8xf32>
    %83 = vector.shape_cast %82 : vector<8xf32> to vector<8x1xf32>
    %84 = vector.broadcast %83 : vector<8x1xf32> to vector<8x8xf32>
    %85 = arith.subf %81, %84 : vector<8x8xf32>
    %86 = math.exp %85 : vector<8x8xf32>
    %cst_32 = arith.constant dense<0.000000e+00> : vector<8xf32>
    %87 = vector.multi_reduction <add>, %86, %cst_32 [1] : vector<8x8xf32> to vector<8xf32>
    %88 = vector.shape_cast %87 : vector<8xf32> to vector<8x1xf32>
    %89 = vector.broadcast %88 : vector<8x1xf32> to vector<8x8xf32>
    %90 = arith.divf %86, %89 : vector<8x8xf32>
    %cst_33 = arith.constant dense<0.000000e+00> : vector<8x64xf32>
    %91 = tpu.matmul %90, %76, %cst_33 {dimension_numbers = #tpu.dot_dimension_numbers<[1], [0], [0], [1], [0, 0, 1, 1], [], []>} : vector<8x8xf32>, vector<8x64xf32>, vector<8x64xf32> -> vector<8x64xf32>
    %c8_34 = arith.constant 8 : index
    %c64_35 = arith.constant 64 : index
    %92 = vector.load %arg18[%c8_34, %c64_35] : memref<16x128xf32, #tpu.memory_space<vmem>>, vector<8x64xf32>
    tpu.vector_store %arg18[%c8_34, %c64_35], %91 {strides = array<i32>} : memref<16x128xf32, #tpu.memory_space<vmem>>, vector<8x64xf32>,
    %c0_36 = arith.constant 0 : index
    %c0_37 = arith.constant 0 : index
    %93 = vector.load %arg18[%c0_36, %c0_37] : memref<16x128xf32, #tpu.memory_space<vmem>>, vector<16x128xf32>
    %c0_38 = arith.constant 0 : index
    %c0_39 = arith.constant 0 : index
    %c0_40 = arith.constant 0 : index
    %94 = vector.load %arg7[%c0_38, %c0_39, %c0_40] : memref<1x128x128xf32, #tpu.memory_space<vmem>>, vector<1x128x128xf32>
    %95 = vector.shape_cast %94 : vector<1x128x128xf32> to vector<128x128xf32>
    %cst_41 = arith.constant dense<0.000000e+00> : vector<16x128xf32>
    %96 = tpu.matmul %93, %95, %cst_41 {dimension_numbers = #tpu.dot_dimension_numbers<[1], [0], [0], [1], [0, 0, 1, 1], [], []>} : vector<16x128xf32>, vector<128x128xf32>, vector<16x128xf32> -> vector<16x128xf32>
    %c0_42 = arith.constant 0 : index
    %c0_43 = arith.constant 0 : index
    %c0_44 = arith.constant 0 : index
    %97 = vector.load %arg8[%c0_42, %c0_43, %c0_44] : memref<1x1x128xf32, #tpu.memory_space<vmem>>, vector<1x1x128xf32>
    %98 = vector.shape_cast %97 : vector<1x1x128xf32> to vector<1x128xf32>
    %99 = vector.broadcast %98 : vector<1x128xf32> to vector<16x128xf32>
    %100 = arith.addf %96, %99 : vector<16x128xf32>
    %101 = arith.addf %100, %3 : vector<16x128xf32>
    %c0_45 = arith.constant 0 : index
    %c0_46 = arith.constant 0 : index
    %c0_47 = arith.constant 0 : index
    %102 = vector.load %arg9[%c0_45, %c0_46, %c0_47] : memref<1x1x128xf32, #tpu.memory_space<vmem>>, vector<1x1x128xf32>
    %103 = vector.shape_cast %102 : vector<1x1x128xf32> to vector<1x128xf32>
    %c0_48 = arith.constant 0 : index
    %c0_49 = arith.constant 0 : index
    %c0_50 = arith.constant 0 : index
    %104 = vector.load %arg10[%c0_48, %c0_49, %c0_50] : memref<1x1x128xf32, #tpu.memory_space<vmem>>, vector<1x1x128xf32>
    %105 = vector.shape_cast %104 : vector<1x1x128xf32> to vector<1x128xf32>
    %cst_51 = arith.constant dense<0.000000e+00> : vector<16xf32>
    %106 = vector.multi_reduction <add>, %101, %cst_51 [1] : vector<16x128xf32> to vector<16xf32>
    %107 = vector.shape_cast %106 : vector<16xf32> to vector<16x1xf32>
    %cst_52 = arith.constant 1.280000e+02 : f32
    %108 = vector.broadcast %cst_52 : f32 to vector<16x1xf32>
    %109 = arith.divf %107, %108 : vector<16x1xf32>
    %110 = vector.broadcast %109 : vector<16x1xf32> to vector<16x128xf32>
    %111 = arith.subf %101, %110 : vector<16x128xf32>
    %112 = arith.mulf %111, %111 : vector<16x128xf32>
    %cst_53 = arith.constant dense<0.000000e+00> : vector<16xf32>
    %113 = vector.multi_reduction <add>, %112, %cst_53 [1] : vector<16x128xf32> to vector<16xf32>
    %114 = vector.shape_cast %113 : vector<16xf32> to vector<16x1xf32>
    %cst_54 = arith.constant 1.280000e+02 : f32
    %115 = vector.broadcast %cst_54 : f32 to vector<16x1xf32>
    %116 = arith.divf %114, %115 : vector<16x1xf32>
    %117 = vector.broadcast %109 : vector<16x1xf32> to vector<16x128xf32>
    %118 = arith.subf %101, %117 : vector<16x128xf32>
    %cst_55 = arith.constant 9.99999996E-13 : f32
    %119 = vector.broadcast %cst_55 : f32 to vector<16x1xf32>
    %120 = arith.addf %116, %119 : vector<16x1xf32>
    %121 = math.rsqrt %120 : vector<16x1xf32>
    %122 = vector.broadcast %121 : vector<16x1xf32> to vector<16x128xf32>
    %123 = arith.mulf %118, %122 : vector<16x128xf32>
    %124 = vector.broadcast %103 : vector<1x128xf32> to vector<16x128xf32>
    %125 = arith.mulf %123, %124 : vector<16x128xf32>
    %126 = vector.broadcast %105 : vector<1x128xf32> to vector<16x128xf32>
    %127 = arith.addf %125, %126 : vector<16x128xf32>
    %c0_56 = arith.constant 0 : index
    %c0_57 = arith.constant 0 : index
    %c0_58 = arith.constant 0 : index
    %128 = vector.load %arg11[%c0_56, %c0_57, %c0_58] : memref<1x128x512xf32, #tpu.memory_space<vmem>>, vector<1x128x512xf32>
    %129 = vector.shape_cast %128 : vector<1x128x512xf32> to vector<128x512xf32>
    %cst_59 = arith.constant dense<0.000000e+00> : vector<16x512xf32>
    %130 = tpu.matmul %127, %129, %cst_59 {dimension_numbers = #tpu.dot_dimension_numbers<[1], [0], [0], [1], [0, 0, 1, 1], [], []>} : vector<16x128xf32>, vector<128x512xf32>, vector<16x512xf32> -> vector<16x512xf32>
    %c0_60 = arith.constant 0 : index
    %c0_61 = arith.constant 0 : index
    %c0_62 = arith.constant 0 : index
    %131 = vector.load %arg12[%c0_60, %c0_61, %c0_62] : memref<1x1x512xf32, #tpu.memory_space<vmem>>, vector<1x1x512xf32>
    %132 = vector.shape_cast %131 : vector<1x1x512xf32> to vector<1x512xf32>
    %133 = vector.broadcast %132 : vector<1x512xf32> to vector<16x512xf32>
    %134 = arith.addf %130, %133 : vector<16x512xf32>
    %135 = arith.mulf %134, %134 : vector<16x512xf32>
    %136 = arith.mulf %134, %135 : vector<16x512xf32>
    %cst_63 = arith.constant 4.471500e-02 : f32
    %137 = vector.broadcast %cst_63 : f32 to vector<16x512xf32>
    %138 = arith.mulf %137, %136 : vector<16x512xf32>
    %139 = arith.addf %134, %138 : vector<16x512xf32>
    %cst_64 = arith.constant 0.797884583 : f32
    %140 = vector.broadcast %cst_64 : f32 to vector<16x512xf32>
    %141 = arith.mulf %140, %139 : vector<16x512xf32>
    %142 = math.tanh %141 : vector<16x512xf32>
    %cst_65 = arith.constant 1.000000e+00 : f32
    %143 = vector.broadcast %cst_65 : f32 to vector<16x512xf32>
    %144 = arith.addf %143, %142 : vector<16x512xf32>
    %cst_66 = arith.constant 5.000000e-01 : f32
    %145 = vector.broadcast %cst_66 : f32 to vector<16x512xf32>
    %146 = arith.mulf %145, %144 : vector<16x512xf32>
    %147 = arith.mulf %134, %146 : vector<16x512xf32>
    %c0_67 = arith.constant 0 : index
    %c0_68 = arith.constant 0 : index
    %c0_69 = arith.constant 0 : index
    %148 = vector.load %arg13[%c0_67, %c0_68, %c0_69] : memref<1x512x128xf32, #tpu.memory_space<vmem>>, vector<1x512x128xf32>
    %149 = vector.shape_cast %148 : vector<1x512x128xf32> to vector<512x128xf32>
    %cst_70 = arith.constant dense<0.000000e+00> : vector<16x128xf32>
    %150 = tpu.matmul %147, %149, %cst_70 {dimension_numbers = #tpu.dot_dimension_numbers<[1], [0], [0], [1], [0, 0, 1, 1], [], []>} : vector<16x512xf32>, vector<512x128xf32>, vector<16x128xf32> -> vector<16x128xf32>
    %c0_71 = arith.constant 0 : index
    %c0_72 = arith.constant 0 : index
    %c0_73 = arith.constant 0 : index
    %151 = vector.load %arg14[%c0_71, %c0_72, %c0_73] : memref<1x1x128xf32, #tpu.memory_space<vmem>>, vector<1x1x128xf32>
    %152 = vector.shape_cast %151 : vector<1x1x128xf32> to vector<1x128xf32>
    %153 = vector.broadcast %152 : vector<1x128xf32> to vector<16x128xf32>
    %154 = arith.addf %150, %153 : vector<16x128xf32>
    %155 = arith.addf %154, %127 : vector<16x128xf32>
    %c0_74 = arith.constant 0 : index
    %c0_75 = arith.constant 0 : index
    %c0_76 = arith.constant 0 : index
    %156 = vector.load %arg15[%c0_74, %c0_75, %c0_76] : memref<1x1x128xf32, #tpu.memory_space<vmem>>, vector<1x1x128xf32>
    %157 = vector.shape_cast %156 : vector<1x1x128xf32> to vector<1x128xf32>
    %c0_77 = arith.constant 0 : index
    %c0_78 = arith.constant 0 : index
    %c0_79 = arith.constant 0 : index
    %158 = vector.load %arg16[%c0_77, %c0_78, %c0_79] : memref<1x1x128xf32, #tpu.memory_space<vmem>>, vector<1x1x128xf32>
    %159 = vector.shape_cast %158 : vector<1x1x128xf32> to vector<1x128xf32>
    %cst_80 = arith.constant dense<0.000000e+00> : vector<16xf32>
    %160 = vector.multi_reduction <add>, %155, %cst_80 [1] : vector<16x128xf32> to vector<16xf32>
    %161 = vector.shape_cast %160 : vector<16xf32> to vector<16x1xf32>
    %cst_81 = arith.constant 1.280000e+02 : f32
    %162 = vector.broadcast %cst_81 : f32 to vector<16x1xf32>
    %163 = arith.divf %161, %162 : vector<16x1xf32>
    %164 = vector.broadcast %163 : vector<16x1xf32> to vector<16x128xf32>
    %165 = arith.subf %155, %164 : vector<16x128xf32>
    %166 = arith.mulf %165, %165 : vector<16x128xf32>
    %cst_82 = arith.constant dense<0.000000e+00> : vector<16xf32>
    %167 = vector.multi_reduction <add>, %166, %cst_82 [1] : vector<16x128xf32> to vector<16xf32>
    %168 = vector.shape_cast %167 : vector<16xf32> to vector<16x1xf32>
    %cst_83 = arith.constant 1.280000e+02 : f32
    %169 = vector.broadcast %cst_83 : f32 to vector<16x1xf32>
    %170 = arith.divf %168, %169 : vector<16x1xf32>
    %171 = vector.broadcast %163 : vector<16x1xf32> to vector<16x128xf32>
    %172 = arith.subf %155, %171 : vector<16x128xf32>
    %cst_84 = arith.constant 9.99999996E-13 : f32
    %173 = vector.broadcast %cst_84 : f32 to vector<16x1xf32>
    %174 = arith.addf %170, %173 : vector<16x1xf32>
    %175 = math.rsqrt %174 : vector<16x1xf32>
    %176 = vector.broadcast %175 : vector<16x1xf32> to vector<16x128xf32>
    %177 = arith.mulf %172, %176 : vector<16x128xf32>
    %178 = vector.broadcast %157 : vector<1x128xf32> to vector<16x128xf32>
    %179 = arith.mulf %177, %178 : vector<16x128xf32>
    %180 = vector.broadcast %159 : vector<1x128xf32> to vector<16x128xf32>
    %181 = arith.addf %179, %180 : vector<16x128xf32>
    %c0_85 = arith.constant 0 : index
    %c0_86 = arith.constant 0 : index
    %182 = vector.load %arg17[%c0_85, %c0_86] : memref<16x128xf32, #tpu.memory_space<vmem>>, vector<16x128xf32>
    tpu.vector_store %arg17[%c0_85, %c0_86], %181 {strides = array<i32>} : memref<16x128xf32, #tpu.memory_space<vmem>>, vector<16x128xf32>,
    return
  }
  func.func @transform_0(%arg0: i32) -> (i32, i32) {
    %c0_i32 = arith.constant 0 : i32
    %c0_i32_0 = arith.constant 0 : i32
    %c0_i32_1 = arith.constant 0 : i32
    return %c0_i32, %c0_i32_0 : i32, i32
  }
  func.func @transform_1(%arg0: i32) -> (i32, i32) {
    %c0_i32 = arith.constant 0 : i32
    %c0_i32_0 = arith.constant 0 : i32
    %c0_i32_1 = arith.constant 0 : i32
    return %c0_i32, %c0_i32_0 : i32, i32
  }
  func.func @transform_2(%arg0: i32) -> (i32, i32) {
    %c0_i32 = arith.constant 0 : i32
    %c0_i32_0 = arith.constant 0 : i32
    %c0_i32_1 = arith.constant 0 : i32
    return %c0_i32, %c0_i32_0 : i32, i32
  }
  func.func @transform_3(%arg0: i32) -> (i32, i32) {
    %c0_i32 = arith.constant 0 : i32
    %c0_i32_0 = arith.constant 0 : i32
    %c0_i32_1 = arith.constant 0 : i32
    return %c0_i32, %c0_i32_0 : i32, i32
  }
  func.func @transform_4(%arg0: i32) -> (i32, i32, i32) {
    %c0_i32 = arith.constant 0 : i32
    %c0_i32_0 = arith.constant 0 : i32
    %c0_i32_1 = arith.constant 0 : i32
    return %arg0, %c0_i32, %c0_i32_0 : i32, i32, i32
  }
  func.func @transform_5(%arg0: i32) -> (i32, i32, i32) {
    %c0_i32 = arith.constant 0 : i32
    %c0_i32_0 = arith.constant 0 : i32
    %c0_i32_1 = arith.constant 0 : i32
    return %arg0, %c0_i32, %c0_i32_0 : i32, i32, i32
  }
  func.func @transform_6(%arg0: i32) -> (i32, i32, i32) {
    %c0_i32 = arith.constant 0 : i32
    %c0_i32_0 = arith.constant 0 : i32
    %c0_i32_1 = arith.constant 0 : i32
    return %arg0, %c0_i32, %c0_i32_0 : i32, i32, i32
  }
  func.func @transform_7(%arg0: i32) -> (i32, i32, i32) {
    %c0_i32 = arith.constant 0 : i32
    %c0_i32_0 = arith.constant 0 : i32
    %c0_i32_1 = arith.constant 0 : i32
    return %arg0, %c0_i32, %c0_i32_0 : i32, i32, i32
  }
  func.func @transform_8(%arg0: i32) -> (i32, i32, i32) {
    %c0_i32 = arith.constant 0 : i32
    %c0_i32_0 = arith.constant 0 : i32
    %c0_i32_1 = arith.constant 0 : i32
    return %arg0, %c0_i32, %c0_i32_0 : i32, i32, i32
  }
  func.func @transform_9(%arg0: i32) -> (i32, i32, i32) {
    %c0_i32 = arith.constant 0 : i32
    %c0_i32_0 = arith.constant 0 : i32
    %c0_i32_1 = arith.constant 0 : i32
    return %arg0, %c0_i32, %c0_i32_0 : i32, i32, i32
  }
  func.func @transform_10(%arg0: i32) -> (i32, i32, i32) {
    %c0_i32 = arith.constant 0 : i32
    %c0_i32_0 = arith.constant 0 : i32
    %c0_i32_1 = arith.constant 0 : i32
    return %arg0, %c0_i32, %c0_i32_0 : i32, i32, i32
  }
  func.func @transform_11(%arg0: i32) -> (i32, i32, i32) {
    %c0_i32 = arith.constant 0 : i32
    %c0_i32_0 = arith.constant 0 : i32
    %c0_i32_1 = arith.constant 0 : i32
    return %arg0, %c0_i32, %c0_i32_0 : i32, i32, i32
  }
  func.func @transform_12(%arg0: i32) -> (i32, i32, i32) {
    %c0_i32 = arith.constant 0 : i32
    %c0_i32_0 = arith.constant 0 : i32
    %c0_i32_1 = arith.constant 0 : i32
    return %arg0, %c0_i32, %c0_i32_0 : i32, i32, i32
  }
  func.func @transform_13(%arg0: i32) -> (i32, i32, i32) {
    %c0_i32 = arith.constant 0 : i32
    %c0_i32_0 = arith.constant 0 : i32
    %c0_i32_1 = arith.constant 0 : i32
    return %arg0, %c0_i32, %c0_i32_0 : i32, i32, i32
  }
  func.func @transform_14(%arg0: i32) -> (i32, i32, i32) {
    %c0_i32 = arith.constant 0 : i32
    %c0_i32_0 = arith.constant 0 : i32
    %c0_i32_1 = arith.constant 0 : i32
    return %arg0, %c0_i32, %c0_i32_0 : i32, i32, i32
  }
  func.func @transform_15(%arg0: i32) -> (i32, i32, i32) {
    %c0_i32 = arith.constant 0 : i32
    %c0_i32_0 = arith.constant 0 : i32
    %c0_i32_1 = arith.constant 0 : i32
    return %arg0, %c0_i32, %c0_i32_0 : i32, i32, i32
  }
  func.func @transform_16(%arg0: i32) -> (i32, i32) {
    %c0_i32 = arith.constant 0 : i32
    %c0_i32_0 = arith.constant 0 : i32
    %c0_i32_1 = arith.constant 0 : i32
    return %c0_i32, %c0_i32_0 : i32, i32
  }
}

</mosaic_0001>

<llo_original>
// kernel: bert_class_forward.3
$region0: #{bert_class_forward.3}
  #allocation0 [shape = 'u32[]', space=smem, size = 0x4, offset = 0x4, fixed_abs, tag = 'smem constant byte address 0x4 - core index']
  #allocation1 [shape = 'u32[72,128]{1,0:T(1,128)}', space=vmem, size = 0x9000, scoped, tag = 'internal scratch']
  %s0 = inlined_call_operand.vmem [shape: f32[8,128], index: 0, kind: input, shape index: {}]
  %s1 = inlined_call_operand.hbm [shape: f32[128,128], index: 1, kind: input, shape index: {}]
  %s2 = inlined_call_operand.vmem [shape: f32[1,128], index: 2, kind: input, shape index: {}]
  %s3 = inlined_call_operand.hbm [shape: bf16[128,11264], index: 3, kind: input, shape index: {}]
  %s4 = inlined_call_operand.vmem [shape: f32[1,11264], index: 4, kind: input, shape index: {}]
  %s5 = inlined_call_operand.vmem [shape: f32[8,11264], index: 5, kind: output, shape index: {}]
  %s6 = sld [smem:[#allocation0]]
  $region61: #{bert_class_forward.3} parent=0
    _
  %s8 = ssub.s32 1, %s6
  %s9 = scalar_select 0, %s8, %s6
  $region1: #{bert_class_forward.3} parent=0
    #allocation2 [shape = 'u8[65536]{0}', space=vmem, size = 0x10000, scoped, tag = 'input window, operand 1, single buffered']
    #allocation3 [shape = 's32[2]{0}', space=sflag, size = 0x8, scoped, tag = 'scoped memory for bert_class_forward.3']
    #allocation4 [shape = 'u8[524288]{0}', space=vmem, size = 0x80000, scoped, tag = 'input window, operand 3']
    #allocation5 [shape = 's32[2]{0}', space=sflag, size = 0x8, scoped, tag = 'scoped memory for bert_class_forward.3']
    %10 = vsyncpa [#allocation3], 0
    %11 = vsyncpa [#allocation5], 0
    %s12 = scalar_lea.sflag [#allocation5], 1
    %13 = vsyncpa %s12, 0
    loop: start=0, step=1, limit=13
    $region2: #{bert_class_forward.3} parent=1 // loop_pre_header
      _
    $region3: #{bert_class_forward.3} parent=1 // loop_header
      %s15 = sphi 0, %s19
      %p16 = scmp.ge.s32.totalorder %s15, 13
      %s23 = sphi 0, %s23
      %s25 = sphi 0, %s23
      %s26 = sphi 0, %s25
      %s40 = sphi 0, %s26
      %s44 = sphi 0, %s44
      %s46 = sphi 0, %s44
      %s47 = sphi 0, %s46
      %s61 = sphi 0, %s47
      %s65 = sphi 0, %s65
      %s67 = sphi 0, %s65
      %s68 = sphi 0, %s67
      %s82 = sphi 0, %s68
      %s88 = sphi 0, %s90
      %s91 = sphi 0, %s88
      %s92 = sphi 0, %s91
      %s108 = sphi 0, %s92
      %s114 = sphi 0, %s116
      %s117 = sphi 0, %s114
      %s118 = sphi 0, %s117
      %s134 = sphi 0, %s118
      %s140 = sphi 0, %s142
      %s143 = sphi 0, %s140
      %s144 = sphi 0, %s143
      %s160 = sphi 0, %s144
    $region4: #{bert_class_forward.3} parent=1 // loop_header_branch
      %18 = sbr.rel (%p16) target = $region8
    $region5: #{bert_class_forward.3} parent=1 // loop_body
      %s20 = ssub.s32 %s15, 1
      %s21 = ssub.s32 %s15, 2
      %s22 = sadd.s32 %s15, 1
      %s24 = sadd.s32 %s23, 1
      %p27 = scmp.eq.s32.totalorder %s15, 10
      %p28 = scmp.ne.s32.totalorder %s23, %s25
      %p29 = scmp.eq.s32.totalorder %s15, 0
      %p30 = por %p28, %p29
      %p31 = scmp.ne.s32.totalorder %s23, %s25
      %p32 = scmp.eq.s32.totalorder %s20, 10
      %p33 = por %p31, %p32
      %p34 = scmp.ne.s32.totalorder %s25, %s26
      %p35 = scmp.eq.s32.totalorder %s20, 0
      %p36 = por %p34, %p35
      %p37 = scmp.ne.s32.totalorder %s25, %s26
      %p38 = scmp.eq.s32.totalorder %s21, 10
      %p39 = por %p37, %p38
      %p41 = scmp.ne.s32.totalorder %s26, %s40
      %p42 = scmp.eq.s32.totalorder %s21, 0
      %p43 = por %p41, %p42
      %s45 = sadd.s32 %s44, 1
      %p48 = scmp.eq.s32.totalorder %s15, 10
      %p49 = scmp.ne.s32.totalorder %s44, %s46
      %p50 = scmp.eq.s32.totalorder %s15, 0
      %p51 = por %p49, %p50
      %p52 = scmp.ne.s32.totalorder %s44, %s46
      %p53 = scmp.eq.s32.totalorder %s20, 10
      %p54 = por %p52, %p53
      %p55 = scmp.ne.s32.totalorder %s46, %s47
      %p56 = scmp.eq.s32.totalorder %s20, 0
      %p57 = por %p55, %p56
      %p58 = scmp.ne.s32.totalorder %s46, %s47
      %p59 = scmp.eq.s32.totalorder %s21, 10
      %p60 = por %p58, %p59
      %p62 = scmp.ne.s32.totalorder %s47, %s61
      %p63 = scmp.eq.s32.totalorder %s21, 0
      %p64 = por %p62, %p63
      %s66 = sadd.s32 %s65, 1
      %p69 = scmp.eq.s32.totalorder %s15, 10
      %p70 = scmp.ne.s32.totalorder %s65, %s67
      %p71 = scmp.eq.s32.totalorder %s15, 0
      %p72 = por %p70, %p71
      %p73 = scmp.ne.s32.totalorder %s65, %s67
      %p74 = scmp.eq.s32.totalorder %s20, 10
      %p75 = por %p73, %p74
      %p76 = scmp.ne.s32.totalorder %s67, %s68
      %p77 = scmp.eq.s32.totalorder %s20, 0
      %p78 = por %p76, %p77
      %p79 = scmp.ne.s32.totalorder %s67, %s68
      %p80 = scmp.eq.s32.totalorder %s21, 10
      %p81 = por %p79, %p80
      %p83 = scmp.ne.s32.totalorder %s68, %s82
      %p84 = scmp.eq.s32.totalorder %s21, 0
      %p85 = por %p83, %p84
      %s86 = ssub.s32 %s15, %s22
      %p87 = scmp.eq.s32.totalorder %s86, 0
      %s89 = sadd.s32 %s88, 1
      %s90 = scalar_select %p87, %s88, %s89
      %p93 = pneg %p87
      %p94 = scmp.eq.s32.totalorder %s15, 10
      %p95 = por %p93, %p94
      %p96 = scmp.ne.s32.totalorder %s88, %s91
      %p97 = scmp.eq.s32.totalorder %s15, 0
      %p98 = por %p96, %p97
      %p99 = scmp.ne.s32.totalorder %s88, %s91
      %p100 = scmp.eq.s32.totalorder %s20, 10
      %p101 = por %p99, %p100
      %p102 = scmp.ne.s32.totalorder %s91, %s92
      %p103 = scmp.eq.s32.totalorder %s20, 0
      %p104 = por %p102, %p103
      %p105 = scmp.ne.s32.totalorder %s91, %s92
      %p106 = scmp.eq.s32.totalorder %s21, 10
      %p107 = por %p105, %p106
      %p109 = scmp.ne.s32.totalorder %s92, %s108
      %p110 = scmp.eq.s32.totalorder %s21, 0
      %p111 = por %p109, %p110
      %s112 = ssub.s32 %s15, %s22
      %p113 = scmp.eq.s32.totalorder %s112, 0
      %s115 = sadd.s32 %s114, 1
      %s116 = scalar_select %p113, %s114, %s115
      %p119 = pneg %p113
      %p120 = scmp.eq.s32.totalorder %s15, 10
      %p121 = por %p119, %p120
      %p122 = scmp.ne.s32.totalorder %s114, %s117
      %p123 = scmp.eq.s32.totalorder %s15, 0
      %p124 = por %p122, %p123
      %p125 = scmp.ne.s32.totalorder %s114, %s117
      %p126 = scmp.eq.s32.totalorder %s20, 10
      %p127 = por %p125, %p126
      %p128 = scmp.ne.s32.totalorder %s117, %s118
      %p129 = scmp.eq.s32.totalorder %s20, 0
      %p130 = por %p128, %p129
      %p131 = scmp.ne.s32.totalorder %s117, %s118
      %p132 = scmp.eq.s32.totalorder %s21, 10
      %p133 = por %p131, %p132
      %p135 = scmp.ne.s32.totalorder %s118, %s134
      %p136 = scmp.eq.s32.totalorder %s21, 0
      %p137 = por %p135, %p136
      %s138 = ssub.s32 %s15, %s22
      %p139 = scmp.eq.s32.totalorder %s138, 0
      %s141 = sadd.s32 %s140, 1
      %s142 = scalar_select %p139, %s140, %s141
      %p145 = pneg %p139
      %p146 = scmp.eq.s32.totalorder %s15, 10
      %p147 = por %p145, %p146
      %p148 = scmp.ne.s32.totalorder %s140, %s143
      %p149 = scmp.eq.s32.totalorder %s15, 0
      %p150 = por %p148, %p149
      %p151 = scmp.ne.s32.totalorder %s140, %s143
      %p152 = scmp.eq.s32.totalorder %s20, 10
      %p153 = por %p151, %p152
      %p154 = scmp.ne.s32.totalorder %s143, %s144
      %p155 = scmp.eq.s32.totalorder %s20, 0
      %p156 = por %p154, %p155
      %p157 = scmp.ne.s32.totalorder %s143, %s144
      %p158 = scmp.eq.s32.totalorder %s21, 10
      %p159 = por %p157, %p158
      %p161 = scmp.ne.s32.totalorder %s144, %s160
      %p162 = scmp.eq.s32.totalorder %s21, 0
      %p163 = por %p161, %p162
      %p164 = scmp.le.s32.totalorder 1, %s15
      %p165 = scmp.lt.s32.totalorder %s15, 12
      %p166 = pnand %p164, %p165
      %p167 = pneg %p166
      // Predicated region
      $region9: #{bert_class_forward.3} parent=5 // pred_check
        _
      $region10: #{bert_class_forward.3} parent=5 // pred_check_branch
        %169 = sbr.rel (%p166) target = $region12
      $region11: #{bert_class_forward.3} parent=5 // pred_region
        %s170 = ssub.s32 %s15, 1
        // Predicated region
        $region13: #{bert_class_forward.3} parent=11 // pred_check
          %p171 = pneg %p36
        $region14: #{bert_class_forward.3} parent=11 // pred_check_branch
          %173 = sbr.rel (%p171) target = $region16
        $region15: #{bert_class_forward.3} parent=11 // pred_region
          _
        $region16: #{bert_class_forward.3} parent=11 // pred_fallthru
          _
        // Predicated region
        $region17: #{bert_class_forward.3} parent=11 // pred_check
          %p174 = pneg %p57
        $region18: #{bert_class_forward.3} parent=11 // pred_check_branch
          %176 = sbr.rel (%p174) target = $region20
        $region19: #{bert_class_forward.3} parent=11 // pred_region
          %178 = vsyncadd [#allocation3], 0
          %s179 = sshll.u32 %s1, 4
          %s180 = int_to_ptr.hbm [resolvable:$true] %s179
          %s181 = sshll.u32 [#allocation2], 4
          %s182 = int_to_ptr.vmem [resolvable:$true] %s181
          %187 = dma.hbm_to_vmem [thread:$0]  %s180, 2048, %s182, [#allocation3], 128, 128, 8
        $region20: #{bert_class_forward.3} parent=11 // pred_fallthru
          _
        // Predicated region
        $region21: #{bert_class_forward.3} parent=11 // pred_check
          %p188 = pneg %p78
        $region22: #{bert_class_forward.3} parent=11 // pred_check_branch
          %190 = sbr.rel (%p188) target = $region24
        $region23: #{bert_class_forward.3} parent=11 // pred_region
          _
        $region24: #{bert_class_forward.3} parent=11 // pred_fallthru
          _
      $region12: #{bert_class_forward.3} parent=5 // pred_fallthru
        _
      %p191 = scmp.lt.s32.totalorder %s15, 11
      // Predicated region
      $region25: #{bert_class_forward.3} parent=5 // pred_check
        %p192 = pneg %p191
      $region26: #{bert_class_forward.3} parent=5 // pred_check_branch
        %194 = sbr.rel (%p192) target = $region28
      $region27: #{bert_class_forward.3} parent=5 // pred_region
        // Predicated region
        $region29: #{bert_class_forward.3} parent=27 // pred_check
          %p195 = pneg %p98
        $region30: #{bert_class_forward.3} parent=27 // pred_check_branch
          %197 = sbr.rel (%p195) target = $region32
        $region31: #{bert_class_forward.3} parent=27 // pred_region
          %s198 = sand.u32 %s88, 1
          %s199 = scalar_lea.sflag [#allocation5], %s198
          %s200 = sand.u32 %s88, 1
          %s201 = smul.addr %s200, 512
          %s202 = scalar_lea.vmem [#allocation4], %s201
          %s203 = smul.u32 8, %s15
          %205 = vsyncadd %s199, 0
          %s206 = smul.addr %s203, 4
          %s207 = scalar_lea.hbm %s3, %s206
          %s208 = sshll.u32 %s207, 4
          %s209 = int_to_ptr.hbm [resolvable:$true] %s208
          %s210 = sshll.u32 %s202, 4
          %s211 = int_to_ptr.vmem [resolvable:$true] %s210
          %216 = dma.hbm_to_vmem [thread:$0]  %s209, 8192, %s211, %s199, 5632, 512, 32
        $region32: #{bert_class_forward.3} parent=27 // pred_fallthru
          _
        // Predicated region
        $region33: #{bert_class_forward.3} parent=27 // pred_check
          %p217 = pneg %p124
        $region34: #{bert_class_forward.3} parent=27 // pred_check_branch
          %219 = sbr.rel (%p217) target = $region36
        $region35: #{bert_class_forward.3} parent=27 // pred_region
          %s220 = smul.u32 8, %s15
          %p221 = scmp.lt.s32.totalorder %s220, 87
          %s222 = scalar_select %p221, %s220, 87
          %s223 = scalar_lea.vmem %s4, %s222
          %s224 = smul.u32 8, %s15
        $region36: #{bert_class_forward.3} parent=27 // pred_fallthru
          _
      $region28: #{bert_class_forward.3} parent=5 // pred_fallthru
        _
      %p225 = scmp.le.s32.totalorder 1, %s15
      %p226 = scmp.lt.s32.totalorder %s15, 12
      %p227 = pnand %p225, %p226
      %p228 = pneg %p227
      // Predicated region
      $region37: #{bert_class_forward.3} parent=5 // pred_check
        _
      $region38: #{bert_class_forward.3} parent=5 // pred_check_branch
        %230 = sbr.rel (%p227) target = $region40
      $region39: #{bert_class_forward.3} parent=5 // pred_region
        %s231 = ssub.s32 %s15, 1
        // Predicated region
        $region41: #{bert_class_forward.3} parent=39 // pred_check
          %p232 = pneg %p57
        $region42: #{bert_class_forward.3} parent=39 // pred_check_branch
          %234 = sbr.rel (%p232) target = $region44
        $region43: #{bert_class_forward.3} parent=39 // pred_region
          %236 = dma.done [#allocation3], 2048
        $region44: #{bert_class_forward.3} parent=39 // pred_fallthru
          _
        %s237 = sand.u32 %s91, 1
        %s238 = scalar_lea.sflag [#allocation5], %s237
        %s239 = sand.u32 %s91, 1
        %s240 = smul.addr %s239, 512
        %s241 = scalar_lea.vmem [#allocation4], %s240
        // Predicated region
        $region45: #{bert_class_forward.3} parent=39 // pred_check
          %p242 = pneg %p104
        $region46: #{bert_class_forward.3} parent=39 // pred_check_branch
          %244 = sbr.rel (%p242) target = $region48
        $region47: #{bert_class_forward.3} parent=39 // pred_region
          %246 = dma.done %s238, 8192
        $region48: #{bert_class_forward.3} parent=39 // pred_fallthru
          _
        %p247 = pneg %p36
        %p248 = pneg %p33
        %p249 = pneg %p57
        %p250 = pneg %p54
        %p251 = pneg %p78
        %p252 = pneg %p75
        %s253 = sand.u32 %s91, 1
        %s254 = scalar_lea.sflag [#allocation5], %s253
        %s255 = sand.u32 %s91, 1
        %s256 = smul.addr %s255, 512
        %s257 = scalar_lea.vmem [#allocation4], %s256
        %p258 = pneg %p104
        %p259 = pneg %p101
        %s260 = smul.u32 8, %s20
        %p261 = scmp.lt.s32.totalorder %s260, 87
        %s262 = scalar_select %p261, %s260, 87
        %s263 = scalar_lea.vmem %s4, %s262
        %p264 = pneg %p130
        %p265 = pneg %p127
        %p266 = pneg %p156
        %p267 = pneg %p153
        %s268 = smul.u32 8, %s20
        %p269 = scmp.lt.s32.totalorder %s268, 87
        %s270 = scalar_select %p269, %s268, 87
        %s271 = smul.addr %s270, 8
        %s272 = scalar_lea.vmem %s5, %s271
        %s273 = smul.u32 8, %s20
        %s274 = smul.u32 8, %s20
        %p275 = scmp.lt.s32.totalorder %s274, 87
        %s276 = scalar_select %p275, %s274, 87
        %s277 = scalar_lea.vmem %s4, %s276
        %s278 = smul.u32 8, %s20
        %s279 = smul.u32 8, %s20
        %p280 = scmp.lt.s32.totalorder %s279, 87
        %s281 = scalar_select %p280, %s279, 87
        %s282 = smul.addr %s281, 8
        %s283 = scalar_lea.vmem %s5, %s282
        %s284 = smul.u32 8, %s20
        %v285 = vld [vmem:[%s0] sm:$0xff]
        %v286 = vld [vmem:[#allocation2] sm:$0xff]
        %v287 = vld [vmem:[#allocation2 + $0x8] sm:$0xff]
        %v288 = vld [vmem:[#allocation2 + $0x10] sm:$0xff]
        %v289 = vld [vmem:[#allocation2 + $0x18] sm:$0xff]
        %v290 = vld [vmem:[#allocation2 + $0x20] sm:$0xff]
        %v291 = vld [vmem:[#allocation2 + $0x28] sm:$0xff]
        %v292 = vld [vmem:[#allocation2 + $0x30] sm:$0xff]
        %v293 = vld [vmem:[#allocation2 + $0x38] sm:$0xff]
        %v294 = vld [vmem:[#allocation2 + $0x40] sm:$0xff]
        %v295 = vld [vmem:[#allocation2 + $0x48] sm:$0xff]
        %v296 = vld [vmem:[#allocation2 + $0x50] sm:$0xff]
        %v297 = vld [vmem:[#allocation2 + $0x58] sm:$0xff]
        %v298 = vld [vmem:[#allocation2 + $0x60] sm:$0xff]
        %v299 = vld [vmem:[#allocation2 + $0x68] sm:$0xff]
        %v300 = vld [vmem:[#allocation2 + $0x70] sm:$0xff]
        %v301 = vld [vmem:[#allocation2 + $0x78] sm:$0xff]
        %v302 = vld [vmem:[%s2] sm:$0x1]
        %v304 = vperm.slane %v302, 0
        %306 = vmatpush.msra.mxu0 %v301
        %307 = vmatpush.msra.mxu0 %v300
        %308 = vmatpush.msra.mxu0 %v299
        %309 = vmatpush.msra.mxu0 %v298
        %310 = vmatpush.msra.mxu0 %v297
        %311 = vmatpush.msra.mxu0 %v296
        %312 = vmatpush.msra.mxu0 %v295
        %313 = vmatpush.msra.mxu0 %v294
        %314 = vmatpush.msra.mxu0 %v293
        %315 = vmatpush.msra.mxu0 %v292
        %316 = vmatpush.msra.mxu0 %v291
        %317 = vmatpush.msra.mxu0 %v290
        %318 = vmatpush.msra.mxu0 %v289
        %319 = vmatpush.msra.mxu0 %v288
        %320 = vmatpush.msra.mxu0 %v287
        %321 = vmatpush.msra.mxu0 %v286
        %322 = vmatmul.f32.gmra.mxu0 %v285
        %v323 = vpop.f32.mrf.mxu0
        %v324 = vadd.f32 %v304, %v323
        %325 = vdwg.mxu0
        %v326 = vtanh.pop %v324
        %v327 = vpack.c.bf16 %v326, %v326
        %v328 = vld [vmem:[%s241] sm:$0xff]
        %v329 = vld [vmem:[%s241 + $0x8] sm:$0xff]
        %v330 = vld [vmem:[%s241 + $0x10] sm:$0xff]
        %v331 = vld [vmem:[%s241 + $0x18] sm:$0xff]
        %v332 = vld [vmem:[%s241 + $0x20] sm:$0xff]
        %v333 = vld [vmem:[%s241 + $0x28] sm:$0xff]
        %v334 = vld [vmem:[%s241 + $0x30] sm:$0xff]
        %v335 = vld [vmem:[%s241 + $0x38] sm:$0xff]
        %v336 = vld [vmem:[%s241 + $0x40] sm:$0xff]
        %v337 = vld [vmem:[%s241 + $0x48] sm:$0xff]
        %v338 = vld [vmem:[%s241 + $0x50] sm:$0xff]
        %v339 = vld [vmem:[%s241 + $0x58] sm:$0xff]
        %v340 = vld [vmem:[%s241 + $0x60] sm:$0xff]
        %v341 = vld [vmem:[%s241 + $0x68] sm:$0xff]
        %v342 = vld [vmem:[%s241 + $0x70] sm:$0xff]
        %v343 = vld [vmem:[%s241 + $0x78] sm:$0xff]
        %v344 = vld [vmem:[%s241 + $0x80] sm:$0xff]
        %v345 = vld [vmem:[%s241 + $0x88] sm:$0xff]
        %v346 = vld [vmem:[%s241 + $0x90] sm:$0xff]
        %v347 = vld [vmem:[%s241 + $0x98] sm:$0xff]
        %v348 = vld [vmem:[%s241 + $0xa0] sm:$0xff]
        %v349 = vld [vmem:[%s241 + $0xa8] sm:$0xff]
        %v350 = vld [vmem:[%s241 + $0xb0] sm:$0xff]
        %v351 = vld [vmem:[%s241 + $0xb8] sm:$0xff]
        %v352 = vld [vmem:[%s241 + $0xc0] sm:$0xff]
        %v353 = vld [vmem:[%s241 + $0xc8] sm:$0xff]
        %v354 = vld [vmem:[%s241 + $0xd0] sm:$0xff]
        %v355 = vld [vmem:[%s241 + $0xd8] sm:$0xff]
        %v356 = vld [vmem:[%s241 + $0xe0] sm:$0xff]
        %v357 = vld [vmem:[%s241 + $0xe8] sm:$0xff]
        %v358 = vld [vmem:[%s241 + $0xf0] sm:$0xff]
        %v359 = vld [vmem:[%s241 + $0xf8] sm:$0xff]
        %v360 = vld [vmem:[%s241 + $0x100] sm:$0xff]
        %v361 = vld [vmem:[%s241 + $0x108] sm:$0xff]
        %v362 = vld [vmem:[%s241 + $0x110] sm:$0xff]
        %v363 = vld [vmem:[%s241 + $0x118] sm:$0xff]
        %v364 = vld [vmem:[%s241 + $0x120] sm:$0xff]
        %v365 = vld [vmem:[%s241 + $0x128] sm:$0xff]
        %v366 = vld [vmem:[%s241 + $0x130] sm:$0xff]
        %v367 = vld [vmem:[%s241 + $0x138] sm:$0xff]
        %v368 = vld [vmem:[%s241 + $0x140] sm:$0xff]
        %v369 = vld [vmem:[%s241 + $0x148] sm:$0xff]
        %v370 = vld [vmem:[%s241 + $0x150] sm:$0xff]
        %v371 = vld [vmem:[%s241 + $0x158] sm:$0xff]
        %v372 = vld [vmem:[%s241 + $0x160] sm:$0xff]
        %v373 = vld [vmem:[%s241 + $0x168] sm:$0xff]
        %v374 = vld [vmem:[%s241 + $0x170] sm:$0xff]
        %v375 = vld [vmem:[%s241 + $0x178] sm:$0xff]
        %v376 = vld [vmem:[%s241 + $0x180] sm:$0xff]
        %v377 = vld [vmem:[%s241 + $0x188] sm:$0xff]
        %v378 = vld [vmem:[%s241 + $0x190] sm:$0xff]
        %v379 = vld [vmem:[%s241 + $0x198] sm:$0xff]
        %v380 = vld [vmem:[%s241 + $0x1a0] sm:$0xff]
        %v381 = vld [vmem:[%s241 + $0x1a8] sm:$0xff]
        %v382 = vld [vmem:[%s241 + $0x1b0] sm:$0xff]
        %v383 = vld [vmem:[%s241 + $0x1b8] sm:$0xff]
        %v384 = vld [vmem:[%s241 + $0x1c0] sm:$0xff]
        %v385 = vld [vmem:[%s241 + $0x1c8] sm:$0xff]
        %v386 = vld [vmem:[%s241 + $0x1d0] sm:$0xff]
        %v387 = vld [vmem:[%s241 + $0x1d8] sm:$0xff]
        %v388 = vld [vmem:[%s241 + $0x1e0] sm:$0xff]
        %v389 = vld [vmem:[%s241 + $0x1e8] sm:$0xff]
        %v390 = vld [vmem:[%s241 + $0x1f0] sm:$0xff]
        %v391 = vld [vmem:[%s241 + $0x1f8] sm:$0xff]
        %v392 = vld [vmem:[%s277] sm:$0xff]
        %v394 = vperm.slane %v392, 0
        %v395 = vperm.slane %v392, 1
        %v396 = vperm.slane %v392, 2
        %v397 = vperm.slane %v392, 3
        %v398 = vperm.slane %v392, 4
        %v399 = vperm.slane %v392, 5
        %v400 = vperm.slane %v392, 6
        %v401 = vperm.slane %v392, 7
        %v474 = vunpack.c.l.b16 %v328
        %v475 = vunpack.c.h.b16 %v328
        %v476 = vunpack.c.l.b16 %v329
        %v477 = vunpack.c.h.b16 %v329
        %v478 = vunpack.c.l.b16 %v330
        %v479 = vunpack.c.h.b16 %v330
        %v480 = vunpack.c.l.b16 %v331
        %v481 = vunpack.c.h.b16 %v331
        %v482 = vunpack.c.l.b16 %v332
        %v483 = vunpack.c.h.b16 %v332
        %v484 = vunpack.c.l.b16 %v333
        %v485 = vunpack.c.h.b16 %v333
        %v486 = vunpack.c.l.b16 %v334
        %v487 = vunpack.c.h.b16 %v334
        %v488 = vunpack.c.l.b16 %v335
        %v489 = vunpack.c.h.b16 %v335
        %v490 = vunpack.c.l.b16 %v336
        %v491 = vunpack.c.h.b16 %v336
        %v492 = vunpack.c.l.b16 %v337
        %v493 = vunpack.c.h.b16 %v337
        %v494 = vunpack.c.l.b16 %v338
        %v495 = vunpack.c.h.b16 %v338
        %v496 = vunpack.c.l.b16 %v339
        %v497 = vunpack.c.h.b16 %v339
        %v498 = vunpack.c.l.b16 %v340
        %v499 = vunpack.c.h.b16 %v340
        %v500 = vunpack.c.l.b16 %v341
        %v501 = vunpack.c.h.b16 %v341
        %v502 = vunpack.c.l.b16 %v342
        %v503 = vunpack.c.h.b16 %v342
        %v504 = vunpack.c.l.b16 %v343
        %v505 = vunpack.c.h.b16 %v343
        %v506 = vunpack.c.l.b16 %v344
        %v507 = vunpack.c.h.b16 %v344
        %v508 = vunpack.c.l.b16 %v345
        %v509 = vunpack.c.h.b16 %v345
        %v510 = vunpack.c.l.b16 %v346
        %v511 = vunpack.c.h.b16 %v346
        %v512 = vunpack.c.l.b16 %v347
        %v513 = vunpack.c.h.b16 %v347
        %v514 = vunpack.c.l.b16 %v348
        %v515 = vunpack.c.h.b16 %v348
        %v516 = vunpack.c.l.b16 %v349
        %v517 = vunpack.c.h.b16 %v349
        %v518 = vunpack.c.l.b16 %v350
        %v519 = vunpack.c.h.b16 %v350
        %v520 = vunpack.c.l.b16 %v351
        %v521 = vunpack.c.h.b16 %v351
        %v522 = vunpack.c.l.b16 %v352
        %v523 = vunpack.c.h.b16 %v352
        %v524 = vunpack.c.l.b16 %v353
        %v525 = vunpack.c.h.b16 %v353
        %v526 = vunpack.c.l.b16 %v354
        %v527 = vunpack.c.h.b16 %v354
        %v528 = vunpack.c.l.b16 %v355
        %v529 = vunpack.c.h.b16 %v355
        %v530 = vunpack.c.l.b16 %v356
        %v531 = vunpack.c.h.b16 %v356
        %v532 = vunpack.c.l.b16 %v357
        %v533 = vunpack.c.h.b16 %v357
        %v534 = vunpack.c.l.b16 %v358
        %v535 = vunpack.c.h.b16 %v358
        %v536 = vunpack.c.l.b16 %v359
        %v537 = vunpack.c.h.b16 %v359
        %v538 = vunpack.c.l.b16 %v360
        %v539 = vunpack.c.h.b16 %v360
        %v540 = vunpack.c.l.b16 %v361
        %v541 = vunpack.c.h.b16 %v361
        %v542 = vunpack.c.l.b16 %v362
        %v543 = vunpack.c.h.b16 %v362
        %v544 = vunpack.c.l.b16 %v363
        %v545 = vunpack.c.h.b16 %v363
        %v546 = vunpack.c.l.b16 %v364
        %v547 = vunpack.c.h.b16 %v364
        %v548 = vunpack.c.l.b16 %v365
        %v549 = vunpack.c.h.b16 %v365
        %v550 = vunpack.c.l.b16 %v366
        %v551 = vunpack.c.h.b16 %v366
        %v552 = vunpack.c.l.b16 %v367
        %v553 = vunpack.c.h.b16 %v367
        %v554 = vunpack.c.l.b16 %v368
        %v555 = vunpack.c.h.b16 %v368
        %v556 = vunpack.c.l.b16 %v369
        %v557 = vunpack.c.h.b16 %v369
        %v558 = vunpack.c.l.b16 %v370
        %v559 = vunpack.c.h.b16 %v370
        %v560 = vunpack.c.l.b16 %v371
        %v561 = vunpack.c.h.b16 %v371
        %v562 = vunpack.c.l.b16 %v372
        %v563 = vunpack.c.h.b16 %v372
        %v564 = vunpack.c.l.b16 %v373
        %v565 = vunpack.c.h.b16 %v373
        %v566 = vunpack.c.l.b16 %v374
        %v567 = vunpack.c.h.b16 %v374
        %v568 = vunpack.c.l.b16 %v375
        %v569 = vunpack.c.h.b16 %v375
        %v570 = vunpack.c.l.b16 %v376
        %v571 = vunpack.c.h.b16 %v376
        %v572 = vunpack.c.l.b16 %v377
        %v573 = vunpack.c.h.b16 %v377
        %v574 = vunpack.c.l.b16 %v378
        %v575 = vunpack.c.h.b16 %v378
        %v576 = vunpack.c.l.b16 %v379
        %v577 = vunpack.c.h.b16 %v379
        %v578 = vunpack.c.l.b16 %v380
        %v579 = vunpack.c.h.b16 %v380
        %v580 = vunpack.c.l.b16 %v381
        %v581 = vunpack.c.h.b16 %v381
        %v582 = vunpack.c.l.b16 %v382
        %v583 = vunpack.c.h.b16 %v382
        %v584 = vunpack.c.l.b16 %v383
        %v585 = vunpack.c.h.b16 %v383
        %v586 = vunpack.c.l.b16 %v384
        %v587 = vunpack.c.h.b16 %v384
        %v588 = vunpack.c.l.b16 %v385
        %v589 = vunpack.c.h.b16 %v385
        %v590 = vunpack.c.l.b16 %v386
        %v591 = vunpack.c.h.b16 %v386
        %v592 = vunpack.c.l.b16 %v387
        %v593 = vunpack.c.h.b16 %v387
        %v594 = vunpack.c.l.b16 %v388
        %v595 = vunpack.c.h.b16 %v388
        %v596 = vunpack.c.l.b16 %v389
        %v597 = vunpack.c.h.b16 %v389
        %v598 = vunpack.c.l.b16 %v390
        %v599 = vunpack.c.h.b16 %v390
        %v600 = vunpack.c.l.b16 %v391
        %v601 = vunpack.c.h.b16 %v391
        %v602 = vpack.c.b16 %v482, %v474
        %v603 = vpack.c.b16 %v483, %v475
        %v604 = vpack.c.b16 %v484, %v476
        %v605 = vpack.c.b16 %v485, %v477
        %v606 = vpack.c.b16 %v486, %v478
        %v607 = vpack.c.b16 %v487, %v479
        %v608 = vpack.c.b16 %v488, %v480
        %v609 = vpack.c.b16 %v489, %v481
        %v610 = vpack.c.b16 %v498, %v490
        %v611 = vpack.c.b16 %v499, %v491
        %v612 = vpack.c.b16 %v500, %v492
        %v613 = vpack.c.b16 %v501, %v493
        %v614 = vpack.c.b16 %v502, %v494
        %v615 = vpack.c.b16 %v503, %v495
        %v616 = vpack.c.b16 %v504, %v496
        %v617 = vpack.c.b16 %v505, %v497
        %v618 = vpack.c.b16 %v514, %v506
        %v619 = vpack.c.b16 %v515, %v507
        %v620 = vpack.c.b16 %v516, %v508
        %v621 = vpack.c.b16 %v517, %v509
        %v622 = vpack.c.b16 %v518, %v510
        %v623 = vpack.c.b16 %v519, %v511
        %v624 = vpack.c.b16 %v520, %v512
        %v625 = vpack.c.b16 %v521, %v513
        %v626 = vpack.c.b16 %v530, %v522
        %v627 = vpack.c.b16 %v531, %v523
        %v628 = vpack.c.b16 %v532, %v524
        %v629 = vpack.c.b16 %v533, %v525
        %v630 = vpack.c.b16 %v534, %v526
        %v631 = vpack.c.b16 %v535, %v527
        %v632 = vpack.c.b16 %v536, %v528
        %v633 = vpack.c.b16 %v537, %v529
        %v634 = vpack.c.b16 %v546, %v538
        %v635 = vpack.c.b16 %v547, %v539
        %v636 = vpack.c.b16 %v548, %v540
        %v637 = vpack.c.b16 %v549, %v541
        %v638 = vpack.c.b16 %v550, %v542
        %v639 = vpack.c.b16 %v551, %v543
        %v640 = vpack.c.b16 %v552, %v544
        %v641 = vpack.c.b16 %v553, %v545
        %v642 = vpack.c.b16 %v562, %v554
        %v643 = vpack.c.b16 %v563, %v555
        %v644 = vpack.c.b16 %v564, %v556
        %v645 = vpack.c.b16 %v565, %v557
        %v646 = vpack.c.b16 %v566, %v558
        %v647 = vpack.c.b16 %v567, %v559
        %v648 = vpack.c.b16 %v568, %v560
        %v649 = vpack.c.b16 %v569, %v561
        %v650 = vpack.c.b16 %v578, %v570
        %v651 = vpack.c.b16 %v579, %v571
        %v652 = vpack.c.b16 %v580, %v572
        %v653 = vpack.c.b16 %v581, %v573
        %v654 = vpack.c.b16 %v582, %v574
        %v655 = vpack.c.b16 %v583, %v575
        %v656 = vpack.c.b16 %v584, %v576
        %v657 = vpack.c.b16 %v585, %v577
        %v658 = vpack.c.b16 %v594, %v586
        %v659 = vpack.c.b16 %v595, %v587
        %v660 = vpack.c.b16 %v596, %v588
        %v661 = vpack.c.b16 %v597, %v589
        %v662 = vpack.c.b16 %v598, %v590
        %v663 = vpack.c.b16 %v599, %v591
        %v664 = vpack.c.b16 %v600, %v592
        %v665 = vpack.c.b16 %v601, %v593
        %730 = vmatpush.bf16.msra.mxu0 %v658
        %731 = vmatpush.bf16.msra.mxu0 %v650
        %732 = vmatpush.bf16.msra.mxu0 %v642
        %733 = vmatpush.bf16.msra.mxu0 %v634
        %734 = vmatpush.bf16.msra.mxu0 %v626
        %735 = vmatpush.bf16.msra.mxu0 %v618
        %736 = vmatpush.bf16.msra.mxu0 %v610
        %737 = vmatpush.bf16.msra.mxu0 %v602
        %738 = vmatmul.bf16.gmra.mxu0 %v327
        %v739 = vpop.f32.mrf.mxu0
        %v740 = vadd.f32 %v394, %v739
        %v741 = vpop.f32.mrf.mxu0
        %742 = vdwg.mxu0
        %743 = vmatpush.bf16.msra.mxu0 %v659
        %744 = vmatpush.bf16.msra.mxu0 %v651
        %745 = vmatpush.bf16.msra.mxu0 %v643
        %746 = vmatpush.bf16.msra.mxu0 %v635
        %747 = vmatpush.bf16.msra.mxu0 %v627
        %748 = vmatpush.bf16.msra.mxu0 %v619
        %749 = vmatpush.bf16.msra.mxu0 %v611
        %750 = vmatpush.bf16.msra.mxu0 %v603
        %751 = vmatmul.bf16.gmra.mxu0 %v327
        %v752 = vpop.f32.mrf.mxu0
        %v753 = vadd.f32 %v395, %v752
        %v754 = vpop.f32.mrf.mxu0
        %755 = vdwg.mxu0
        %756 = vmatpush.bf16.msra.mxu0 %v660
        %757 = vmatpush.bf16.msra.mxu0 %v652
        %758 = vmatpush.bf16.msra.mxu0 %v644
        %759 = vmatpush.bf16.msra.mxu0 %v636
        %760 = vmatpush.bf16.msra.mxu0 %v628
        %761 = vmatpush.bf16.msra.mxu0 %v620
        %762 = vmatpush.bf16.msra.mxu0 %v612
        %763 = vmatpush.bf16.msra.mxu0 %v604
        %764 = vmatmul.bf16.gmra.mxu0 %v327
        %v765 = vpop.f32.mrf.mxu0
        %v766 = vadd.f32 %v396, %v765
        %v767 = vpop.f32.mrf.mxu0
        %768 = vdwg.mxu0
        %769 = vmatpush.bf16.msra.mxu0 %v661
        %770 = vmatpush.bf16.msra.mxu0 %v653
        %771 = vmatpush.bf16.msra.mxu0 %v645
        %772 = vmatpush.bf16.msra.mxu0 %v637
        %773 = vmatpush.bf16.msra.mxu0 %v629
        %774 = vmatpush.bf16.msra.mxu0 %v621
        %775 = vmatpush.bf16.msra.mxu0 %v613
        %776 = vmatpush.bf16.msra.mxu0 %v605
        %777 = vmatmul.bf16.gmra.mxu0 %v327
        %v778 = vpop.f32.mrf.mxu0
        %v779 = vadd.f32 %v397, %v778
        %v780 = vpop.f32.mrf.mxu0
        %781 = vdwg.mxu0
        %782 = vmatpush.bf16.msra.mxu0 %v662
        %783 = vmatpush.bf16.msra.mxu0 %v654
        %784 = vmatpush.bf16.msra.mxu0 %v646
        %785 = vmatpush.bf16.msra.mxu0 %v638
        %786 = vmatpush.bf16.msra.mxu0 %v630
        %787 = vmatpush.bf16.msra.mxu0 %v622
        %788 = vmatpush.bf16.msra.mxu0 %v614
        %789 = vmatpush.bf16.msra.mxu0 %v606
        %790 = vmatmul.bf16.gmra.mxu0 %v327
        %v791 = vpop.f32.mrf.mxu0
        %v792 = vadd.f32 %v398, %v791
        %v793 = vpop.f32.mrf.mxu0
        %794 = vdwg.mxu0
        %795 = vmatpush.bf16.msra.mxu0 %v663
        %796 = vmatpush.bf16.msra.mxu0 %v655
        %797 = vmatpush.bf16.msra.mxu0 %v647
        %798 = vmatpush.bf16.msra.mxu0 %v639
        %799 = vmatpush.bf16.msra.mxu0 %v631
        %800 = vmatpush.bf16.msra.mxu0 %v623
        %801 = vmatpush.bf16.msra.mxu0 %v615
        %802 = vmatpush.bf16.msra.mxu0 %v607
        %803 = vmatmul.bf16.gmra.mxu0 %v327
        %v804 = vpop.f32.mrf.mxu0
        %v805 = vadd.f32 %v399, %v804
        %v806 = vpop.f32.mrf.mxu0
        %807 = vdwg.mxu0
        %808 = vmatpush.bf16.msra.mxu0 %v664
        %809 = vmatpush.bf16.msra.mxu0 %v656
        %810 = vmatpush.bf16.msra.mxu0 %v648
        %811 = vmatpush.bf16.msra.mxu0 %v640
        %812 = vmatpush.bf16.msra.mxu0 %v632
        %813 = vmatpush.bf16.msra.mxu0 %v624
        %814 = vmatpush.bf16.msra.mxu0 %v616
        %815 = vmatpush.bf16.msra.mxu0 %v608
        %816 = vmatmul.bf16.gmra.mxu0 %v327
        %v817 = vpop.f32.mrf.mxu0
        %v818 = vadd.f32 %v400, %v817
        %v819 = vpop.f32.mrf.mxu0
        %820 = vdwg.mxu0
        %821 = vmatpush.bf16.msra.mxu0 %v665
        %822 = vmatpush.bf16.msra.mxu0 %v657
        %823 = vmatpush.bf16.msra.mxu0 %v649
        %824 = vmatpush.bf16.msra.mxu0 %v641
        %825 = vmatpush.bf16.msra.mxu0 %v633
        %826 = vmatpush.bf16.msra.mxu0 %v625
        %827 = vmatpush.bf16.msra.mxu0 %v617
        %828 = vmatpush.bf16.msra.mxu0 %v609
        %829 = vmatmul.bf16.gmra.mxu0 %v327
        %v830 = vpop.f32.mrf.mxu0
        %v831 = vadd.f32 %v401, %v830
        %v832 = vpop.f32.mrf.mxu0
        %833 = vdwg.mxu0
        %834 = vst [vmem:[%s283] sm:$0xff] %v740
        %835 = vst [vmem:[%s283 + $0x8] sm:$0xff] %v753
        %836 = vst [vmem:[%s283 + $0x10] sm:$0xff] %v766
        %837 = vst [vmem:[%s283 + $0x18] sm:$0xff] %v779
        %838 = vst [vmem:[%s283 + $0x20] sm:$0xff] %v792
        %839 = vst [vmem:[%s283 + $0x28] sm:$0xff] %v805
        %840 = vst [vmem:[%s283 + $0x30] sm:$0xff] %v818
        %841 = vst [vmem:[%s283 + $0x38] sm:$0xff] %v831
        %s842 = smul.u32 8, %s20
        %p843 = scmp.lt.s32.totalorder %s842, 87
        %s844 = scalar_select %p843, %s842, 87
        %s845 = smul.addr %s844, 8
        %s846 = scalar_lea.vmem %s5, %s845
        // Predicated region
        $region49: #{bert_class_forward.3} parent=39 // pred_check
          %p847 = pneg %p153
        $region50: #{bert_class_forward.3} parent=39 // pred_check_branch
          %849 = sbr.rel (%p847) target = $region52
        $region51: #{bert_class_forward.3} parent=39 // pred_region
          %s850 = smul.u32 8, %s20
        $region52: #{bert_class_forward.3} parent=39 // pred_fallthru
          _
      $region40: #{bert_class_forward.3} parent=5 // pred_fallthru
        _
      %p851 = scmp.le.s32.totalorder 2, %s15
      // Predicated region
      $region53: #{bert_class_forward.3} parent=5 // pred_check
        %p852 = pneg %p851
      $region54: #{bert_class_forward.3} parent=5 // pred_check_branch
        %854 = sbr.rel (%p852) target = $region56
      $region55: #{bert_class_forward.3} parent=5 // pred_region
        %s855 = ssub.s32 %s15, 2
        // Predicated region
        $region57: #{bert_class_forward.3} parent=55 // pred_check
          %p856 = pneg %p159
        $region58: #{bert_class_forward.3} parent=55 // pred_check_branch
          %858 = sbr.rel (%p856) target = $region60
        $region59: #{bert_class_forward.3} parent=55 // pred_region
          %s859 = smul.u32 8, %s21
          %p860 = scmp.lt.s32.totalorder %s859, 87
          %s861 = scalar_select %p860, %s859, 87
          %s862 = smul.addr %s861, 8
          %s863 = scalar_lea.vmem %s5, %s862
        $region60: #{bert_class_forward.3} parent=55 // pred_fallthru
          _
      $region56: #{bert_class_forward.3} parent=5 // pred_fallthru
        _
    $region6: #{bert_class_forward.3} parent=1 // loop_footer
      %s19 = sadd.s32 1, %s15
    $region7: #{bert_class_forward.3} parent=1 // loop_footer_branch
      %14 = sbr.rel target = $region3
    $region8: #{bert_class_forward.3} parent=1 // loop_exit
      _
    %864 = vsyncpa [#allocation3], 1
    %s865 = scalar_lea.sflag [#allocation3], 1
    %866 = vsyncpa %s865, 1
    %867 = vsyncpa [#allocation5], 1
    %s868 = scalar_lea.sflag [#allocation5], 1
    %869 = vsyncpa %s868, 1

// kernel: bert_class_forward.2
$region0: #{bert_class_forward.2}
  #allocation0 [shape = 'u32[]', space=smem, size = 0x4, offset = 0x4, fixed_abs, tag = 'smem constant byte address 0x4 - core index']
  #allocation1 [shape = 'u32[72,128]{1,0:T(1,128)}', space=vmem, size = 0x9000, scoped, tag = 'internal scratch']
  #allocation2 [shape = 'f32[16,128]{1,0:T(8,128)}', space=vmem, size = 0x2000, scoped, tag = 'scratch operand']
  %s0 = inlined_call_operand.vmem [shape: f32[16,128], index: 0, kind: input, shape index: {}]
  %s1 = inlined_call_operand.vmem [shape: f32[1,128], index: 1, kind: input, shape index: {}]
  %s2 = inlined_call_operand.vmem [shape: f32[1,128], index: 2, kind: input, shape index: {}]
  %s3 = inlined_call_operand.vmem [shape: f32[2,8], index: 3, kind: input, shape index: {}]
  %s4 = inlined_call_operand.hbm [shape: f32[2,128,384], index: 4, kind: input, shape index: {}]
  %s5 = inlined_call_operand.vmem [shape: f32[2,1,384], index: 5, kind: input, shape index: {}]
  %s6 = inlined_call_operand.hbm [shape: f32[2,128,128], index: 6, kind: input, shape index: {}]
  %s7 = inlined_call_operand.vmem [shape: f32[2,1,128], index: 7, kind: input, shape index: {}, may-alias: {7,9,13,15}]
  %s8 = inlined_call_operand.vmem [shape: f32[2,1,128], index: 8, kind: input, shape index: {}, may-alias: {8,14}]
  %s9 = inlined_call_operand.vmem [shape: f32[2,1,128], index: 9, kind: input, shape index: {}, may-alias: {7,9,13,15}]
  %s10 = inlined_call_operand.hbm [shape: f32[2,128,512], index: 10, kind: input, shape index: {}]
  %s11 = inlined_call_operand.vmem [shape: f32[2,1,512], index: 11, kind: input, shape index: {}]
  %s12 = inlined_call_operand.hbm [shape: f32[2,512,128], index: 12, kind: input, shape index: {}]
  %s13 = inlined_call_operand.vmem [shape: f32[2,1,128], index: 13, kind: input, shape index: {}, may-alias: {7,9,13,15}]
  %s14 = inlined_call_operand.vmem [shape: f32[2,1,128], index: 14, kind: input, shape index: {}, may-alias: {8,14}]
  %s15 = inlined_call_operand.vmem [shape: f32[2,1,128], index: 15, kind: input, shape index: {}, may-alias: {7,9,13,15}]
  %s16 = inlined_call_operand.vmem [shape: f32[16,128], index: 16, kind: output, shape index: {}]
  %s17 = sld [smem:[#allocation0]]
  $region117: #{bert_class_forward.2} parent=0
    _
  %s19 = ssub.s32 1, %s17
  %s20 = scalar_select 0, %s19, %s17
  $region1: #{bert_class_forward.2} parent=0
    #allocation3 [shape = 'u8[393216]{0}', space=vmem, size = 0x60000, scoped, tag = 'input window, operand 4']
    #allocation4 [shape = 's32[2]{0}', space=sflag, size = 0x8, scoped, tag = 'scoped memory for bert_class_forward.2']
    #allocation5 [shape = 'u8[131072]{0}', space=vmem, size = 0x20000, scoped, tag = 'input window, operand 6']
    #allocation6 [shape = 's32[2]{0}', space=sflag, size = 0x8, scoped, tag = 'scoped memory for bert_class_forward.2']
    #allocation7 [shape = 'u8[524288]{0}', space=vmem, size = 0x80000, scoped, tag = 'input window, operand 10']
    #allocation8 [shape = 'u8[524288]{0}', space=vmem, size = 0x80000, scoped, tag = 'input window, operand 12']
    #allocation9 [shape = 's32[2]{0}', space=sflag, size = 0x8, scoped, tag = 'scoped memory for bert_class_forward.2']
    %21 = vsyncpa [#allocation4], 0
    %s22 = scalar_lea.sflag [#allocation4], 1
    %23 = vsyncpa %s22, 0
    %24 = vsyncpa [#allocation6], 0
    %s25 = scalar_lea.sflag [#allocation6], 1
    %26 = vsyncpa %s25, 0
    %27 = vsyncpa [#allocation9], 0
    %s28 = scalar_lea.sflag [#allocation9], 1
    %29 = vsyncpa %s28, 0
    loop: start=0, step=1, limit=4
    $region2: #{bert_class_forward.2} parent=1 // loop_pre_header
      _
    $region3: #{bert_class_forward.2} parent=1 // loop_header
      %s31 = sphi 0, %s35
      %p32 = scmp.ge.s32.totalorder %s31, 4
      %s39 = sphi 0, %s39
      %s41 = sphi 0, %s39
      %s42 = sphi 0, %s41
      %s56 = sphi 0, %s42
      %s60 = sphi 0, %s60
      %s62 = sphi 0, %s60
      %s63 = sphi 0, %s62
      %s77 = sphi 0, %s63
      %s81 = sphi 0, %s81
      %s83 = sphi 0, %s81
      %s84 = sphi 0, %s83
      %s98 = sphi 0, %s84
      %s102 = sphi 0, %s102
      %s104 = sphi 0, %s102
      %s105 = sphi 0, %s104
      %s119 = sphi 0, %s105
      %s125 = sphi 0, %s127
      %s128 = sphi 0, %s125
      %s129 = sphi 0, %s128
      %s145 = sphi 0, %s129
      %s151 = sphi 0, %s153
      %s154 = sphi 0, %s151
      %s155 = sphi 0, %s154
      %s171 = sphi 0, %s155
      %s177 = sphi 0, %s179
      %s180 = sphi 0, %s177
      %s181 = sphi 0, %s180
      %s197 = sphi 0, %s181
      %s203 = sphi 0, %s205
      %s206 = sphi 0, %s203
      %s207 = sphi 0, %s206
      %s223 = sphi 0, %s207
      %s229 = sphi 0, %s231
      %s232 = sphi 0, %s229
      %s233 = sphi 0, %s232
      %s249 = sphi 0, %s233
      %s255 = sphi 0, %s257
      %s258 = sphi 0, %s255
      %s259 = sphi 0, %s258
      %s275 = sphi 0, %s259
      %s281 = sphi 0, %s283
      %s284 = sphi 0, %s281
      %s285 = sphi 0, %s284
      %s301 = sphi 0, %s285
      %s307 = sphi 0, %s309
      %s310 = sphi 0, %s307
      %s311 = sphi 0, %s310
      %s327 = sphi 0, %s311
      %s333 = sphi 0, %s335
      %s336 = sphi 0, %s333
      %s337 = sphi 0, %s336
      %s353 = sphi 0, %s337
      %s359 = sphi 0, %s361
      %s362 = sphi 0, %s359
      %s363 = sphi 0, %s362
      %s379 = sphi 0, %s363
      %s385 = sphi 0, %s387
      %s388 = sphi 0, %s385
      %s389 = sphi 0, %s388
      %s405 = sphi 0, %s389
      %s411 = sphi 0, %s413
      %s414 = sphi 0, %s411
      %s415 = sphi 0, %s414
      %s431 = sphi 0, %s415
      %s435 = sphi 0, %s435
      %s437 = sphi 0, %s435
      %s438 = sphi 0, %s437
      %s452 = sphi 0, %s438
    $region4: #{bert_class_forward.2} parent=1 // loop_header_branch
      %34 = sbr.rel (%p32) target = $region8
    $region5: #{bert_class_forward.2} parent=1 // loop_body
      %s36 = ssub.s32 %s31, 1
      %s37 = ssub.s32 %s31, 2
      %s38 = sadd.s32 %s31, 1
      %s40 = sadd.s32 %s39, 1
      %p43 = scmp.eq.s32.totalorder %s31, 1
      %p44 = scmp.ne.s32.totalorder %s39, %s41
      %p45 = scmp.eq.s32.totalorder %s31, 0
      %p46 = por %p44, %p45
      %p47 = scmp.ne.s32.totalorder %s39, %s41
      %p48 = scmp.eq.s32.totalorder %s36, 1
      %p49 = por %p47, %p48
      %p50 = scmp.ne.s32.totalorder %s41, %s42
      %p51 = scmp.eq.s32.totalorder %s36, 0
      %p52 = por %p50, %p51
      %p53 = scmp.ne.s32.totalorder %s41, %s42
      %p54 = scmp.eq.s32.totalorder %s37, 1
      %p55 = por %p53, %p54
      %p57 = scmp.ne.s32.totalorder %s42, %s56
      %p58 = scmp.eq.s32.totalorder %s37, 0
      %p59 = por %p57, %p58
      %s61 = sadd.s32 %s60, 1
      %p64 = scmp.eq.s32.totalorder %s31, 1
      %p65 = scmp.ne.s32.totalorder %s60, %s62
      %p66 = scmp.eq.s32.totalorder %s31, 0
      %p67 = por %p65, %p66
      %p68 = scmp.ne.s32.totalorder %s60, %s62
      %p69 = scmp.eq.s32.totalorder %s36, 1
      %p70 = por %p68, %p69
      %p71 = scmp.ne.s32.totalorder %s62, %s63
      %p72 = scmp.eq.s32.totalorder %s36, 0
      %p73 = por %p71, %p72
      %p74 = scmp.ne.s32.totalorder %s62, %s63
      %p75 = scmp.eq.s32.totalorder %s37, 1
      %p76 = por %p74, %p75
      %p78 = scmp.ne.s32.totalorder %s63, %s77
      %p79 = scmp.eq.s32.totalorder %s37, 0
      %p80 = por %p78, %p79
      %s82 = sadd.s32 %s81, 1
      %p85 = scmp.eq.s32.totalorder %s31, 1
      %p86 = scmp.ne.s32.totalorder %s81, %s83
      %p87 = scmp.eq.s32.totalorder %s31, 0
      %p88 = por %p86, %p87
      %p89 = scmp.ne.s32.totalorder %s81, %s83
      %p90 = scmp.eq.s32.totalorder %s36, 1
      %p91 = por %p89, %p90
      %p92 = scmp.ne.s32.totalorder %s83, %s84
      %p93 = scmp.eq.s32.totalorder %s36, 0
      %p94 = por %p92, %p93
      %p95 = scmp.ne.s32.totalorder %s83, %s84
      %p96 = scmp.eq.s32.totalorder %s37, 1
      %p97 = por %p95, %p96
      %p99 = scmp.ne.s32.totalorder %s84, %s98
      %p100 = scmp.eq.s32.totalorder %s37, 0
      %p101 = por %p99, %p100
      %s103 = sadd.s32 %s102, 1
      %p106 = scmp.eq.s32.totalorder %s31, 1
      %p107 = scmp.ne.s32.totalorder %s102, %s104
      %p108 = scmp.eq.s32.totalorder %s31, 0
      %p109 = por %p107, %p108
      %p110 = scmp.ne.s32.totalorder %s102, %s104
      %p111 = scmp.eq.s32.totalorder %s36, 1
      %p112 = por %p110, %p111
      %p113 = scmp.ne.s32.totalorder %s104, %s105
      %p114 = scmp.eq.s32.totalorder %s36, 0
      %p115 = por %p113, %p114
      %p116 = scmp.ne.s32.totalorder %s104, %s105
      %p117 = scmp.eq.s32.totalorder %s37, 1
      %p118 = por %p116, %p117
      %p120 = scmp.ne.s32.totalorder %s105, %s119
      %p121 = scmp.eq.s32.totalorder %s37, 0
      %p122 = por %p120, %p121
      %s123 = ssub.s32 %s31, %s38
      %p124 = scmp.eq.s32.totalorder %s123, 0
      %s126 = sadd.s32 %s125, 1
      %s127 = scalar_select %p124, %s125, %s126
      %p130 = pneg %p124
      %p131 = scmp.eq.s32.totalorder %s31, 1
      %p132 = por %p130, %p131
      %p133 = scmp.ne.s32.totalorder %s125, %s128
      %p134 = scmp.eq.s32.totalorder %s31, 0
      %p135 = por %p133, %p134
      %p136 = scmp.ne.s32.totalorder %s125, %s128
      %p137 = scmp.eq.s32.totalorder %s36, 1
      %p138 = por %p136, %p137
      %p139 = scmp.ne.s32.totalorder %s128, %s129
      %p140 = scmp.eq.s32.totalorder %s36, 0
      %p141 = por %p139, %p140
      %p142 = scmp.ne.s32.totalorder %s128, %s129
      %p143 = scmp.eq.s32.totalorder %s37, 1
      %p144 = por %p142, %p143
      %p146 = scmp.ne.s32.totalorder %s129, %s145
      %p147 = scmp.eq.s32.totalorder %s37, 0
      %p148 = por %p146, %p147
      %s149 = ssub.s32 %s31, %s38
      %p150 = scmp.eq.s32.totalorder %s149, 0
      %s152 = sadd.s32 %s151, 1
      %s153 = scalar_select %p150, %s151, %s152
      %p156 = pneg %p150
      %p157 = scmp.eq.s32.totalorder %s31, 1
      %p158 = por %p156, %p157
      %p159 = scmp.ne.s32.totalorder %s151, %s154
      %p160 = scmp.eq.s32.totalorder %s31, 0
      %p161 = por %p159, %p160
      %p162 = scmp.ne.s32.totalorder %s151, %s154
      %p163 = scmp.eq.s32.totalorder %s36, 1
      %p164 = por %p162, %p163
      %p165 = scmp.ne.s32.totalorder %s154, %s155
      %p166 = scmp.eq.s32.totalorder %s36, 0
      %p167 = por %p165, %p166
      %p168 = scmp.ne.s32.totalorder %s154, %s155
      %p169 = scmp.eq.s32.totalorder %s37, 1
      %p170 = por %p168, %p169
      %p172 = scmp.ne.s32.totalorder %s155, %s171
      %p173 = scmp.eq.s32.totalorder %s37, 0
      %p174 = por %p172, %p173
      %s175 = ssub.s32 %s31, %s38
      %p176 = scmp.eq.s32.totalorder %s175, 0
      %s178 = sadd.s32 %s177, 1
      %s179 = scalar_select %p176, %s177, %s178
      %p182 = pneg %p176
      %p183 = scmp.eq.s32.totalorder %s31, 1
      %p184 = por %p182, %p183
      %p185 = scmp.ne.s32.totalorder %s177, %s180
      %p186 = scmp.eq.s32.totalorder %s31, 0
      %p187 = por %p185, %p186
      %p188 = scmp.ne.s32.totalorder %s177, %s180
      %p189 = scmp.eq.s32.totalorder %s36, 1
      %p190 = por %p188, %p189
      %p191 = scmp.ne.s32.totalorder %s180, %s181
      %p192 = scmp.eq.s32.totalorder %s36, 0
      %p193 = por %p191, %p192
      %p194 = scmp.ne.s32.totalorder %s180, %s181
      %p195 = scmp.eq.s32.totalorder %s37, 1
      %p196 = por %p194, %p195
      %p198 = scmp.ne.s32.totalorder %s181, %s197
      %p199 = scmp.eq.s32.totalorder %s37, 0
      %p200 = por %p198, %p199
      %s201 = ssub.s32 %s31, %s38
      %p202 = scmp.eq.s32.totalorder %s201, 0
      %s204 = sadd.s32 %s203, 1
      %s205 = scalar_select %p202, %s203, %s204
      %p208 = pneg %p202
      %p209 = scmp.eq.s32.totalorder %s31, 1
      %p210 = por %p208, %p209
      %p211 = scmp.ne.s32.totalorder %s203, %s206
      %p212 = scmp.eq.s32.totalorder %s31, 0
      %p213 = por %p211, %p212
      %p214 = scmp.ne.s32.totalorder %s203, %s206
      %p215 = scmp.eq.s32.totalorder %s36, 1
      %p216 = por %p214, %p215
      %p217 = scmp.ne.s32.totalorder %s206, %s207
      %p218 = scmp.eq.s32.totalorder %s36, 0
      %p219 = por %p217, %p218
      %p220 = scmp.ne.s32.totalorder %s206, %s207
      %p221 = scmp.eq.s32.totalorder %s37, 1
      %p222 = por %p220, %p221
      %p224 = scmp.ne.s32.totalorder %s207, %s223
      %p225 = scmp.eq.s32.totalorder %s37, 0
      %p226 = por %p224, %p225
      %s227 = ssub.s32 %s31, %s38
      %p228 = scmp.eq.s32.totalorder %s227, 0
      %s230 = sadd.s32 %s229, 1
      %s231 = scalar_select %p228, %s229, %s230
      %p234 = pneg %p228
      %p235 = scmp.eq.s32.totalorder %s31, 1
      %p236 = por %p234, %p235
      %p237 = scmp.ne.s32.totalorder %s229, %s232
      %p238 = scmp.eq.s32.totalorder %s31, 0
      %p239 = por %p237, %p238
      %p240 = scmp.ne.s32.totalorder %s229, %s232
      %p241 = scmp.eq.s32.totalorder %s36, 1
      %p242 = por %p240, %p241
      %p243 = scmp.ne.s32.totalorder %s232, %s233
      %p244 = scmp.eq.s32.totalorder %s36, 0
      %p245 = por %p243, %p244
      %p246 = scmp.ne.s32.totalorder %s232, %s233
      %p247 = scmp.eq.s32.totalorder %s37, 1
      %p248 = por %p246, %p247
      %p250 = scmp.ne.s32.totalorder %s233, %s249
      %p251 = scmp.eq.s32.totalorder %s37, 0
      %p252 = por %p250, %p251
      %s253 = ssub.s32 %s31, %s38
      %p254 = scmp.eq.s32.totalorder %s253, 0
      %s256 = sadd.s32 %s255, 1
      %s257 = scalar_select %p254, %s255, %s256
      %p260 = pneg %p254
      %p261 = scmp.eq.s32.totalorder %s31, 1
      %p262 = por %p260, %p261
      %p263 = scmp.ne.s32.totalorder %s255, %s258
      %p264 = scmp.eq.s32.totalorder %s31, 0
      %p265 = por %p263, %p264
      %p266 = scmp.ne.s32.totalorder %s255, %s258
      %p267 = scmp.eq.s32.totalorder %s36, 1
      %p268 = por %p266, %p267
      %p269 = scmp.ne.s32.totalorder %s258, %s259
      %p270 = scmp.eq.s32.totalorder %s36, 0
      %p271 = por %p269, %p270
      %p272 = scmp.ne.s32.totalorder %s258, %s259
      %p273 = scmp.eq.s32.totalorder %s37, 1
      %p274 = por %p272, %p273
      %p276 = scmp.ne.s32.totalorder %s259, %s275
      %p277 = scmp.eq.s32.totalorder %s37, 0
      %p278 = por %p276, %p277
      %s279 = ssub.s32 %s31, %s38
      %p280 = scmp.eq.s32.totalorder %s279, 0
      %s282 = sadd.s32 %s281, 1
      %s283 = scalar_select %p280, %s281, %s282
      %p286 = pneg %p280
      %p287 = scmp.eq.s32.totalorder %s31, 1
      %p288 = por %p286, %p287
      %p289 = scmp.ne.s32.totalorder %s281, %s284
      %p290 = scmp.eq.s32.totalorder %s31, 0
      %p291 = por %p289, %p290
      %p292 = scmp.ne.s32.totalorder %s281, %s284
      %p293 = scmp.eq.s32.totalorder %s36, 1
      %p294 = por %p292, %p293
      %p295 = scmp.ne.s32.totalorder %s284, %s285
      %p296 = scmp.eq.s32.totalorder %s36, 0
      %p297 = por %p295, %p296
      %p298 = scmp.ne.s32.totalorder %s284, %s285
      %p299 = scmp.eq.s32.totalorder %s37, 1
      %p300 = por %p298, %p299
      %p302 = scmp.ne.s32.totalorder %s285, %s301
      %p303 = scmp.eq.s32.totalorder %s37, 0
      %p304 = por %p302, %p303
      %s305 = ssub.s32 %s31, %s38
      %p306 = scmp.eq.s32.totalorder %s305, 0
      %s308 = sadd.s32 %s307, 1
      %s309 = scalar_select %p306, %s307, %s308
      %p312 = pneg %p306
      %p313 = scmp.eq.s32.totalorder %s31, 1
      %p314 = por %p312, %p313
      %p315 = scmp.ne.s32.totalorder %s307, %s310
      %p316 = scmp.eq.s32.totalorder %s31, 0
      %p317 = por %p315, %p316
      %p318 = scmp.ne.s32.totalorder %s307, %s310
      %p319 = scmp.eq.s32.totalorder %s36, 1
      %p320 = por %p318, %p319
      %p321 = scmp.ne.s32.totalorder %s310, %s311
      %p322 = scmp.eq.s32.totalorder %s36, 0
      %p323 = por %p321, %p322
      %p324 = scmp.ne.s32.totalorder %s310, %s311
      %p325 = scmp.eq.s32.totalorder %s37, 1
      %p326 = por %p324, %p325
      %p328 = scmp.ne.s32.totalorder %s311, %s327
      %p329 = scmp.eq.s32.totalorder %s37, 0
      %p330 = por %p328, %p329
      %s331 = ssub.s32 %s31, %s38
      %p332 = scmp.eq.s32.totalorder %s331, 0
      %s334 = sadd.s32 %s333, 1
      %s335 = scalar_select %p332, %s333, %s334
      %p338 = pneg %p332
      %p339 = scmp.eq.s32.totalorder %s31, 1
      %p340 = por %p338, %p339
      %p341 = scmp.ne.s32.totalorder %s333, %s336
      %p342 = scmp.eq.s32.totalorder %s31, 0
      %p343 = por %p341, %p342
      %p344 = scmp.ne.s32.totalorder %s333, %s336
      %p345 = scmp.eq.s32.totalorder %s36, 1
      %p346 = por %p344, %p345
      %p347 = scmp.ne.s32.totalorder %s336, %s337
      %p348 = scmp.eq.s32.totalorder %s36, 0
      %p349 = por %p347, %p348
      %p350 = scmp.ne.s32.totalorder %s336, %s337
      %p351 = scmp.eq.s32.totalorder %s37, 1
      %p352 = por %p350, %p351
      %p354 = scmp.ne.s32.totalorder %s337, %s353
      %p355 = scmp.eq.s32.totalorder %s37, 0
      %p356 = por %p354, %p355
      %s357 = ssub.s32 %s31, %s38
      %p358 = scmp.eq.s32.totalorder %s357, 0
      %s360 = sadd.s32 %s359, 1
      %s361 = scalar_select %p358, %s359, %s360
      %p364 = pneg %p358
      %p365 = scmp.eq.s32.totalorder %s31, 1
      %p366 = por %p364, %p365
      %p367 = scmp.ne.s32.totalorder %s359, %s362
      %p368 = scmp.eq.s32.totalorder %s31, 0
      %p369 = por %p367, %p368
      %p370 = scmp.ne.s32.totalorder %s359, %s362
      %p371 = scmp.eq.s32.totalorder %s36, 1
      %p372 = por %p370, %p371
      %p373 = scmp.ne.s32.totalorder %s362, %s363
      %p374 = scmp.eq.s32.totalorder %s36, 0
      %p375 = por %p373, %p374
      %p376 = scmp.ne.s32.totalorder %s362, %s363
      %p377 = scmp.eq.s32.totalorder %s37, 1
      %p378 = por %p376, %p377
      %p380 = scmp.ne.s32.totalorder %s363, %s379
      %p381 = scmp.eq.s32.totalorder %s37, 0
      %p382 = por %p380, %p381
      %s383 = ssub.s32 %s31, %s38
      %p384 = scmp.eq.s32.totalorder %s383, 0
      %s386 = sadd.s32 %s385, 1
      %s387 = scalar_select %p384, %s385, %s386
      %p390 = pneg %p384
      %p391 = scmp.eq.s32.totalorder %s31, 1
      %p392 = por %p390, %p391
      %p393 = scmp.ne.s32.totalorder %s385, %s388
      %p394 = scmp.eq.s32.totalorder %s31, 0
      %p395 = por %p393, %p394
      %p396 = scmp.ne.s32.totalorder %s385, %s388
      %p397 = scmp.eq.s32.totalorder %s36, 1
      %p398 = por %p396, %p397
      %p399 = scmp.ne.s32.totalorder %s388, %s389
      %p400 = scmp.eq.s32.totalorder %s36, 0
      %p401 = por %p399, %p400
      %p402 = scmp.ne.s32.totalorder %s388, %s389
      %p403 = scmp.eq.s32.totalorder %s37, 1
      %p404 = por %p402, %p403
      %p406 = scmp.ne.s32.totalorder %s389, %s405
      %p407 = scmp.eq.s32.totalorder %s37, 0
      %p408 = por %p406, %p407
      %s409 = ssub.s32 %s31, %s38
      %p410 = scmp.eq.s32.totalorder %s409, 0
      %s412 = sadd.s32 %s411, 1
      %s413 = scalar_select %p410, %s411, %s412
      %p416 = pneg %p410
      %p417 = scmp.eq.s32.totalorder %s31, 1
      %p418 = por %p416, %p417
      %p419 = scmp.ne.s32.totalorder %s411, %s414
      %p420 = scmp.eq.s32.totalorder %s31, 0
      %p421 = por %p419, %p420
      %p422 = scmp.ne.s32.totalorder %s411, %s414
      %p423 = scmp.eq.s32.totalorder %s36, 1
      %p424 = por %p422, %p423
      %p425 = scmp.ne.s32.totalorder %s414, %s415
      %p426 = scmp.eq.s32.totalorder %s36, 0
      %p427 = por %p425, %p426
      %p428 = scmp.ne.s32.totalorder %s414, %s415
      %p429 = scmp.eq.s32.totalorder %s37, 1
      %p430 = por %p428, %p429
      %p432 = scmp.ne.s32.totalorder %s415, %s431
      %p433 = scmp.eq.s32.totalorder %s37, 0
      %p434 = por %p432, %p433
      %s436 = sadd.s32 %s435, 1
      %p439 = scmp.eq.s32.totalorder %s31, 1
      %p440 = scmp.ne.s32.totalorder %s435, %s437
      %p441 = scmp.eq.s32.totalorder %s31, 0
      %p442 = por %p440, %p441
      %p443 = scmp.ne.s32.totalorder %s435, %s437
      %p444 = scmp.eq.s32.totalorder %s36, 1
      %p445 = por %p443, %p444
      %p446 = scmp.ne.s32.totalorder %s437, %s438
      %p447 = scmp.eq.s32.totalorder %s36, 0
      %p448 = por %p446, %p447
      %p449 = scmp.ne.s32.totalorder %s437, %s438
      %p450 = scmp.eq.s32.totalorder %s37, 1
      %p451 = por %p449, %p450
      %p453 = scmp.ne.s32.totalorder %s438, %s452
      %p454 = scmp.eq.s32.totalorder %s37, 0
      %p455 = por %p453, %p454
      %p456 = scmp.le.s32.totalorder 1, %s31
      %p457 = scmp.lt.s32.totalorder %s31, 3
      %p458 = pnand %p456, %p457
      %p459 = pneg %p458
      // Predicated region
      $region9: #{bert_class_forward.2} parent=5 // pred_check
        _
      $region10: #{bert_class_forward.2} parent=5 // pred_check_branch
        %461 = sbr.rel (%p458) target = $region12
      $region11: #{bert_class_forward.2} parent=5 // pred_region
        %s462 = ssub.s32 %s31, 1
        // Predicated region
        $region13: #{bert_class_forward.2} parent=11 // pred_check
          %p463 = pneg %p52
        $region14: #{bert_class_forward.2} parent=11 // pred_check_branch
          %465 = sbr.rel (%p463) target = $region16
        $region15: #{bert_class_forward.2} parent=11 // pred_region
          _
        $region16: #{bert_class_forward.2} parent=11 // pred_fallthru
          _
        // Predicated region
        $region17: #{bert_class_forward.2} parent=11 // pred_check
          %p466 = pneg %p73
        $region18: #{bert_class_forward.2} parent=11 // pred_check_branch
          %468 = sbr.rel (%p466) target = $region20
        $region19: #{bert_class_forward.2} parent=11 // pred_region
          _
        $region20: #{bert_class_forward.2} parent=11 // pred_fallthru
          _
        // Predicated region
        $region21: #{bert_class_forward.2} parent=11 // pred_check
          %p469 = pneg %p94
        $region22: #{bert_class_forward.2} parent=11 // pred_check_branch
          %471 = sbr.rel (%p469) target = $region24
        $region23: #{bert_class_forward.2} parent=11 // pred_region
          _
        $region24: #{bert_class_forward.2} parent=11 // pred_fallthru
          _
        // Predicated region
        $region25: #{bert_class_forward.2} parent=11 // pred_check
          %p472 = pneg %p115
        $region26: #{bert_class_forward.2} parent=11 // pred_check_branch
          %474 = sbr.rel (%p472) target = $region28
        $region27: #{bert_class_forward.2} parent=11 // pred_region
          _
        $region28: #{bert_class_forward.2} parent=11 // pred_fallthru
          _
      $region12: #{bert_class_forward.2} parent=5 // pred_fallthru
        _
      %p475 = scmp.lt.s32.totalorder %s31, 2
      // Predicated region
      $region29: #{bert_class_forward.2} parent=5 // pred_check
        %p476 = pneg %p475
      $region30: #{bert_class_forward.2} parent=5 // pred_check_branch
        %478 = sbr.rel (%p476) target = $region32
      $region31: #{bert_class_forward.2} parent=5 // pred_region
        // Predicated region
        $region33: #{bert_class_forward.2} parent=31 // pred_check
          %p479 = pneg %p135
        $region34: #{bert_class_forward.2} parent=31 // pred_check_branch
          %481 = sbr.rel (%p479) target = $region36
        $region35: #{bert_class_forward.2} parent=31 // pred_region
          %s482 = sand.u32 %s125, 1
          %s483 = scalar_lea.sflag [#allocation4], %s482
          %s484 = sand.u32 %s125, 1
          %s485 = smul.addr %s484, 384
          %s486 = scalar_lea.vmem [#allocation3], %s485
          %488 = vsyncadd %s483, 0
          %s489 = smul.addr %s31, 48
          %s490 = smul.addr %s489, 8
          %s491 = scalar_lea.hbm %s4, %s490
          %s492 = sshll.u32 %s491, 4
          %s493 = int_to_ptr.hbm [resolvable:$true] %s492
          %s494 = sshll.u32 %s486, 4
          %s495 = int_to_ptr.vmem [resolvable:$true] %s494
          %500 = dma.hbm_to_vmem [thread:$0]  %s493, 6144, %s495, %s483, 384, 384, 24
        $region36: #{bert_class_forward.2} parent=31 // pred_fallthru
          _
        // Predicated region
        $region37: #{bert_class_forward.2} parent=31 // pred_check
          %p501 = pneg %p161
        $region38: #{bert_class_forward.2} parent=31 // pred_check_branch
          %503 = sbr.rel (%p501) target = $region40
        $region39: #{bert_class_forward.2} parent=31 // pred_region
          %p504 = scmp.lt.s32.totalorder %s31, 1
          %s505 = scalar_select %p504, %s31, 1
          %s506 = smul.addr %s505, 3
          %s507 = scalar_lea.vmem %s5, %s506
        $region40: #{bert_class_forward.2} parent=31 // pred_fallthru
          _
        // Predicated region
        $region41: #{bert_class_forward.2} parent=31 // pred_check
          %p508 = pneg %p187
        $region42: #{bert_class_forward.2} parent=31 // pred_check_branch
          %510 = sbr.rel (%p508) target = $region44
        $region43: #{bert_class_forward.2} parent=31 // pred_region
          %s511 = sand.u32 %s31, 1
          %s512 = scalar_lea.sflag [#allocation6], %s511
          %s513 = sand.u32 %s177, 1
          %s514 = smul.addr %s513, 128
          %s515 = scalar_lea.vmem [#allocation5], %s514
          %517 = vsyncadd %s512, 0
          %s518 = smul.addr %s31, 16
          %s519 = smul.addr %s518, 8
          %s520 = scalar_lea.hbm %s6, %s519
          %s521 = sshll.u32 %s520, 4
          %s522 = int_to_ptr.hbm [resolvable:$true] %s521
          %s523 = sshll.u32 %s515, 4
          %s524 = int_to_ptr.vmem [resolvable:$true] %s523
          %529 = dma.hbm_to_vmem [thread:$0]  %s522, 2048, %s524, %s512, 128, 128, 8
        $region44: #{bert_class_forward.2} parent=31 // pred_fallthru
          _
        // Predicated region
        $region45: #{bert_class_forward.2} parent=31 // pred_check
          %p530 = pneg %p213
        $region46: #{bert_class_forward.2} parent=31 // pred_check_branch
          %532 = sbr.rel (%p530) target = $region48
        $region47: #{bert_class_forward.2} parent=31 // pred_region
          %p533 = scmp.lt.s32.totalorder %s31, 1
          %s534 = scalar_select %p533, %s31, 1
          %s535 = scalar_lea.vmem %s7, %s534
        $region48: #{bert_class_forward.2} parent=31 // pred_fallthru
          _
        // Predicated region
        $region49: #{bert_class_forward.2} parent=31 // pred_check
          %p536 = pneg %p239
        $region50: #{bert_class_forward.2} parent=31 // pred_check_branch
          %538 = sbr.rel (%p536) target = $region52
        $region51: #{bert_class_forward.2} parent=31 // pred_region
          %p539 = scmp.lt.s32.totalorder %s31, 1
          %s540 = scalar_select %p539, %s31, 1
          %s541 = scalar_lea.vmem %s8, %s540
        $region52: #{bert_class_forward.2} parent=31 // pred_fallthru
          _
        // Predicated region
        $region53: #{bert_class_forward.2} parent=31 // pred_check
          %p542 = pneg %p265
        $region54: #{bert_class_forward.2} parent=31 // pred_check_branch
          %544 = sbr.rel (%p542) target = $region56
        $region55: #{bert_class_forward.2} parent=31 // pred_region
          %p545 = scmp.lt.s32.totalorder %s31, 1
          %s546 = scalar_select %p545, %s31, 1
          %s547 = scalar_lea.vmem %s9, %s546
        $region56: #{bert_class_forward.2} parent=31 // pred_fallthru
          _
        // Predicated region
        $region57: #{bert_class_forward.2} parent=31 // pred_check
          %p548 = pneg %p291
        $region58: #{bert_class_forward.2} parent=31 // pred_check_branch
          %550 = sbr.rel (%p548) target = $region60
        $region59: #{bert_class_forward.2} parent=31 // pred_region
          %s551 = sand.u32 %s31, 1
          %s552 = scalar_lea.sflag [#allocation6], %s551
          %s553 = sand.u32 %s281, 1
          %s554 = smul.addr %s553, 512
          %s555 = scalar_lea.vmem [#allocation7], %s554
          %557 = vsyncadd %s552, 0
          %s558 = smul.addr %s31, 64
          %s559 = smul.addr %s558, 8
          %s560 = scalar_lea.hbm %s10, %s559
          %s561 = sshll.u32 %s560, 4
          %s562 = int_to_ptr.hbm [resolvable:$true] %s561
          %s563 = sshll.u32 %s555, 4
          %s564 = int_to_ptr.vmem [resolvable:$true] %s563
          %569 = dma.hbm_to_vmem [thread:$0]  %s562, 8192, %s564, %s552, 512, 512, 32
        $region60: #{bert_class_forward.2} parent=31 // pred_fallthru
          _
        // Predicated region
        $region61: #{bert_class_forward.2} parent=31 // pred_check
          %p570 = pneg %p317
        $region62: #{bert_class_forward.2} parent=31 // pred_check_branch
          %572 = sbr.rel (%p570) target = $region64
        $region63: #{bert_class_forward.2} parent=31 // pred_region
          %p573 = scmp.lt.s32.totalorder %s31, 1
          %s574 = scalar_select %p573, %s31, 1
          %s575 = smul.addr %s574, 4
          %s576 = scalar_lea.vmem %s11, %s575
        $region64: #{bert_class_forward.2} parent=31 // pred_fallthru
          _
        // Predicated region
        $region65: #{bert_class_forward.2} parent=31 // pred_check
          %p577 = pneg %p343
        $region66: #{bert_class_forward.2} parent=31 // pred_check_branch
          %579 = sbr.rel (%p577) target = $region68
        $region67: #{bert_class_forward.2} parent=31 // pred_region
          %s580 = sand.u32 %s333, 1
          %s581 = scalar_lea.sflag [#allocation9], %s580
          %s582 = sand.u32 %s333, 1
          %s583 = smul.addr %s582, 512
          %s584 = scalar_lea.vmem [#allocation8], %s583
          %586 = vsyncadd %s581, 0
          %s587 = smul.addr %s31, 64
          %s588 = smul.addr %s587, 8
          %s589 = scalar_lea.hbm %s12, %s588
          %s590 = sshll.u32 %s589, 4
          %s591 = int_to_ptr.hbm [resolvable:$true] %s590
          %s592 = sshll.u32 %s584, 4
          %s593 = int_to_ptr.vmem [resolvable:$true] %s592
          %598 = dma.hbm_to_vmem [thread:$0]  %s591, 8192, %s593, %s581, 128, 128, 8
        $region68: #{bert_class_forward.2} parent=31 // pred_fallthru
          _
        // Predicated region
        $region69: #{bert_class_forward.2} parent=31 // pred_check
          %p599 = pneg %p369
        $region70: #{bert_class_forward.2} parent=31 // pred_check_branch
          %601 = sbr.rel (%p599) target = $region72
        $region71: #{bert_class_forward.2} parent=31 // pred_region
          %p602 = scmp.lt.s32.totalorder %s31, 1
          %s603 = scalar_select %p602, %s31, 1
          %s604 = scalar_lea.vmem %s13, %s603
        $region72: #{bert_class_forward.2} parent=31 // pred_fallthru
          _
        // Predicated region
        $region73: #{bert_class_forward.2} parent=31 // pred_check
          %p605 = pneg %p395
        $region74: #{bert_class_forward.2} parent=31 // pred_check_branch
          %607 = sbr.rel (%p605) target = $region76
        $region75: #{bert_class_forward.2} parent=31 // pred_region
          %p608 = scmp.lt.s32.totalorder %s31, 1
          %s609 = scalar_select %p608, %s31, 1
          %s610 = scalar_lea.vmem %s14, %s609
        $region76: #{bert_class_forward.2} parent=31 // pred_fallthru
          _
        // Predicated region
        $region77: #{bert_class_forward.2} parent=31 // pred_check
          %p611 = pneg %p421
        $region78: #{bert_class_forward.2} parent=31 // pred_check_branch
          %613 = sbr.rel (%p611) target = $region80
        $region79: #{bert_class_forward.2} parent=31 // pred_region
          %p614 = scmp.lt.s32.totalorder %s31, 1
          %s615 = scalar_select %p614, %s31, 1
          %s616 = scalar_lea.vmem %s15, %s615
        $region80: #{bert_class_forward.2} parent=31 // pred_fallthru
          _
      $region32: #{bert_class_forward.2} parent=5 // pred_fallthru
        _
      %p617 = scmp.le.s32.totalorder 1, %s31
      %p618 = scmp.lt.s32.totalorder %s31, 3
      %p619 = pnand %p617, %p618
      %p620 = pneg %p619
      // Predicated region
      $region81: #{bert_class_forward.2} parent=5 // pred_check
        _
      $region82: #{bert_class_forward.2} parent=5 // pred_check_branch
        %622 = sbr.rel (%p619) target = $region84
      $region83: #{bert_class_forward.2} parent=5 // pred_region
        %s623 = ssub.s32 %s31, 1
        %s624 = sand.u32 %s128, 1
        %s625 = scalar_lea.sflag [#allocation4], %s624
        %s626 = sand.u32 %s128, 1
        %s627 = smul.addr %s626, 384
        %s628 = scalar_lea.vmem [#allocation3], %s627
        // Predicated region
        $region85: #{bert_class_forward.2} parent=83 // pred_check
          %p629 = pneg %p141
        $region86: #{bert_class_forward.2} parent=83 // pred_check_branch
          %631 = sbr.rel (%p629) target = $region88
        $region87: #{bert_class_forward.2} parent=83 // pred_region
          %633 = dma.done %s625, 6144
        $region88: #{bert_class_forward.2} parent=83 // pred_fallthru
          _
        %s634 = sand.u32 %s36, 1
        %s635 = scalar_lea.sflag [#allocation6], %s634
        %s636 = sand.u32 %s180, 1
        %s637 = smul.addr %s636, 128
        %s638 = scalar_lea.vmem [#allocation5], %s637
        // Predicated region
        $region89: #{bert_class_forward.2} parent=83 // pred_check
          %p639 = pneg %p193
        $region90: #{bert_class_forward.2} parent=83 // pred_check_branch
          %641 = sbr.rel (%p639) target = $region92
        $region91: #{bert_class_forward.2} parent=83 // pred_region
          %643 = dma.done %s635, 2048
        $region92: #{bert_class_forward.2} parent=83 // pred_fallthru
          _
        %s644 = sand.u32 %s36, 1
        %s645 = scalar_lea.sflag [#allocation6], %s644
        %s646 = sand.u32 %s284, 1
        %s647 = smul.addr %s646, 512
        %s648 = scalar_lea.vmem [#allocation7], %s647
        // Predicated region
        $region93: #{bert_class_forward.2} parent=83 // pred_check
          %p649 = pneg %p297
        $region94: #{bert_class_forward.2} parent=83 // pred_check_branch
          %651 = sbr.rel (%p649) target = $region96
        $region95: #{bert_class_forward.2} parent=83 // pred_region
          %653 = dma.done %s645, 8192
        $region96: #{bert_class_forward.2} parent=83 // pred_fallthru
          _
        %s654 = sand.u32 %s336, 1
        %s655 = scalar_lea.sflag [#allocation9], %s654
        %s656 = sand.u32 %s336, 1
        %s657 = smul.addr %s656, 512
        %s658 = scalar_lea.vmem [#allocation8], %s657
        // Predicated region
        $region97: #{bert_class_forward.2} parent=83 // pred_check
          %p659 = pneg %p349
        $region98: #{bert_class_forward.2} parent=83 // pred_check_branch
          %661 = sbr.rel (%p659) target = $region100
        $region99: #{bert_class_forward.2} parent=83 // pred_region
          %663 = dma.done %s655, 8192
        $region100: #{bert_class_forward.2} parent=83 // pred_fallthru
          _
        %p664 = pneg %p52
        %p665 = pneg %p49
        %p666 = pneg %p73
        %p667 = pneg %p70
        %p668 = pneg %p94
        %p669 = pneg %p91
        %p670 = pneg %p115
        %p671 = pneg %p112
        %s672 = sand.u32 %s128, 1
        %s673 = scalar_lea.sflag [#allocation4], %s672
        %s674 = sand.u32 %s128, 1
        %s675 = smul.addr %s674, 384
        %s676 = scalar_lea.vmem [#allocation3], %s675
        %p677 = pneg %p141
        %p678 = pneg %p138
        %p679 = scmp.lt.s32.totalorder %s36, 1
        %s680 = scalar_select %p679, %s36, 1
        %s681 = smul.addr %s680, 3
        %s682 = scalar_lea.vmem %s5, %s681
        %p683 = pneg %p167
        %p684 = pneg %p164
        %s685 = sand.u32 %s36, 1
        %s686 = scalar_lea.sflag [#allocation6], %s685
        %s687 = sand.u32 %s180, 1
        %s688 = smul.addr %s687, 128
        %s689 = scalar_lea.vmem [#allocation5], %s688
        %p690 = pneg %p193
        %p691 = pneg %p190
        %p692 = scmp.lt.s32.totalorder %s36, 1
        %s693 = scalar_select %p692, %s36, 1
        %s694 = scalar_lea.vmem %s7, %s693
        %p695 = pneg %p219
        %p696 = pneg %p216
        %p697 = scmp.lt.s32.totalorder %s36, 1
        %s698 = scalar_select %p697, %s36, 1
        %s699 = scalar_lea.vmem %s8, %s698
        %p700 = pneg %p245
        %p701 = pneg %p242
        %p702 = scmp.lt.s32.totalorder %s36, 1
        %s703 = scalar_select %p702, %s36, 1
        %s704 = scalar_lea.vmem %s9, %s703
        %p705 = pneg %p271
        %p706 = pneg %p268
        %s707 = sand.u32 %s36, 1
        %s708 = scalar_lea.sflag [#allocation6], %s707
        %s709 = sand.u32 %s284, 1
        %s710 = smul.addr %s709, 512
        %s711 = scalar_lea.vmem [#allocation7], %s710
        %p712 = pneg %p297
        %p713 = pneg %p294
        %p714 = scmp.lt.s32.totalorder %s36, 1
        %s715 = scalar_select %p714, %s36, 1
        %s716 = smul.addr %s715, 4
        %s717 = scalar_lea.vmem %s11, %s716
        %p718 = pneg %p323
        %p719 = pneg %p320
        %s720 = sand.u32 %s336, 1
        %s721 = scalar_lea.sflag [#allocation9], %s720
        %s722 = sand.u32 %s336, 1
        %s723 = smul.addr %s722, 512
        %s724 = scalar_lea.vmem [#allocation8], %s723
        %p725 = pneg %p349
        %p726 = pneg %p346
        %p727 = scmp.lt.s32.totalorder %s36, 1
        %s728 = scalar_select %p727, %s36, 1
        %s729 = scalar_lea.vmem %s13, %s728
        %p730 = pneg %p375
        %p731 = pneg %p372
        %p732 = scmp.lt.s32.totalorder %s36, 1
        %s733 = scalar_select %p732, %s36, 1
        %s734 = scalar_lea.vmem %s14, %s733
        %p735 = pneg %p401
        %p736 = pneg %p398
        %p737 = scmp.lt.s32.totalorder %s36, 1
        %s738 = scalar_select %p737, %s36, 1
        %s739 = scalar_lea.vmem %s15, %s738
        %p740 = pneg %p427
        %p741 = pneg %p424
        %p742 = pneg %p448
        %p743 = pneg %p445
        %p744 = scmp.lt.s32.totalorder %s36, 1
        %s745 = scalar_select %p744, %s36, 1
        %s746 = smul.addr %s745, 3
        %s747 = scalar_lea.vmem %s5, %s746
        %p748 = scmp.lt.s32.totalorder %s36, 1
        %s749 = scalar_select %p748, %s36, 1
        %s750 = scalar_lea.vmem %s7, %s749
        %p751 = scmp.lt.s32.totalorder %s36, 1
        %s752 = scalar_select %p751, %s36, 1
        %s753 = scalar_lea.vmem %s8, %s752
        %p754 = scmp.lt.s32.totalorder %s36, 1
        %s755 = scalar_select %p754, %s36, 1
        %s756 = scalar_lea.vmem %s9, %s755
        %p757 = scmp.lt.s32.totalorder %s36, 1
        %s758 = scalar_select %p757, %s36, 1
        %s759 = smul.addr %s758, 4
        %s760 = scalar_lea.vmem %s11, %s759
        %p761 = scmp.lt.s32.totalorder %s36, 1
        %s762 = scalar_select %p761, %s36, 1
        %s763 = scalar_lea.vmem %s13, %s762
        %p764 = scmp.lt.s32.totalorder %s36, 1
        %s765 = scalar_select %p764, %s36, 1
        %s766 = scalar_lea.vmem %s14, %s765
        %p767 = scmp.lt.s32.totalorder %s36, 1
        %s768 = scalar_select %p767, %s36, 1
        %s769 = scalar_lea.vmem %s15, %s768
        %p770 = scmp.eq.s32.totalorder %s36, 0
        // Predicated region
        $region101: #{bert_class_forward.2} parent=83 // pred_check
          %p771 = pneg %p770
        $region102: #{bert_class_forward.2} parent=83 // pred_check_branch
          %773 = sbr.rel (%p771) target = $region104
        $region103: #{bert_class_forward.2} parent=83 // pred_region
          %v774 = vld [vmem:[%s0] sm:$0xff]
          %v775 = vld [vmem:[%s0 + $0x8] sm:$0xff]
          %v776 = vld [vmem:[%s1] sm:$0x1]
          %v777 = vld [vmem:[%s2] sm:$0x1]
          %778 = vadd.xlane.f32.xlu0 %v774
          %v779 = vpop.xlane.xlu0 %778
          %780 = vadd.xlane.f32.xlu0 %v775
          %v781 = vpop.xlane.xlu0 %780
          %v782 = vrcp.pop 128.0
          %v783 = vmul.f32 128.0, %v782
          %v784 = vsub.f32 1.0, %v783
          %v785 = vmul.f32 %v782, %v784
          %v786 = vadd.f32 %v782, %v785
          %vm787 = vweird.f32 %v782
          %v788 = vsel %vm787, %v782, %v786
          %v789 = vmul.f32 %v779, %v788
          %v790 = vmul.f32 %v781, %v788
          %v791 = vsub.f32 %v774, %v789
          %v792 = vsub.f32 %v775, %v790
          %v793 = vmul.f32 %v791, %v791
          %v794 = vmul.f32 %v792, %v792
          %795 = vadd.xlane.f32.xlu0 %v793
          %v796 = vpop.xlane.xlu0 %795
          %797 = vadd.xlane.f32.xlu0 %v794
          %v798 = vpop.xlane.xlu0 %797
          %v799 = vmul.f32 %v796, %v788
          %v800 = vmul.f32 %v798, %v788
          %v801 = vadd.f32 %v799, 1e-12
          %v802 = vadd.f32 %v800, 1e-12
          %v803 = vrsqrt.pop %v801
          %v804 = vmul.f32 %v803, %v801
          %v805 = vmul.f32 %v804, %v803
          %v806 = vmul.f32 0.5, %v805
          %v807 = vsub.f32 1.5, %v806
          %v808 = vmul.f32 %v803, %v807
          %vm809 = vweird.f32 %v801
          %vm810 = vweird.f32 %v803
          %vm811 = vmor %vm809, %vm810
          %v812 = vsel %vm811, %v803, %v808
          %v813 = vrsqrt.pop %v802
          %v814 = vmul.f32 %v813, %v802
          %v815 = vmul.f32 %v814, %v813
          %v816 = vmul.f32 0.5, %v815
          %v817 = vsub.f32 1.5, %v816
          %v818 = vmul.f32 %v813, %v817
          %vm819 = vweird.f32 %v802
          %vm820 = vweird.f32 %v813
          %vm821 = vmor %vm819, %vm820
          %v822 = vsel %vm821, %v813, %v818
          %v823 = vmul.f32 %v791, %v812
          %v824 = vmul.f32 %v792, %v822
          %v826 = vperm.slane %v776, 0
          %v828 = vmul.f32 %v823, %v826
          %v829 = vmul.f32 %v824, %v826
          %v831 = vperm.slane %v777, 0
          %v833 = vadd.f32 %v828, %v831
          %v834 = vadd.f32 %v829, %v831
          %835 = vst [vmem:[%s16] sm:$0xff] %v833
          %836 = vst [vmem:[%s16 + $0x8] sm:$0xff] %v834
        $region104: #{bert_class_forward.2} parent=83 // pred_fallthru
          _
        %v837 = vld [vmem:[%s16] sm:$0xff]
        %v838 = vld [vmem:[%s16 + $0x8] sm:$0xff]
        %v839 = vld [vmem:[%s628] sm:$0xff]
        %v840 = vld [vmem:[%s628 + $0x8] sm:$0xff]
        %v841 = vld [vmem:[%s628 + $0x10] sm:$0xff]
        %v842 = vld [vmem:[%s628 + $0x18] sm:$0xff]
        %v843 = vld [vmem:[%s628 + $0x20] sm:$0xff]
        %v844 = vld [vmem:[%s628 + $0x28] sm:$0xff]
        %v845 = vld [vmem:[%s628 + $0x30] sm:$0xff]
        %v846 = vld [vmem:[%s628 + $0x38] sm:$0xff]
        %v847 = vld [vmem:[%s628 + $0x40] sm:$0xff]
        %v848 = vld [vmem:[%s628 + $0x48] sm:$0xff]
        %v849 = vld [vmem:[%s628 + $0x50] sm:$0xff]
        %v850 = vld [vmem:[%s628 + $0x58] sm:$0xff]
        %v851 = vld [vmem:[%s628 + $0x60] sm:$0xff]
        %v852 = vld [vmem:[%s628 + $0x68] sm:$0xff]
        %v853 = vld [vmem:[%s628 + $0x70] sm:$0xff]
        %v854 = vld [vmem:[%s628 + $0x78] sm:$0xff]
        %v855 = vld [vmem:[%s628 + $0x80] sm:$0xff]
        %v856 = vld [vmem:[%s628 + $0x88] sm:$0xff]
        %v857 = vld [vmem:[%s628 + $0x90] sm:$0xff]
        %v858 = vld [vmem:[%s628 + $0x98] sm:$0xff]
        %v859 = vld [vmem:[%s628 + $0xa0] sm:$0xff]
        %v860 = vld [vmem:[%s628 + $0xa8] sm:$0xff]
        %v861 = vld [vmem:[%s628 + $0xb0] sm:$0xff]
        %v862 = vld [vmem:[%s628 + $0xb8] sm:$0xff]
        %v863 = vld [vmem:[%s628 + $0xc0] sm:$0xff]
        %v864 = vld [vmem:[%s628 + $0xc8] sm:$0xff]
        %v865 = vld [vmem:[%s628 + $0xd0] sm:$0xff]
        %v866 = vld [vmem:[%s628 + $0xd8] sm:$0xff]
        %v867 = vld [vmem:[%s628 + $0xe0] sm:$0xff]
        %v868 = vld [vmem:[%s628 + $0xe8] sm:$0xff]
        %v869 = vld [vmem:[%s628 + $0xf0] sm:$0xff]
        %v870 = vld [vmem:[%s628 + $0xf8] sm:$0xff]
        %v871 = vld [vmem:[%s628 + $0x100] sm:$0xff]
        %v872 = vld [vmem:[%s628 + $0x108] sm:$0xff]
        %v873 = vld [vmem:[%s628 + $0x110] sm:$0xff]
        %v874 = vld [vmem:[%s628 + $0x118] sm:$0xff]
        %v875 = vld [vmem:[%s628 + $0x120] sm:$0xff]
        %v876 = vld [vmem:[%s628 + $0x128] sm:$0xff]
        %v877 = vld [vmem:[%s628 + $0x130] sm:$0xff]
        %v878 = vld [vmem:[%s628 + $0x138] sm:$0xff]
        %v879 = vld [vmem:[%s628 + $0x140] sm:$0xff]
        %v880 = vld [vmem:[%s628 + $0x148] sm:$0xff]
        %v881 = vld [vmem:[%s628 + $0x150] sm:$0xff]
        %v882 = vld [vmem:[%s628 + $0x158] sm:$0xff]
        %v883 = vld [vmem:[%s628 + $0x160] sm:$0xff]
        %v884 = vld [vmem:[%s628 + $0x168] sm:$0xff]
        %v885 = vld [vmem:[%s628 + $0x170] sm:$0xff]
        %v886 = vld [vmem:[%s628 + $0x178] sm:$0xff]
        %v887 = vld [vmem:[%s747] sm:$0x7]
        %v889 = vperm.slane %v887, 0
        %v890 = vperm.slane %v887, 1
        %v891 = vperm.slane %v887, 2
        %895 = vmatpush.msra.mxu0 %v884
        %896 = vmatpush.msra.mxu0 %v881
        %897 = vmatpush.msra.mxu0 %v878
        %898 = vmatpush.msra.mxu0 %v875
        %899 = vmatpush.msra.mxu0 %v872
        %900 = vmatpush.msra.mxu0 %v869
        %901 = vmatpush.msra.mxu0 %v866
        %902 = vmatpush.msra.mxu0 %v863
        %903 = vmatpush.msra.mxu0 %v860
        %904 = vmatpush.msra.mxu0 %v857
        %905 = vmatpush.msra.mxu0 %v854
        %906 = vmatpush.msra.mxu0 %v851
        %907 = vmatpush.msra.mxu0 %v848
        %908 = vmatpush.msra.mxu0 %v845
        %909 = vmatpush.msra.mxu0 %v842
        %910 = vmatpush.msra.mxu0 %v839
        %911 = vmatmul.f32.gmra.mxu0 %v837
        %v912 = vpop.f32.mrf.mxu0
        %v913 = vadd.f32 %v889, %v912
        %914 = vmatmul.f32.gmra.mxu0 %v838
        %v915 = vpop.f32.mrf.mxu0
        %v916 = vadd.f32 %v889, %v915
        %917 = vdwg.mxu0
        %918 = vmatpush.msra.mxu0 %v885
        %919 = vmatpush.msra.mxu0 %v882
        %920 = vmatpush.msra.mxu0 %v879
        %921 = vmatpush.msra.mxu0 %v876
        %922 = vmatpush.msra.mxu0 %v873
        %923 = vmatpush.msra.mxu0 %v870
        %924 = vmatpush.msra.mxu0 %v867
        %925 = vmatpush.msra.mxu0 %v864
        %926 = vmatpush.msra.mxu0 %v861
        %927 = vmatpush.msra.mxu0 %v858
        %928 = vmatpush.msra.mxu0 %v855
        %929 = vmatpush.msra.mxu0 %v852
        %930 = vmatpush.msra.mxu0 %v849
        %931 = vmatpush.msra.mxu0 %v846
        %932 = vmatpush.msra.mxu0 %v843
        %933 = vmatpush.msra.mxu0 %v840
        %934 = vmatmul.f32.gmra.mxu0 %v837
        %v935 = vpop.f32.mrf.mxu0
        %v936 = vadd.f32 %v890, %v935
        %937 = vmatmul.f32.gmra.mxu0 %v838
        %v938 = vpop.f32.mrf.mxu0
        %v939 = vadd.f32 %v890, %v938
        %940 = vdwg.mxu0
        %941 = vmatpush.msra.mxu0 %v886
        %942 = vmatpush.msra.mxu0 %v883
        %943 = vmatpush.msra.mxu0 %v880
        %944 = vmatpush.msra.mxu0 %v877
        %945 = vmatpush.msra.mxu0 %v874
        %946 = vmatpush.msra.mxu0 %v871
        %947 = vmatpush.msra.mxu0 %v868
        %948 = vmatpush.msra.mxu0 %v865
        %949 = vmatpush.msra.mxu0 %v862
        %950 = vmatpush.msra.mxu0 %v859
        %951 = vmatpush.msra.mxu0 %v856
        %952 = vmatpush.msra.mxu0 %v853
        %953 = vmatpush.msra.mxu0 %v850
        %954 = vmatpush.msra.mxu0 %v847
        %955 = vmatpush.msra.mxu0 %v844
        %956 = vmatpush.msra.mxu0 %v841
        %957 = vmatmul.f32.gmra.mxu0 %v837
        %v958 = vpop.f32.mrf.mxu0
        %v959 = vadd.f32 %v891, %v958
        %960 = vmatmul.f32.gmra.mxu0 %v838
        %v961 = vpop.f32.mrf.mxu0
        %v962 = vadd.f32 %v891, %v961
        %963 = vdwg.mxu0
        %v964 = vld [vmem:[%s3] sm:$0x3]
        %vm965 = vcmask 523264
        %v967 = vsel %vm965, %v913, 0
        %v970 = vsel %vm965, %v936, 0
        %972 = vmatpush.xpose.msra.mxu0 0.0
        %973 = vmatpush.xpose.msra.mxu0 0.0
        %974 = vmatpush.xpose.msra.mxu0 0.0
        %975 = vmatpush.xpose.msra.mxu0 0.0
        %976 = vmatpush.xpose.msra.mxu0 0.0
        %977 = vmatpush.xpose.msra.mxu0 0.0
        %978 = vmatpush.xpose.msra.mxu0 0.0
        %979 = vmatpush.xpose.msra.mxu0 0.0
        %980 = vmatpush.xpose.msra.mxu0 0.0
        %981 = vmatpush.xpose.msra.mxu0 0.0
        %982 = vmatpush.xpose.msra.mxu0 0.0
        %983 = vmatpush.xpose.msra.mxu0 0.0
        %984 = vmatpush.xpose.msra.mxu0 0.0
        %985 = vmatpush.xpose.msra.mxu0 0.0
        %986 = vmatpush.xpose.msra.mxu0 0.0
        %987 = vmatpush.xpose.msra.mxu0 %v970
        %988 = vmatmul.f32.gmra.mxu0 %v967
        %v989 = vpop.f32.mrf.mxu0
        %v990 = vadd.f32 0.0, %v989
        %991 = vdwg.mxu0
        %v992 = vmul.f32 %v990, 0.125
        %v993 = vperm.slane %v964, 0
        %v994 = vadd.f32 %v992, %v993
        %vm995 = vcmask 64512
        %v996 = vsel %vm995, %v994, -inf
        %997 = vmax.xlane.f32.xlu0 %v996
        %v998 = vpop.xlane.xlu0 %997
        %v999 = vsub.f32 %v994, %v998
        %v1000 = vmul.f32 %v999, 1.442695
        %v1001 = vpow.pop %v1000
        %v1002 = vsel %vm995, %v1001, 0.0
        %1003 = vadd.xlane.f32.xlu0 %v1002
        %v1004 = vpop.xlane.xlu0 %1003
        %v1005 = vrcp.pop %v1004
        %v1006 = vmul.f32 %v1004, %v1005
        %v1007 = vsub.f32 1.0, %v1006
        %v1008 = vmul.f32 %v1005, %v1007
        %v1009 = vadd.f32 %v1005, %v1008
        %vm1010 = vweird.f32 %v1004
        %vm1011 = vweird.f32 %v1005
        %vm1012 = vmor %vm1010, %vm1011
        %v1013 = vsel %vm1012, %v1005, %v1009
        %v1014 = vand.u32 2147483647, %v1004
        %vm1015 = vcmp.eq.f32.partialorder %v1014, 8.507059e+37
        %v1016 = vand.u32 %v1004, 2147483648
        %v1017 = vor.u32 1.1754944e-38, %v1016
        %v1018 = vsel %vm1015, %v1017, %v1013
        %v1019 = vmul.f32 %v1001, %v1018
        %v1021 = vsel %vm995, %v1019, 0
        %1023 = vmatpush.msra.mxu0 0.0
        %1024 = vmatpush.msra.mxu0 0.0
        %1025 = vmatpush.msra.mxu0 0.0
        %1026 = vmatpush.msra.mxu0 0.0
        %1027 = vmatpush.msra.mxu0 0.0
        %1028 = vmatpush.msra.mxu0 0.0
        %1029 = vmatpush.msra.mxu0 0.0
        %1030 = vmatpush.msra.mxu0 0.0
        %1031 = vmatpush.msra.mxu0 0.0
        %1032 = vmatpush.msra.mxu0 0.0
        %1033 = vmatpush.msra.mxu0 0.0
        %1034 = vmatpush.msra.mxu0 0.0
        %1035 = vmatpush.msra.mxu0 0.0
        %1036 = vmatpush.msra.mxu0 0.0
        %1037 = vmatpush.msra.mxu0 0.0
        %1038 = vmatpush.msra.mxu0 %v959
        %1039 = vmatmul.f32.gmra.mxu0 %v1021
        %v1040 = vpop.f32.mrf.mxu0
        %v1041 = vadd.f32 0.0, %v1040
        %1042 = vdwg.mxu0
        %1043 = vst.msk [vmem:[#allocation2] sm:$0xff] %vm965, %v1041
        %1044 = vrot.lane.b32.xlu0 %v913, 64
        %v1045 = vpop.permute.xlu0 %1044
        %1046 = vrot.lane.b32.xlu0 %v936, 64
        %v1047 = vpop.permute.xlu0 %1046
        %v1048 = vsel %vm965, %v1045, 0
        %v1050 = vsel %vm965, %v1047, 0
        %1052 = vmatpush.xpose.msra.mxu0 0.0
        %1053 = vmatpush.xpose.msra.mxu0 0.0
        %1054 = vmatpush.xpose.msra.mxu0 0.0
        %1055 = vmatpush.xpose.msra.mxu0 0.0
        %1056 = vmatpush.xpose.msra.mxu0 0.0
        %1057 = vmatpush.xpose.msra.mxu0 0.0
        %1058 = vmatpush.xpose.msra.mxu0 0.0
        %1059 = vmatpush.xpose.msra.mxu0 0.0
        %1060 = vmatpush.xpose.msra.mxu0 0.0
        %1061 = vmatpush.xpose.msra.mxu0 0.0
        %1062 = vmatpush.xpose.msra.mxu0 0.0
        %1063 = vmatpush.xpose.msra.mxu0 0.0
        %1064 = vmatpush.xpose.msra.mxu0 0.0
        %1065 = vmatpush.xpose.msra.mxu0 0.0
        %1066 = vmatpush.xpose.msra.mxu0 0.0
        %1067 = vmatpush.xpose.msra.mxu0 %v1050
        %1068 = vmatmul.f32.gmra.mxu0 %v1048
        %v1069 = vpop.f32.mrf.mxu0
        %v1070 = vadd.f32 0.0, %v1069
        %1071 = vdwg.mxu0
        %v1072 = vmul.f32 %v1070, 0.125
        %v1073 = vadd.f32 %v1072, %v993
        %v1074 = vsel %vm995, %v1073, -inf
        %1075 = vmax.xlane.f32.xlu0 %v1074
        %v1076 = vpop.xlane.xlu0 %1075
        %v1077 = vsub.f32 %v1073, %v1076
        %v1078 = vmul.f32 %v1077, 1.442695
        %v1079 = vpow.pop %v1078
        %v1080 = vsel %vm995, %v1079, 0.0
        %1081 = vadd.xlane.f32.xlu0 %v1080
        %v1082 = vpop.xlane.xlu0 %1081
        %v1083 = vrcp.pop %v1082
        %v1084 = vmul.f32 %v1082, %v1083
        %v1085 = vsub.f32 1.0, %v1084
        %v1086 = vmul.f32 %v1083, %v1085
        %v1087 = vadd.f32 %v1083, %v1086
        %vm1088 = vweird.f32 %v1082
        %vm1089 = vweird.f32 %v1083
        %vm1090 = vmor %vm1088, %vm1089
        %v1091 = vsel %vm1090, %v1083, %v1087
        %v1092 = vand.u32 2147483647, %v1082
        %vm1093 = vcmp.eq.f32.partialorder %v1092, 8.507059e+37
        %v1094 = vand.u32 %v1082, 2147483648
        %v1095 = vor.u32 1.1754944e-38, %v1094
        %v1096 = vsel %vm1093, %v1095, %v1091
        %v1097 = vmul.f32 %v1079, %v1096
        %1099 = vrot.lane.b32.xlu0 %v959, 64
        %v1100 = vpop.permute.xlu0 %1099
        %v1103 = vsel %vm995, %v1097, 0
        %1105 = vmatpush.msra.mxu0 0.0
        %1106 = vmatpush.msra.mxu0 0.0
        %1107 = vmatpush.msra.mxu0 0.0
        %1108 = vmatpush.msra.mxu0 0.0
        %1109 = vmatpush.msra.mxu0 0.0
        %1110 = vmatpush.msra.mxu0 0.0
        %1111 = vmatpush.msra.mxu0 0.0
        %1112 = vmatpush.msra.mxu0 0.0
        %1113 = vmatpush.msra.mxu0 0.0
        %1114 = vmatpush.msra.mxu0 0.0
        %1115 = vmatpush.msra.mxu0 0.0
        %1116 = vmatpush.msra.mxu0 0.0
        %1117 = vmatpush.msra.mxu0 0.0
        %1118 = vmatpush.msra.mxu0 0.0
        %1119 = vmatpush.msra.mxu0 0.0
        %1120 = vmatpush.msra.mxu0 %v1100
        %1121 = vmatmul.f32.gmra.mxu0 %v1103
        %v1122 = vpop.f32.mrf.mxu0
        %v1123 = vadd.f32 0.0, %v1122
        %1124 = vdwg.mxu0
        %1126 = vrot.lane.b32.xlu0 %v1123, 64
        %v1127 = vpop.permute.xlu0 %1126
        %vm1129 = vcmask 1048064
        %1130 = vst.msk [vmem:[#allocation2] sm:$0xff] %vm1129, %v1127
        %v1132 = vsel %vm965, %v916, 0
        %v1135 = vsel %vm965, %v939, 0
        %1137 = vmatpush.xpose.msra.mxu0 0.0
        %1138 = vmatpush.xpose.msra.mxu0 0.0
        %1139 = vmatpush.xpose.msra.mxu0 0.0
        %1140 = vmatpush.xpose.msra.mxu0 0.0
        %1141 = vmatpush.xpose.msra.mxu0 0.0
        %1142 = vmatpush.xpose.msra.mxu0 0.0
        %1143 = vmatpush.xpose.msra.mxu0 0.0
        %1144 = vmatpush.xpose.msra.mxu0 0.0
        %1145 = vmatpush.xpose.msra.mxu0 0.0
        %1146 = vmatpush.xpose.msra.mxu0 0.0
        %1147 = vmatpush.xpose.msra.mxu0 0.0
        %1148 = vmatpush.xpose.msra.mxu0 0.0
        %1149 = vmatpush.xpose.msra.mxu0 0.0
        %1150 = vmatpush.xpose.msra.mxu0 0.0
        %1151 = vmatpush.xpose.msra.mxu0 0.0
        %1152 = vmatpush.xpose.msra.mxu0 %v1135
        %1153 = vmatmul.f32.gmra.mxu0 %v1132
        %v1154 = vpop.f32.mrf.mxu0
        %v1155 = vadd.f32 0.0, %v1154
        %1156 = vdwg.mxu0
        %v1157 = vmul.f32 %v1155, 0.125
        %v1158 = vperm.slane %v964, 1
        %v1159 = vadd.f32 %v1157, %v1158
        %v1160 = vsel %vm995, %v1159, -inf
        %1161 = vmax.xlane.f32.xlu0 %v1160
        %v1162 = vpop.xlane.xlu0 %1161
        %v1163 = vsub.f32 %v1159, %v1162
        %v1164 = vmul.f32 %v1163, 1.442695
        %v1165 = vpow.pop %v1164
        %v1166 = vsel %vm995, %v1165, 0.0
        %1167 = vadd.xlane.f32.xlu0 %v1166
        %v1168 = vpop.xlane.xlu0 %1167
        %v1169 = vrcp.pop %v1168
        %v1170 = vmul.f32 %v1168, %v1169
        %v1171 = vsub.f32 1.0, %v1170
        %v1172 = vmul.f32 %v1169, %v1171
        %v1173 = vadd.f32 %v1169, %v1172
        %vm1174 = vweird.f32 %v1168
        %vm1175 = vweird.f32 %v1169
        %vm1176 = vmor %vm1174, %vm1175
        %v1177 = vsel %vm1176, %v1169, %v1173
        %v1178 = vand.u32 2147483647, %v1168
        %vm1179 = vcmp.eq.f32.partialorder %v1178, 8.507059e+37
        %v1180 = vand.u32 %v1168, 2147483648
        %v1181 = vor.u32 1.1754944e-38, %v1180
        %v1182 = vsel %vm1179, %v1181, %v1177
        %v1183 = vmul.f32 %v1165, %v1182
        %v1185 = vsel %vm995, %v1183, 0
        %1187 = vmatpush.msra.mxu0 0.0
        %1188 = vmatpush.msra.mxu0 0.0
        %1189 = vmatpush.msra.mxu0 0.0
        %1190 = vmatpush.msra.mxu0 0.0
        %1191 = vmatpush.msra.mxu0 0.0
        %1192 = vmatpush.msra.mxu0 0.0
        %1193 = vmatpush.msra.mxu0 0.0
        %1194 = vmatpush.msra.mxu0 0.0
        %1195 = vmatpush.msra.mxu0 0.0
        %1196 = vmatpush.msra.mxu0 0.0
        %1197 = vmatpush.msra.mxu0 0.0
        %1198 = vmatpush.msra.mxu0 0.0
        %1199 = vmatpush.msra.mxu0 0.0
        %1200 = vmatpush.msra.mxu0 0.0
        %1201 = vmatpush.msra.mxu0 0.0
        %1202 = vmatpush.msra.mxu0 %v962
        %1203 = vmatmul.f32.gmra.mxu0 %v1185
        %v1204 = vpop.f32.mrf.mxu0
        %v1205 = vadd.f32 0.0, %v1204
        %1206 = vdwg.mxu0
        %1207 = vst.msk [vmem:[#allocation2 + $0x8] sm:$0xff] %vm965, %v1205
        %1208 = vrot.lane.b32.xlu0 %v916, 64
        %v1209 = vpop.permute.xlu0 %1208
        %1210 = vrot.lane.b32.xlu0 %v939, 64
        %v1211 = vpop.permute.xlu0 %1210
        %v1212 = vsel %vm965, %v1209, 0
        %v1214 = vsel %vm965, %v1211, 0
        %1216 = vmatpush.xpose.msra.mxu0 0.0
        %1217 = vmatpush.xpose.msra.mxu0 0.0
        %1218 = vmatpush.xpose.msra.mxu0 0.0
        %1219 = vmatpush.xpose.msra.mxu0 0.0
        %1220 = vmatpush.xpose.msra.mxu0 0.0
        %1221 = vmatpush.xpose.msra.mxu0 0.0
        %1222 = vmatpush.xpose.msra.mxu0 0.0
        %1223 = vmatpush.xpose.msra.mxu0 0.0
        %1224 = vmatpush.xpose.msra.mxu0 0.0
        %1225 = vmatpush.xpose.msra.mxu0 0.0
        %1226 = vmatpush.xpose.msra.mxu0 0.0
        %1227 = vmatpush.xpose.msra.mxu0 0.0
        %1228 = vmatpush.xpose.msra.mxu0 0.0
        %1229 = vmatpush.xpose.msra.mxu0 0.0
        %1230 = vmatpush.xpose.msra.mxu0 0.0
        %1231 = vmatpush.xpose.msra.mxu0 %v1214
        %1232 = vmatmul.f32.gmra.mxu0 %v1212
        %v1233 = vpop.f32.mrf.mxu0
        %v1234 = vadd.f32 0.0, %v1233
        %1235 = vdwg.mxu0
        %v1236 = vmul.f32 %v1234, 0.125
        %v1237 = vadd.f32 %v1236, %v1158
        %v1238 = vsel %vm995, %v1237, -inf
        %1239 = vmax.xlane.f32.xlu0 %v1238
        %v1240 = vpop.xlane.xlu0 %1239
        %v1241 = vsub.f32 %v1237, %v1240
        %v1242 = vmul.f32 %v1241, 1.442695
        %v1243 = vpow.pop %v1242
        %v1244 = vsel %vm995, %v1243, 0.0
        %1245 = vadd.xlane.f32.xlu0 %v1244
        %v1246 = vpop.xlane.xlu0 %1245
        %v1247 = vrcp.pop %v1246
        %v1248 = vmul.f32 %v1246, %v1247
        %v1249 = vsub.f32 1.0, %v1248
        %v1250 = vmul.f32 %v1247, %v1249
        %v1251 = vadd.f32 %v1247, %v1250
        %vm1252 = vweird.f32 %v1246
        %vm1253 = vweird.f32 %v1247
        %vm1254 = vmor %vm1252, %vm1253
        %v1255 = vsel %vm1254, %v1247, %v1251
        %v1256 = vand.u32 2147483647, %v1246
        %vm1257 = vcmp.eq.f32.partialorder %v1256, 8.507059e+37
        %v1258 = vand.u32 %v1246, 2147483648
        %v1259 = vor.u32 1.1754944e-38, %v1258
        %v1260 = vsel %vm1257, %v1259, %v1255
        %v1261 = vmul.f32 %v1243, %v1260
        %1263 = vrot.lane.b32.xlu0 %v962, 64
        %v1264 = vpop.permute.xlu0 %1263
        %v1267 = vsel %vm995, %v1261, 0
        %1269 = vmatpush.msra.mxu0 0.0
        %1270 = vmatpush.msra.mxu0 0.0
        %1271 = vmatpush.msra.mxu0 0.0
        %1272 = vmatpush.msra.mxu0 0.0
        %1273 = vmatpush.msra.mxu0 0.0
        %1274 = vmatpush.msra.mxu0 0.0
        %1275 = vmatpush.msra.mxu0 0.0
        %1276 = vmatpush.msra.mxu0 0.0
        %1277 = vmatpush.msra.mxu0 0.0
        %1278 = vmatpush.msra.mxu0 0.0
        %1279 = vmatpush.msra.mxu0 0.0
        %1280 = vmatpush.msra.mxu0 0.0
        %1281 = vmatpush.msra.mxu0 0.0
        %1282 = vmatpush.msra.mxu0 0.0
        %1283 = vmatpush.msra.mxu0 0.0
        %1284 = vmatpush.msra.mxu0 %v1264
        %1285 = vmatmul.f32.gmra.mxu0 %v1267
        %v1286 = vpop.f32.mrf.mxu0
        %v1287 = vadd.f32 0.0, %v1286
        %1288 = vdwg.mxu0
        %1290 = vrot.lane.b32.xlu0 %v1287, 64
        %v1291 = vpop.permute.xlu0 %1290
        %1293 = vst.msk [vmem:[#allocation2 + $0x8] sm:$0xff] %vm1129, %v1291
        %v1294 = vld [vmem:[#allocation2] sm:$0xff]
        %v1295 = vld [vmem:[#allocation2 + $0x8] sm:$0xff]
        %v1296 = vld [vmem:[%s638] sm:$0xff]
        %v1297 = vld [vmem:[%s638 + $0x8] sm:$0xff]
        %v1298 = vld [vmem:[%s638 + $0x10] sm:$0xff]
        %v1299 = vld [vmem:[%s638 + $0x18] sm:$0xff]
        %v1300 = vld [vmem:[%s638 + $0x20] sm:$0xff]
        %v1301 = vld [vmem:[%s638 + $0x28] sm:$0xff]
        %v1302 = vld [vmem:[%s638 + $0x30] sm:$0xff]
        %v1303 = vld [vmem:[%s638 + $0x38] sm:$0xff]
        %v1304 = vld [vmem:[%s638 + $0x40] sm:$0xff]
        %v1305 = vld [vmem:[%s638 + $0x48] sm:$0xff]
        %v1306 = vld [vmem:[%s638 + $0x50] sm:$0xff]
        %v1307 = vld [vmem:[%s638 + $0x58] sm:$0xff]
        %v1308 = vld [vmem:[%s638 + $0x60] sm:$0xff]
        %v1309 = vld [vmem:[%s638 + $0x68] sm:$0xff]
        %v1310 = vld [vmem:[%s638 + $0x70] sm:$0xff]
        %v1311 = vld [vmem:[%s638 + $0x78] sm:$0xff]
        %v1312 = vld [vmem:[%s750] sm:$0x1]
        %v1314 = vperm.slane %v1312, 0
        %1316 = vmatpush.msra.mxu0 %v1311
        %1317 = vmatpush.msra.mxu0 %v1310
        %1318 = vmatpush.msra.mxu0 %v1309
        %1319 = vmatpush.msra.mxu0 %v1308
        %1320 = vmatpush.msra.mxu0 %v1307
        %1321 = vmatpush.msra.mxu0 %v1306
        %1322 = vmatpush.msra.mxu0 %v1305
        %1323 = vmatpush.msra.mxu0 %v1304
        %1324 = vmatpush.msra.mxu0 %v1303
        %1325 = vmatpush.msra.mxu0 %v1302
        %1326 = vmatpush.msra.mxu0 %v1301
        %1327 = vmatpush.msra.mxu0 %v1300
        %1328 = vmatpush.msra.mxu0 %v1299
        %1329 = vmatpush.msra.mxu0 %v1298
        %1330 = vmatpush.msra.mxu0 %v1297
        %1331 = vmatpush.msra.mxu0 %v1296
        %1332 = vmatmul.f32.gmra.mxu0 %v1294
        %v1333 = vpop.f32.mrf.mxu0
        %v1334 = vadd.f32 %v1314, %v1333
        %1335 = vmatmul.f32.gmra.mxu0 %v1295
        %v1336 = vpop.f32.mrf.mxu0
        %v1337 = vadd.f32 %v1314, %v1336
        %1338 = vdwg.mxu0
        %v1339 = vadd.f32 %v1334, %v837
        %v1340 = vadd.f32 %v1337, %v838
        %v1341 = vld [vmem:[%s753] sm:$0x1]
        %v1342 = vld [vmem:[%s756] sm:$0x1]
        %1343 = vadd.xlane.f32.xlu0 %v1339
        %v1344 = vpop.xlane.xlu0 %1343
        %1345 = vadd.xlane.f32.xlu0 %v1340
        %v1346 = vpop.xlane.xlu0 %1345
        %v1347 = vrcp.pop 128.0
        %v1348 = vmul.f32 128.0, %v1347
        %v1349 = vsub.f32 1.0, %v1348
        %v1350 = vmul.f32 %v1347, %v1349
        %v1351 = vadd.f32 %v1347, %v1350
        %vm1352 = vweird.f32 %v1347
        %v1353 = vsel %vm1352, %v1347, %v1351
        %v1354 = vmul.f32 %v1344, %v1353
        %v1355 = vmul.f32 %v1346, %v1353
        %v1356 = vsub.f32 %v1339, %v1354
        %v1357 = vsub.f32 %v1340, %v1355
        %v1358 = vmul.f32 %v1356, %v1356
        %v1359 = vmul.f32 %v1357, %v1357
        %1360 = vadd.xlane.f32.xlu0 %v1358
        %v1361 = vpop.xlane.xlu0 %1360
        %1362 = vadd.xlane.f32.xlu0 %v1359
        %v1363 = vpop.xlane.xlu0 %1362
        %v1364 = vmul.f32 %v1361, %v1353
        %v1365 = vmul.f32 %v1363, %v1353
        %v1366 = vadd.f32 %v1364, 1e-12
        %v1367 = vadd.f32 %v1365, 1e-12
        %v1368 = vrsqrt.pop %v1366
        %v1369 = vmul.f32 %v1368, %v1366
        %v1370 = vmul.f32 %v1369, %v1368
        %v1371 = vmul.f32 0.5, %v1370
        %v1372 = vsub.f32 1.5, %v1371
        %v1373 = vmul.f32 %v1368, %v1372
        %vm1374 = vweird.f32 %v1366
        %vm1375 = vweird.f32 %v1368
        %vm1376 = vmor %vm1374, %vm1375
        %v1377 = vsel %vm1376, %v1368, %v1373
        %v1378 = vrsqrt.pop %v1367
        %v1379 = vmul.f32 %v1378, %v1367
        %v1380 = vmul.f32 %v1379, %v1378
        %v1381 = vmul.f32 0.5, %v1380
        %v1382 = vsub.f32 1.5, %v1381
        %v1383 = vmul.f32 %v1378, %v1382
        %vm1384 = vweird.f32 %v1367
        %vm1385 = vweird.f32 %v1378
        %vm1386 = vmor %vm1384, %vm1385
        %v1387 = vsel %vm1386, %v1378, %v1383
        %v1388 = vmul.f32 %v1356, %v1377
        %v1389 = vmul.f32 %v1357, %v1387
        %v1391 = vperm.slane %v1341, 0
        %v1393 = vmul.f32 %v1388, %v1391
        %v1394 = vmul.f32 %v1389, %v1391
        %v1396 = vperm.slane %v1342, 0
        %v1398 = vadd.f32 %v1393, %v1396
        %v1399 = vadd.f32 %v1394, %v1396
        %v1400 = vld [vmem:[%s648] sm:$0xff]
        %v1401 = vld [vmem:[%s648 + $0x8] sm:$0xff]
        %v1402 = vld [vmem:[%s648 + $0x10] sm:$0xff]
        %v1403 = vld [vmem:[%s648 + $0x18] sm:$0xff]
        %v1404 = vld [vmem:[%s648 + $0x20] sm:$0xff]
        %v1405 = vld [vmem:[%s648 + $0x28] sm:$0xff]
        %v1406 = vld [vmem:[%s648 + $0x30] sm:$0xff]
        %v1407 = vld [vmem:[%s648 + $0x38] sm:$0xff]
        %v1408 = vld [vmem:[%s648 + $0x40] sm:$0xff]
        %v1409 = vld [vmem:[%s648 + $0x48] sm:$0xff]
        %v1410 = vld [vmem:[%s648 + $0x50] sm:$0xff]
        %v1411 = vld [vmem:[%s648 + $0x58] sm:$0xff]
        %v1412 = vld [vmem:[%s648 + $0x60] sm:$0xff]
        %v1413 = vld [vmem:[%s648 + $0x68] sm:$0xff]
        %v1414 = vld [vmem:[%s648 + $0x70] sm:$0xff]
        %v1415 = vld [vmem:[%s648 + $0x78] sm:$0xff]
        %v1416 = vld [vmem:[%s648 + $0x80] sm:$0xff]
        %v1417 = vld [vmem:[%s648 + $0x88] sm:$0xff]
        %v1418 = vld [vmem:[%s648 + $0x90] sm:$0xff]
        %v1419 = vld [vmem:[%s648 + $0x98] sm:$0xff]
        %v1420 = vld [vmem:[%s648 + $0xa0] sm:$0xff]
        %v1421 = vld [vmem:[%s648 + $0xa8] sm:$0xff]
        %v1422 = vld [vmem:[%s648 + $0xb0] sm:$0xff]
        %v1423 = vld [vmem:[%s648 + $0xb8] sm:$0xff]
        %v1424 = vld [vmem:[%s648 + $0xc0] sm:$0xff]
        %v1425 = vld [vmem:[%s648 + $0xc8] sm:$0xff]
        %v1426 = vld [vmem:[%s648 + $0xd0] sm:$0xff]
        %v1427 = vld [vmem:[%s648 + $0xd8] sm:$0xff]
        %v1428 = vld [vmem:[%s648 + $0xe0] sm:$0xff]
        %v1429 = vld [vmem:[%s648 + $0xe8] sm:$0xff]
        %v1430 = vld [vmem:[%s648 + $0xf0] sm:$0xff]
        %v1431 = vld [vmem:[%s648 + $0xf8] sm:$0xff]
        %v1432 = vld [vmem:[%s648 + $0x100] sm:$0xff]
        %v1433 = vld [vmem:[%s648 + $0x108] sm:$0xff]
        %v1434 = vld [vmem:[%s648 + $0x110] sm:$0xff]
        %v1435 = vld [vmem:[%s648 + $0x118] sm:$0xff]
        %v1436 = vld [vmem:[%s648 + $0x120] sm:$0xff]
        %v1437 = vld [vmem:[%s648 + $0x128] sm:$0xff]
        %v1438 = vld [vmem:[%s648 + $0x130] sm:$0xff]
        %v1439 = vld [vmem:[%s648 + $0x138] sm:$0xff]
        %v1440 = vld [vmem:[%s648 + $0x140] sm:$0xff]
        %v1441 = vld [vmem:[%s648 + $0x148] sm:$0xff]
        %v1442 = vld [vmem:[%s648 + $0x150] sm:$0xff]
        %v1443 = vld [vmem:[%s648 + $0x158] sm:$0xff]
        %v1444 = vld [vmem:[%s648 + $0x160] sm:$0xff]
        %v1445 = vld [vmem:[%s648 + $0x168] sm:$0xff]
        %v1446 = vld [vmem:[%s648 + $0x170] sm:$0xff]
        %v1447 = vld [vmem:[%s648 + $0x178] sm:$0xff]
        %v1448 = vld [vmem:[%s648 + $0x180] sm:$0xff]
        %v1449 = vld [vmem:[%s648 + $0x188] sm:$0xff]
        %v1450 = vld [vmem:[%s648 + $0x190] sm:$0xff]
        %v1451 = vld [vmem:[%s648 + $0x198] sm:$0xff]
        %v1452 = vld [vmem:[%s648 + $0x1a0] sm:$0xff]
        %v1453 = vld [vmem:[%s648 + $0x1a8] sm:$0xff]
        %v1454 = vld [vmem:[%s648 + $0x1b0] sm:$0xff]
        %v1455 = vld [vmem:[%s648 + $0x1b8] sm:$0xff]
        %v1456 = vld [vmem:[%s648 + $0x1c0] sm:$0xff]
        %v1457 = vld [vmem:[%s648 + $0x1c8] sm:$0xff]
        %v1458 = vld [vmem:[%s648 + $0x1d0] sm:$0xff]
        %v1459 = vld [vmem:[%s648 + $0x1d8] sm:$0xff]
        %v1460 = vld [vmem:[%s648 + $0x1e0] sm:$0xff]
        %v1461 = vld [vmem:[%s648 + $0x1e8] sm:$0xff]
        %v1462 = vld [vmem:[%s648 + $0x1f0] sm:$0xff]
        %v1463 = vld [vmem:[%s648 + $0x1f8] sm:$0xff]
        %v1464 = vld [vmem:[%s760] sm:$0xf]
        %v1466 = vperm.slane %v1464, 0
        %v1467 = vperm.slane %v1464, 1
        %v1468 = vperm.slane %v1464, 2
        %v1469 = vperm.slane %v1464, 3
        %1474 = vmatpush.msra.mxu0 %v1460
        %1475 = vmatpush.msra.mxu0 %v1456
        %1476 = vmatpush.msra.mxu0 %v1452
        %1477 = vmatpush.msra.mxu0 %v1448
        %1478 = vmatpush.msra.mxu0 %v1444
        %1479 = vmatpush.msra.mxu0 %v1440
        %1480 = vmatpush.msra.mxu0 %v1436
        %1481 = vmatpush.msra.mxu0 %v1432
        %1482 = vmatpush.msra.mxu0 %v1428
        %1483 = vmatpush.msra.mxu0 %v1424
        %1484 = vmatpush.msra.mxu0 %v1420
        %1485 = vmatpush.msra.mxu0 %v1416
        %1486 = vmatpush.msra.mxu0 %v1412
        %1487 = vmatpush.msra.mxu0 %v1408
        %1488 = vmatpush.msra.mxu0 %v1404
        %1489 = vmatpush.msra.mxu0 %v1400
        %1490 = vmatmul.f32.gmra.mxu0 %v1398
        %v1491 = vpop.f32.mrf.mxu0
        %v1492 = vadd.f32 %v1466, %v1491
        %1493 = vmatmul.f32.gmra.mxu0 %v1399
        %v1494 = vpop.f32.mrf.mxu0
        %v1495 = vadd.f32 %v1466, %v1494
        %1496 = vdwg.mxu0
        %1497 = vmatpush.msra.mxu0 %v1461
        %1498 = vmatpush.msra.mxu0 %v1457
        %1499 = vmatpush.msra.mxu0 %v1453
        %1500 = vmatpush.msra.mxu0 %v1449
        %1501 = vmatpush.msra.mxu0 %v1445
        %1502 = vmatpush.msra.mxu0 %v1441
        %1503 = vmatpush.msra.mxu0 %v1437
        %1504 = vmatpush.msra.mxu0 %v1433
        %1505 = vmatpush.msra.mxu0 %v1429
        %1506 = vmatpush.msra.mxu0 %v1425
        %1507 = vmatpush.msra.mxu0 %v1421
        %1508 = vmatpush.msra.mxu0 %v1417
        %1509 = vmatpush.msra.mxu0 %v1413
        %1510 = vmatpush.msra.mxu0 %v1409
        %1511 = vmatpush.msra.mxu0 %v1405
        %1512 = vmatpush.msra.mxu0 %v1401
        %1513 = vmatmul.f32.gmra.mxu0 %v1398
        %v1514 = vpop.f32.mrf.mxu0
        %v1515 = vadd.f32 %v1467, %v1514
        %1516 = vmatmul.f32.gmra.mxu0 %v1399
        %v1517 = vpop.f32.mrf.mxu0
        %v1518 = vadd.f32 %v1467, %v1517
        %1519 = vdwg.mxu0
        %1520 = vmatpush.msra.mxu0 %v1462
        %1521 = vmatpush.msra.mxu0 %v1458
        %1522 = vmatpush.msra.mxu0 %v1454
        %1523 = vmatpush.msra.mxu0 %v1450
        %1524 = vmatpush.msra.mxu0 %v1446
        %1525 = vmatpush.msra.mxu0 %v1442
        %1526 = vmatpush.msra.mxu0 %v1438
        %1527 = vmatpush.msra.mxu0 %v1434
        %1528 = vmatpush.msra.mxu0 %v1430
        %1529 = vmatpush.msra.mxu0 %v1426
        %1530 = vmatpush.msra.mxu0 %v1422
        %1531 = vmatpush.msra.mxu0 %v1418
        %1532 = vmatpush.msra.mxu0 %v1414
        %1533 = vmatpush.msra.mxu0 %v1410
        %1534 = vmatpush.msra.mxu0 %v1406
        %1535 = vmatpush.msra.mxu0 %v1402
        %1536 = vmatmul.f32.gmra.mxu0 %v1398
        %v1537 = vpop.f32.mrf.mxu0
        %v1538 = vadd.f32 %v1468, %v1537
        %1539 = vmatmul.f32.gmra.mxu0 %v1399
        %v1540 = vpop.f32.mrf.mxu0
        %v1541 = vadd.f32 %v1468, %v1540
        %1542 = vdwg.mxu0
        %1543 = vmatpush.msra.mxu0 %v1463
        %1544 = vmatpush.msra.mxu0 %v1459
        %1545 = vmatpush.msra.mxu0 %v1455
        %1546 = vmatpush.msra.mxu0 %v1451
        %1547 = vmatpush.msra.mxu0 %v1447
        %1548 = vmatpush.msra.mxu0 %v1443
        %1549 = vmatpush.msra.mxu0 %v1439
        %1550 = vmatpush.msra.mxu0 %v1435
        %1551 = vmatpush.msra.mxu0 %v1431
        %1552 = vmatpush.msra.mxu0 %v1427
        %1553 = vmatpush.msra.mxu0 %v1423
        %1554 = vmatpush.msra.mxu0 %v1419
        %1555 = vmatpush.msra.mxu0 %v1415
        %1556 = vmatpush.msra.mxu0 %v1411
        %1557 = vmatpush.msra.mxu0 %v1407
        %1558 = vmatpush.msra.mxu0 %v1403
        %1559 = vmatmul.f32.gmra.mxu0 %v1398
        %v1560 = vpop.f32.mrf.mxu0
        %v1561 = vadd.f32 %v1469, %v1560
        %1562 = vmatmul.f32.gmra.mxu0 %v1399
        %v1563 = vpop.f32.mrf.mxu0
        %v1564 = vadd.f32 %v1469, %v1563
        %1565 = vdwg.mxu0
        %v1566 = vmul.f32 %v1492, %v1492
        %v1567 = vmul.f32 %v1515, %v1515
        %v1568 = vmul.f32 %v1538, %v1538
        %v1569 = vmul.f32 %v1561, %v1561
        %v1570 = vmul.f32 %v1495, %v1495
        %v1571 = vmul.f32 %v1518, %v1518
        %v1572 = vmul.f32 %v1541, %v1541
        %v1573 = vmul.f32 %v1564, %v1564
        %v1574 = vmul.f32 %v1492, %v1566
        %v1575 = vmul.f32 %v1515, %v1567
        %v1576 = vmul.f32 %v1538, %v1568
        %v1577 = vmul.f32 %v1561, %v1569
        %v1578 = vmul.f32 %v1495, %v1570
        %v1579 = vmul.f32 %v1518, %v1571
        %v1580 = vmul.f32 %v1541, %v1572
        %v1581 = vmul.f32 %v1564, %v1573
        %v1582 = vmul.f32 %v1574, 0.044715
        %v1583 = vmul.f32 %v1575, 0.044715
        %v1584 = vmul.f32 %v1576, 0.044715
        %v1585 = vmul.f32 %v1577, 0.044715
        %v1586 = vmul.f32 %v1578, 0.044715
        %v1587 = vmul.f32 %v1579, 0.044715
        %v1588 = vmul.f32 %v1580, 0.044715
        %v1589 = vmul.f32 %v1581, 0.044715
        %v1590 = vadd.f32 %v1492, %v1582
        %v1591 = vadd.f32 %v1515, %v1583
        %v1592 = vadd.f32 %v1538, %v1584
        %v1593 = vadd.f32 %v1561, %v1585
        %v1594 = vadd.f32 %v1495, %v1586
        %v1595 = vadd.f32 %v1518, %v1587
        %v1596 = vadd.f32 %v1541, %v1588
        %v1597 = vadd.f32 %v1564, %v1589
        %v1598 = vmul.f32 %v1590, 0.7978846
        %v1599 = vmul.f32 %v1591, 0.7978846
        %v1600 = vmul.f32 %v1592, 0.7978846
        %v1601 = vmul.f32 %v1593, 0.7978846
        %v1602 = vmul.f32 %v1594, 0.7978846
        %v1603 = vmul.f32 %v1595, 0.7978846
        %v1604 = vmul.f32 %v1596, 0.7978846
        %v1605 = vmul.f32 %v1597, 0.7978846
        %v1606 = vtanh.pop %v1598
        %v1607 = vtanh.pop %v1599
        %v1608 = vtanh.pop %v1600
        %v1609 = vtanh.pop %v1601
        %v1610 = vtanh.pop %v1602
        %v1611 = vtanh.pop %v1603
        %v1612 = vtanh.pop %v1604
        %v1613 = vtanh.pop %v1605
        %v1614 = vadd.f32 %v1606, 1.0
        %v1615 = vadd.f32 %v1607, 1.0
        %v1616 = vadd.f32 %v1608, 1.0
        %v1617 = vadd.f32 %v1609, 1.0
        %v1618 = vadd.f32 %v1610, 1.0
        %v1619 = vadd.f32 %v1611, 1.0
        %v1620 = vadd.f32 %v1612, 1.0
        %v1621 = vadd.f32 %v1613, 1.0
        %v1622 = vmul.f32 %v1614, 0.5
        %v1623 = vmul.f32 %v1615, 0.5
        %v1624 = vmul.f32 %v1616, 0.5
        %v1625 = vmul.f32 %v1617, 0.5
        %v1626 = vmul.f32 %v1618, 0.5
        %v1627 = vmul.f32 %v1619, 0.5
        %v1628 = vmul.f32 %v1620, 0.5
        %v1629 = vmul.f32 %v1621, 0.5
        %v1630 = vmul.f32 %v1492, %v1622
        %v1631 = vmul.f32 %v1515, %v1623
        %v1632 = vmul.f32 %v1538, %v1624
        %v1633 = vmul.f32 %v1561, %v1625
        %v1634 = vmul.f32 %v1495, %v1626
        %v1635 = vmul.f32 %v1518, %v1627
        %v1636 = vmul.f32 %v1541, %v1628
        %v1637 = vmul.f32 %v1564, %v1629
        %v1638 = vld [vmem:[%s658] sm:$0xff]
        %v1639 = vld [vmem:[%s658 + $0x8] sm:$0xff]
        %v1640 = vld [vmem:[%s658 + $0x10] sm:$0xff]
        %v1641 = vld [vmem:[%s658 + $0x18] sm:$0xff]
        %v1642 = vld [vmem:[%s658 + $0x20] sm:$0xff]
        %v1643 = vld [vmem:[%s658 + $0x28] sm:$0xff]
        %v1644 = vld [vmem:[%s658 + $0x30] sm:$0xff]
        %v1645 = vld [vmem:[%s658 + $0x38] sm:$0xff]
        %v1646 = vld [vmem:[%s658 + $0x40] sm:$0xff]
        %v1647 = vld [vmem:[%s658 + $0x48] sm:$0xff]
        %v1648 = vld [vmem:[%s658 + $0x50] sm:$0xff]
        %v1649 = vld [vmem:[%s658 + $0x58] sm:$0xff]
        %v1650 = vld [vmem:[%s658 + $0x60] sm:$0xff]
        %v1651 = vld [vmem:[%s658 + $0x68] sm:$0xff]
        %v1652 = vld [vmem:[%s658 + $0x70] sm:$0xff]
        %v1653 = vld [vmem:[%s658 + $0x78] sm:$0xff]
        %v1654 = vld [vmem:[%s658 + $0x80] sm:$0xff]
        %v1655 = vld [vmem:[%s658 + $0x88] sm:$0xff]
        %v1656 = vld [vmem:[%s658 + $0x90] sm:$0xff]
        %v1657 = vld [vmem:[%s658 + $0x98] sm:$0xff]
        %v1658 = vld [vmem:[%s658 + $0xa0] sm:$0xff]
        %v1659 = vld [vmem:[%s658 + $0xa8] sm:$0xff]
        %v1660 = vld [vmem:[%s658 + $0xb0] sm:$0xff]
        %v1661 = vld [vmem:[%s658 + $0xb8] sm:$0xff]
        %v1662 = vld [vmem:[%s658 + $0xc0] sm:$0xff]
        %v1663 = vld [vmem:[%s658 + $0xc8] sm:$0xff]
        %v1664 = vld [vmem:[%s658 + $0xd0] sm:$0xff]
        %v1665 = vld [vmem:[%s658 + $0xd8] sm:$0xff]
        %v1666 = vld [vmem:[%s658 + $0xe0] sm:$0xff]
        %v1667 = vld [vmem:[%s658 + $0xe8] sm:$0xff]
        %v1668 = vld [vmem:[%s658 + $0xf0] sm:$0xff]
        %v1669 = vld [vmem:[%s658 + $0xf8] sm:$0xff]
        %v1670 = vld [vmem:[%s658 + $0x100] sm:$0xff]
        %v1671 = vld [vmem:[%s658 + $0x108] sm:$0xff]
        %v1672 = vld [vmem:[%s658 + $0x110] sm:$0xff]
        %v1673 = vld [vmem:[%s658 + $0x118] sm:$0xff]
        %v1674 = vld [vmem:[%s658 + $0x120] sm:$0xff]
        %v1675 = vld [vmem:[%s658 + $0x128] sm:$0xff]
        %v1676 = vld [vmem:[%s658 + $0x130] sm:$0xff]
        %v1677 = vld [vmem:[%s658 + $0x138] sm:$0xff]
        %v1678 = vld [vmem:[%s658 + $0x140] sm:$0xff]
        %v1679 = vld [vmem:[%s658 + $0x148] sm:$0xff]
        %v1680 = vld [vmem:[%s658 + $0x150] sm:$0xff]
        %v1681 = vld [vmem:[%s658 + $0x158] sm:$0xff]
        %v1682 = vld [vmem:[%s658 + $0x160] sm:$0xff]
        %v1683 = vld [vmem:[%s658 + $0x168] sm:$0xff]
        %v1684 = vld [vmem:[%s658 + $0x170] sm:$0xff]
        %v1685 = vld [vmem:[%s658 + $0x178] sm:$0xff]
        %v1686 = vld [vmem:[%s658 + $0x180] sm:$0xff]
        %v1687 = vld [vmem:[%s658 + $0x188] sm:$0xff]
        %v1688 = vld [vmem:[%s658 + $0x190] sm:$0xff]
        %v1689 = vld [vmem:[%s658 + $0x198] sm:$0xff]
        %v1690 = vld [vmem:[%s658 + $0x1a0] sm:$0xff]
        %v1691 = vld [vmem:[%s658 + $0x1a8] sm:$0xff]
        %v1692 = vld [vmem:[%s658 + $0x1b0] sm:$0xff]
        %v1693 = vld [vmem:[%s658 + $0x1b8] sm:$0xff]
        %v1694 = vld [vmem:[%s658 + $0x1c0] sm:$0xff]
        %v1695 = vld [vmem:[%s658 + $0x1c8] sm:$0xff]
        %v1696 = vld [vmem:[%s658 + $0x1d0] sm:$0xff]
        %v1697 = vld [vmem:[%s658 + $0x1d8] sm:$0xff]
        %v1698 = vld [vmem:[%s658 + $0x1e0] sm:$0xff]
        %v1699 = vld [vmem:[%s658 + $0x1e8] sm:$0xff]
        %v1700 = vld [vmem:[%s658 + $0x1f0] sm:$0xff]
        %v1701 = vld [vmem:[%s658 + $0x1f8] sm:$0xff]
        %v1702 = vld [vmem:[%s763] sm:$0x1]
        %v1704 = vperm.slane %v1702, 0
        %1706 = vmatpush.msra.mxu0 %v1653
        %1707 = vmatpush.msra.mxu0 %v1652
        %1708 = vmatpush.msra.mxu0 %v1651
        %1709 = vmatpush.msra.mxu0 %v1650
        %1710 = vmatpush.msra.mxu0 %v1649
        %1711 = vmatpush.msra.mxu0 %v1648
        %1712 = vmatpush.msra.mxu0 %v1647
        %1713 = vmatpush.msra.mxu0 %v1646
        %1714 = vmatpush.msra.mxu0 %v1645
        %1715 = vmatpush.msra.mxu0 %v1644
        %1716 = vmatpush.msra.mxu0 %v1643
        %1717 = vmatpush.msra.mxu0 %v1642
        %1718 = vmatpush.msra.mxu0 %v1641
        %1719 = vmatpush.msra.mxu0 %v1640
        %1720 = vmatpush.msra.mxu0 %v1639
        %1721 = vmatpush.msra.mxu0 %v1638
        %1722 = vmatmul.f32.gmra.mxu0 %v1630
        %v1723 = vpop.f32.mrf.mxu0
        %v1724 = vadd.f32 %v1704, %v1723
        %1725 = vmatmul.f32.gmra.mxu0 %v1634
        %v1726 = vpop.f32.mrf.mxu0
        %v1727 = vadd.f32 %v1704, %v1726
        %1728 = vdwg.mxu0
        %1729 = vmatpush.msra.mxu0 %v1669
        %1730 = vmatpush.msra.mxu0 %v1668
        %1731 = vmatpush.msra.mxu0 %v1667
        %1732 = vmatpush.msra.mxu0 %v1666
        %1733 = vmatpush.msra.mxu0 %v1665
        %1734 = vmatpush.msra.mxu0 %v1664
        %1735 = vmatpush.msra.mxu0 %v1663
        %1736 = vmatpush.msra.mxu0 %v1662
        %1737 = vmatpush.msra.mxu0 %v1661
        %1738 = vmatpush.msra.mxu0 %v1660
        %1739 = vmatpush.msra.mxu0 %v1659
        %1740 = vmatpush.msra.mxu0 %v1658
        %1741 = vmatpush.msra.mxu0 %v1657
        %1742 = vmatpush.msra.mxu0 %v1656
        %1743 = vmatpush.msra.mxu0 %v1655
        %1744 = vmatpush.msra.mxu0 %v1654
        %1745 = vmatmul.f32.gmra.mxu0 %v1631
        %v1746 = vpop.f32.mrf.mxu0
        %v1747 = vadd.f32 %v1724, %v1746
        %1748 = vmatmul.f32.gmra.mxu0 %v1635
        %v1749 = vpop.f32.mrf.mxu0
        %v1750 = vadd.f32 %v1727, %v1749
        %1751 = vdwg.mxu0
        %1752 = vmatpush.msra.mxu0 %v1685
        %1753 = vmatpush.msra.mxu0 %v1684
        %1754 = vmatpush.msra.mxu0 %v1683
        %1755 = vmatpush.msra.mxu0 %v1682
        %1756 = vmatpush.msra.mxu0 %v1681
        %1757 = vmatpush.msra.mxu0 %v1680
        %1758 = vmatpush.msra.mxu0 %v1679
        %1759 = vmatpush.msra.mxu0 %v1678
        %1760 = vmatpush.msra.mxu0 %v1677
        %1761 = vmatpush.msra.mxu0 %v1676
        %1762 = vmatpush.msra.mxu0 %v1675
        %1763 = vmatpush.msra.mxu0 %v1674
        %1764 = vmatpush.msra.mxu0 %v1673
        %1765 = vmatpush.msra.mxu0 %v1672
        %1766 = vmatpush.msra.mxu0 %v1671
        %1767 = vmatpush.msra.mxu0 %v1670
        %1768 = vmatmul.f32.gmra.mxu0 %v1632
        %v1769 = vpop.f32.mrf.mxu0
        %v1770 = vadd.f32 %v1747, %v1769
        %1771 = vmatmul.f32.gmra.mxu0 %v1636
        %v1772 = vpop.f32.mrf.mxu0
        %v1773 = vadd.f32 %v1750, %v1772
        %1774 = vdwg.mxu0
        %1775 = vmatpush.msra.mxu0 %v1701
        %1776 = vmatpush.msra.mxu0 %v1700
        %1777 = vmatpush.msra.mxu0 %v1699
        %1778 = vmatpush.msra.mxu0 %v1698
        %1779 = vmatpush.msra.mxu0 %v1697
        %1780 = vmatpush.msra.mxu0 %v1696
        %1781 = vmatpush.msra.mxu0 %v1695
        %1782 = vmatpush.msra.mxu0 %v1694
        %1783 = vmatpush.msra.mxu0 %v1693
        %1784 = vmatpush.msra.mxu0 %v1692
        %1785 = vmatpush.msra.mxu0 %v1691
        %1786 = vmatpush.msra.mxu0 %v1690
        %1787 = vmatpush.msra.mxu0 %v1689
        %1788 = vmatpush.msra.mxu0 %v1688
        %1789 = vmatpush.msra.mxu0 %v1687
        %1790 = vmatpush.msra.mxu0 %v1686
        %1791 = vmatmul.f32.gmra.mxu0 %v1633
        %v1792 = vpop.f32.mrf.mxu0
        %v1793 = vadd.f32 %v1770, %v1792
        %1794 = vmatmul.f32.gmra.mxu0 %v1637
        %v1795 = vpop.f32.mrf.mxu0
        %v1796 = vadd.f32 %v1773, %v1795
        %1797 = vdwg.mxu0
        %v1798 = vadd.f32 %v1793, %v1398
        %v1799 = vadd.f32 %v1796, %v1399
        %v1800 = vld [vmem:[%s766] sm:$0x1]
        %v1801 = vld [vmem:[%s769] sm:$0x1]
        %1802 = vadd.xlane.f32.xlu0 %v1798
        %v1803 = vpop.xlane.xlu0 %1802
        %1804 = vadd.xlane.f32.xlu0 %v1799
        %v1805 = vpop.xlane.xlu0 %1804
        %v1806 = vmul.f32 %v1803, %v1353
        %v1807 = vmul.f32 %v1805, %v1353
        %v1808 = vsub.f32 %v1798, %v1806
        %v1809 = vsub.f32 %v1799, %v1807
        %v1810 = vmul.f32 %v1808, %v1808
        %v1811 = vmul.f32 %v1809, %v1809
        %1812 = vadd.xlane.f32.xlu0 %v1810
        %v1813 = vpop.xlane.xlu0 %1812
        %1814 = vadd.xlane.f32.xlu0 %v1811
        %v1815 = vpop.xlane.xlu0 %1814
        %v1816 = vmul.f32 %v1813, %v1353
        %v1817 = vmul.f32 %v1815, %v1353
        %v1818 = vadd.f32 %v1816, 1e-12
        %v1819 = vadd.f32 %v1817, 1e-12
        %v1820 = vrsqrt.pop %v1818
        %v1821 = vmul.f32 %v1820, %v1818
        %v1822 = vmul.f32 %v1821, %v1820
        %v1823 = vmul.f32 0.5, %v1822
        %v1824 = vsub.f32 1.5, %v1823
        %v1825 = vmul.f32 %v1820, %v1824
        %vm1826 = vweird.f32 %v1818
        %vm1827 = vweird.f32 %v1820
        %vm1828 = vmor %vm1826, %vm1827
        %v1829 = vsel %vm1828, %v1820, %v1825
        %v1830 = vrsqrt.pop %v1819
        %v1831 = vmul.f32 %v1830, %v1819
        %v1832 = vmul.f32 %v1831, %v1830
        %v1833 = vmul.f32 0.5, %v1832
        %v1834 = vsub.f32 1.5, %v1833
        %v1835 = vmul.f32 %v1830, %v1834
        %vm1836 = vweird.f32 %v1819
        %vm1837 = vweird.f32 %v1830
        %vm1838 = vmor %vm1836, %vm1837
        %v1839 = vsel %vm1838, %v1830, %v1835
        %v1840 = vmul.f32 %v1808, %v1829
        %v1841 = vmul.f32 %v1809, %v1839
        %v1843 = vperm.slane %v1800, 0
        %v1845 = vmul.f32 %v1840, %v1843
        %v1846 = vmul.f32 %v1841, %v1843
        %v1848 = vperm.slane %v1801, 0
        %v1850 = vadd.f32 %v1845, %v1848
        %v1851 = vadd.f32 %v1846, %v1848
        %1852 = vst [vmem:[%s16] sm:$0xff] %v1850
        %1853 = vst [vmem:[%s16 + $0x8] sm:$0xff] %v1851
        // Predicated region
        $region105: #{bert_class_forward.2} parent=83 // pred_check
          %p1854 = pneg %p445
        $region106: #{bert_class_forward.2} parent=83 // pred_check_branch
          %1856 = sbr.rel (%p1854) target = $region108
        $region107: #{bert_class_forward.2} parent=83 // pred_region
          _
        $region108: #{bert_class_forward.2} parent=83 // pred_fallthru
          _
        // Predicated region
        $region109: #{bert_class_forward.2} parent=83 // pred_check
          %p1857 = pneg %p445
        $region110: #{bert_class_forward.2} parent=83 // pred_check_branch
          %1859 = sbr.rel (%p1857) target = $region112
        $region111: #{bert_class_forward.2} parent=83 // pred_region
          _
        $region112: #{bert_class_forward.2} parent=83 // pred_fallthru
          _
      $region84: #{bert_class_forward.2} parent=5 // pred_fallthru
        _
      %p1860 = scmp.le.s32.totalorder 2, %s31
      // Predicated region
      $region113: #{bert_class_forward.2} parent=5 // pred_check
        %p1861 = pneg %p1860
      $region114: #{bert_class_forward.2} parent=5 // pred_check_branch
        %1863 = sbr.rel (%p1861) target = $region116
      $region115: #{bert_class_forward.2} parent=5 // pred_region
        %s1864 = ssub.s32 %s31, 2
      $region116: #{bert_class_forward.2} parent=5 // pred_fallthru
        _
    $region6: #{bert_class_forward.2} parent=1 // loop_footer
      %s35 = sadd.s32 1, %s31
    $region7: #{bert_class_forward.2} parent=1 // loop_footer_branch
      %30 = sbr.rel target = $region3
    $region8: #{bert_class_forward.2} parent=1 // loop_exit
      _
    %1865 = vsyncpa [#allocation4], 1
    %s1866 = scalar_lea.sflag [#allocation4], 1
    %1867 = vsyncpa %s1866, 1
    %1868 = vsyncpa [#allocation6], 1
    %s1869 = scalar_lea.sflag [#allocation6], 1
    %1870 = vsyncpa %s1869, 1
    %1871 = vsyncpa [#allocation9], 1
    %s1872 = scalar_lea.sflag [#allocation9], 1
    %1873 = vsyncpa %s1872, 1

</llo_original>
